<compile_context>
chip_gen: v6e
topology: v6e:2x2x1
jax: 0.10.0
libtpu: 0.0.40
codegen_flags: <defaults>
</compile_context>

<pallas_src>
from functools import partial

import jax
import jax.numpy as jnp
from jax import lax
from jax.experimental import pallas as pl
from jax.experimental.pallas import tpu as pltpu


def _decoder_block_kernel(x_ref, xh_ref, w1_ref, wp00_ref, wp01_ref,
                          wp10_ref, wp11_ref, w3_ref, b1_ref, b2_ref, b3_ref,
                          out_ref, t_ref):
    """One (batch, row-tile) step.

    x_ref  : (1, TH, W, Cin)        bf16 input rows of this tile (NHWC)
    xh_ref : (1, 1, W, Cin)         bf16 halo row (first row of the next tile)
    w1_ref : (Cin, Cm)              bf16, BN1 scale folded in
    wp*_ref: packed deconv taps     bf16, BN2 scale folded in
             wp00 (Cm,Cm)=W[1,1]; wp01 (2Cm,Cm)=[W[1,2];W[1,0]];
             wp10 (2Cm,Cm)=[W[2,1];W[0,1]];
             wp11 (4Cm,Cm)=[W[2,2];W[2,0];W[0,2];W[0,0]]
    w3_ref : (Cm, Cout)             bf16, BN3 scale folded in
    b*_ref : (1, C)                 f32 folded BN(+conv) biases
    out_ref: (1, 4, TH, W, Cout)    bf16 phase slab [(0,0),(0,1),(1,0),(1,1)]
    t_ref  : (TH+1, W+1, Cm)        bf16 scratch: conv1 output + halo + zero col
    """
    TH = x_ref.shape[1]
    W = x_ref.shape[2]
    Cin = x_ref.shape[3]
    Cm = w1_ref.shape[1]
    Cout = w3_ref.shape[1]
    R = TH * W

    b1 = b1_ref[0]
    b2 = b2_ref[0]
    b3 = b3_ref[0]
    w1 = w1_ref[...]
    w3 = w3_ref[...]

    # ---- conv1 (1x1) + BN1 bias + ReLU --------------------------------------
    x2d = x_ref[0].reshape(R, Cin)
    tm = jnp.dot(x2d, w1, preferred_element_type=jnp.float32)
    tm = jnp.maximum(tm + b1, 0.0).astype(jnp.bfloat16)

    # One-row halo (first row of the next tile).  Beyond the image bottom the
    # transposed conv must see zeros, so mask it out on the last row tile.
    th = jnp.dot(xh_ref[0, 0], w1, preferred_element_type=jnp.float32)
    th = jnp.maximum(th + b1, 0.0)
    is_last = pl.program_id(1) == pl.num_programs(1) - 1
    th = (th * jnp.where(is_last, 0.0, 1.0)).astype(jnp.bfloat16)

    # Assemble the (TH+1, W+1) conv1 slab in scratch (zero right column is the
    # right-of-image neighbour for the shifted taps).
    t_ref[0:TH, 0:W, :] = tm.reshape(TH, W, Cm)
    t_ref[TH:TH + 1, 0:W, :] = th.reshape(1, W, Cm)
    t_ref[0:TH + 1, W:W + 1, :] = jnp.zeros((TH + 1, 1, Cm), jnp.bfloat16)
    te = t_ref[...]                                    # (TH+1, W+1, Cm)

    # ---- ConvTranspose2d(3x3, s=2, p=1, out_pad=1): sub-pixel decomposition,
    # each parity phase fused with BN2+ReLU -> conv3(1x1) -> BN3+ReLU and
    # stored before the next phase is built (one live f32 accumulator).
    def head_store(phase, p):
        p = jnp.maximum(p + b2, 0.0).astype(jnp.bfloat16)
        y = jnp.dot(p, w3, preferred_element_type=jnp.float32)
        y = jnp.maximum(y + b3, 0.0).astype(out_ref.dtype)
        out_ref[0, phase] = y.reshape(TH, W, Cout)

    t = te[0:TH, 0:W, :].reshape(R, Cm)                # t[m,   n]
    head_store(0, jnp.dot(t, wp00_ref[...],
                          preferred_element_type=jnp.float32))

    tr = te[0:TH, 1:W + 1, :].reshape(R, Cm)           # t[m,   n+1]
    a01 = jnp.concatenate([t, tr], axis=-1)            # contraction depth 2*Cm
    head_store(1, jnp.dot(a01, wp01_ref[...],
                          preferred_element_type=jnp.float32))

    td = te[1:TH + 1, 0:W, :].reshape(R, Cm)           # t[m+1, n]
    a10 = jnp.concatenate([t, td], axis=-1)
    head_store(2, jnp.dot(a10, wp10_ref[...],
                          preferred_element_type=jnp.float32))

    tdr = te[1:TH + 1, 1:W + 1, :].reshape(R, Cm)      # t[m+1, n+1]
    a11 = jnp.concatenate([a01, td, tdr], axis=-1)     # contraction depth 4*Cm
    head_store(3, jnp.dot(a11, wp11_ref[...],
                          preferred_element_type=jnp.float32))


def _fold_bn(conv_bias, gamma, beta, mean, var, eps=1e-5):
    scale = gamma / jnp.sqrt(var + eps)
    bias = beta + (conv_bias - mean) * scale
    return scale, bias


def _pick_tile_h(H, W, Cin, Cm, Cout, budget_bytes=24 * 1024 * 1024):
    """Largest divisor of H whose per-step working set fits a v7x-safe budget
    (double-buffered I/O blocks + scratch + live packed-tap intermediates)."""
    def step_bytes(th):
        rows = th * W
        x_blk = rows * Cin * 2
        out_blk = 4 * rows * Cout * 2
        scratch = (th + 1) * (W + 1) * Cm * 2
        live = rows * (8 * Cm * 2 + (Cm + Cout) * 4)
        return 2 * (x_blk + out_blk) + scratch + live
    for th in range(H, 0, -1):
        if H % th == 0 and step_bytes(th) <= budget_bytes:
            return th
    return 1


@partial(jax.jit, static_argnames=("tile_h",))
def decoder_block(x_nchw, w1, b1c, bn1, w2, b2c, bn2, w3, b3c, bn3,
                  tile_h=None):
    """Forward pass of DecoderBlock (groups=1, eval-mode BatchNorm).

    x_nchw : (N, Cin, H, W) f32
    w1     : (Cin, Cm)       conv1 1x1 weight (PyTorch (Cm,Cin,1,1) transposed)
    w2     : (3, 3, Cm, Cm)  deconv2 weight as (ky,kx,ci,co)
    w3     : (Cm, Cout)      conv3 1x1 weight (PyTorch (Cout,Cm,1,1) transposed)
    b*c    : conv biases; bn* : (gamma, beta, running_mean, running_var)
    returns (N, Cout, 2H, 2W) f32
    """
    x = jnp.transpose(x_nchw, (0, 2, 3, 1))            # NCHW -> NHWC
    N, H, W, Cin = x.shape
    Cm = w1.shape[1]
    Cout = w3.shape[1]
    if tile_h is None:
        tile_h = _pick_tile_h(H, W, Cin, Cm, Cout)
    if H % tile_h != 0:
        raise ValueError(f"tile_h={tile_h} must divide H={H}")
    n_row_tiles = H // tile_h

    s1, b1 = _fold_bn(b1c, *bn1)
    s2, b2 = _fold_bn(b2c, *bn2)
    s3, b3 = _fold_bn(b3c, *bn3)

    # Fold BN scale into conv weights; pack each parity phase's deconv taps
    # along the contraction dim (matches the [t|tr|td|tdr] activation packs).
    w1f = (w1 * s1[None, :]).astype(jnp.bfloat16)
    w2f = w2 * s2[None, None, None, :]
    wp00 = w2f[1, 1].astype(jnp.bfloat16)
    wp01 = jnp.concatenate([w2f[1, 2], w2f[1, 0]], axis=0).astype(jnp.bfloat16)
    wp10 = jnp.concatenate([w2f[2, 1], w2f[0, 1]], axis=0).astype(jnp.bfloat16)
    wp11 = jnp.concatenate([w2f[2, 2], w2f[2, 0], w2f[0, 2], w2f[0, 0]],
                           axis=0).astype(jnp.bfloat16)
    w3f = (w3 * s3[None, :]).astype(jnp.bfloat16)

    xb = x.astype(jnp.bfloat16)
    b1r = b1.reshape(1, Cm).astype(jnp.float32)
    b2r = b2.reshape(1, Cm).astype(jnp.float32)
    b3r = b3.reshape(1, Cout).astype(jnp.float32)

    flops = 2 * N * H * W * (Cin * Cm + 9 * Cm * Cm + 4 * Cm * Cout)
    bytes_accessed = (N * H * W * Cin * 2 + N * 4 * H * W * Cout * 2
                      + (Cin * Cm + 9 * Cm * Cm + Cm * Cout) * 2
                      + (2 * Cm + Cout) * 4)

    out5 = pl.pallas_call(
        _decoder_block_kernel,
        out_shape=jax.ShapeDtypeStruct((N, 4, H, W, Cout), jnp.bfloat16),
        grid=(N, n_row_tiles),
        in_specs=[
            # main rows of the tile
            pl.BlockSpec((1, tile_h, W, Cin), lambda n, r: (n, r, 0, 0)),
            # one-row bottom halo (clamped at the image edge; masked in-kernel)
            pl.BlockSpec((1, 1, W, Cin),
                         lambda n, r: (n, jnp.minimum((r + 1) * tile_h, H - 1),
                                       0, 0)),
            pl.BlockSpec((Cin, Cm), lambda n, r: (0, 0)),
            pl.BlockSpec((Cm, Cm), lambda n, r: (0, 0)),
            pl.BlockSpec((2 * Cm, Cm), lambda n, r: (0, 0)),
            pl.BlockSpec((2 * Cm, Cm), lambda n, r: (0, 0)),
            pl.BlockSpec((4 * Cm, Cm), lambda n, r: (0, 0)),
            pl.BlockSpec((Cm, Cout), lambda n, r: (0, 0)),
            pl.BlockSpec((1, Cm), lambda n, r: (0, 0)),
            pl.BlockSpec((1, Cm), lambda n, r: (0, 0)),
            pl.BlockSpec((1, Cout), lambda n, r: (0, 0)),
        ],
        out_specs=pl.BlockSpec((1, 4, tile_h, W, Cout),
                               lambda n, r: (n, 0, r, 0, 0)),
        scratch_shapes=[pltpu.VMEM((tile_h + 1, W + 1, Cm), jnp.bfloat16)],
        compiler_params=pltpu.CompilerParams(
            dimension_semantics=("parallel", "parallel"),
            vmem_limit_bytes=48 * 1024 * 1024),
        cost_estimate=pl.CostEstimate(flops=flops, transcendentals=0,
                                      bytes_accessed=bytes_accessed),
    )(xb, xb, w1f, wp00, wp01, wp10, wp11, w3f, b1r, b2r, b3r)

    # Pixel-shuffle the 4 parity phases into (2H, 2W); transpose stays in
    # bf16, only the final result is cast back to f32 (fused by XLA).
    out6 = out5.reshape(N, 2, 2, H, W, Cout)           # (n, py, px, h, w, c)
    out = jnp.transpose(out6, (0, 5, 3, 1, 4, 2)).reshape(N, Cout, 2 * H, 2 * W)
    return out.astype(jnp.float32)


def _reference(x_nchw, w1, b1c, bn1, w2, b2c, bn2, w3, b3c, bn3):
    """Pure-JAX reference mirroring the kernel's bf16-operand / f32-acc math."""
    x = jnp.transpose(x_nchw, (0, 2, 3, 1)).astype(jnp.bfloat16)
    s1, b1 = _fold_bn(b1c, *bn1)
    s2, b2 = _fold_bn(b2c, *bn2)
    s3, b3 = _fold_bn(b3c, *bn3)
    w1f = (w1 * s1[None, :]).astype(jnp.bfloat16)
    w2f = (w2 * s2[None, None, None, :]).astype(jnp.bfloat16)
    w3f = (w3 * s3[None, :]).astype(jnp.bfloat16)

    t = jnp.einsum("nhwi,io->nhwo", x, w1f, preferred_element_type=jnp.float32)
    t = jnp.maximum(t + b1, 0.0).astype(jnp.bfloat16)

    # ConvTranspose2d(k=3, s=2, p=1, output_padding=1) == conv of the 2x
    # zero-dilated input with the spatially-flipped kernel, padding (1, 2).
    d = lax.conv_general_dilated(
        t, w2f[::-1, ::-1], window_strides=(1, 1),
        padding=((1, 2), (1, 2)), lhs_dilation=(2, 2),
        dimension_numbers=("NHWC", "HWIO", "NHWC"),
        preferred_element_type=jnp.float32)
    d = jnp.maximum(d + b2, 0.0).astype(jnp.bfloat16)

    y = jnp.einsum("nhwi,io->nhwo", d, w3f, preferred_element_type=jnp.float32)
    y = jnp.maximum(y + b3, 0.0).astype(jnp.bfloat16).astype(jnp.float32)
    return jnp.transpose(y, (0, 3, 1, 2))


if __name__ == "__main__":
    # Small shapes: batch=2, in_channels=16 (mid=4), n_filters=8, spatial 16x16.
    N, Cin, H, W = 2, 16, 16, 16
    n_filters = 8
    Cm = Cin // 4

    key = jax.random.PRNGKey(0)
    k = jax.random.split(key, 10)

    x = jax.random.normal(k[0], (N, Cin, H, W), jnp.float32)
    # Weights generated directly in the kernel-friendly layouts (a PyTorch
    # checkpoint would be transposed into these once at load time), using the
    # module's N(0, sqrt(2/(k*k*out))) init scale.
    w1 = jax.random.normal(k[1], (Cin, Cm), jnp.float32) * (2.0 / (1 * 1 * Cm)) ** 0.5
    w2 = jax.random.normal(k[2], (3, 3, Cm, Cm), jnp.float32) * (2.0 / (3 * 3 * Cm)) ** 0.5
    w3 = jax.random.normal(k[3], (Cm, n_filters), jnp.float32) * (2.0 / (1 * 1 * n_filters)) ** 0.5
    b1c = 0.05 * jax.random.normal(k[4], (Cm,), jnp.float32)
    b2c = 0.05 * jax.random.normal(k[5], (Cm,), jnp.float32)
    b3c = 0.05 * jax.random.normal(k[6], (n_filters,), jnp.float32)

    def bn_params(kk, c):
        kg, kb, km, kv = jax.random.split(kk, 4)
        return (1.0 + 0.1 * jax.random.normal(kg, (c,), jnp.float32),          # gamma
                0.1 * jax.random.normal(kb, (c,), jnp.float32),                # beta
                0.1 * jax.random.normal(km, (c,), jnp.float32),                # running_mean
                1.0 + 0.1 * jnp.abs(jax.random.normal(kv, (c,), jnp.float32))) # running_var

    bn1 = bn_params(k[7], Cm)
    bn2 = bn_params(k[8], Cm)
    bn3 = bn_params(k[9], n_filters)

    # tile_h=8 -> two row tiles per image: exercises the halo row and the
    # last-tile (beyond-image) masking path.
    out = decoder_block(x, w1, b1c, bn1, w2, b2c, bn2, w3, b3c, bn3, tile_h=8)
    out = jax.block_until_ready(out)
    assert out.shape == (N, n_filters, 2 * H, 2 * W)

    ref = _reference(x, w1, b1c, bn1, w2, b2c, bn2, w3, b3c, bn3)
    assert jnp.allclose(out, ref, atol=2e-2, rtol=2e-2), "mismatch vs reference"

    print("KERNEL_OK")
</pallas_src>

<mosaic_0001>
module attributes {stable_mosaic.version = 11 : i64} {
  func.func @_decoder_block_kernel(%arg0: i32, %arg1: i32, %arg2: memref<1x8x16x16xbf16, #tpu.memory_space<vmem>>, %arg3: memref<1x1x16x16xbf16, #tpu.memory_space<vmem>>, %arg4: memref<16x4xbf16, #tpu.memory_space<vmem>>, %arg5: memref<4x4xbf16, #tpu.memory_space<vmem>>, %arg6: memref<8x4xbf16, #tpu.memory_space<vmem>>, %arg7: memref<8x4xbf16, #tpu.memory_space<vmem>>, %arg8: memref<16x4xbf16, #tpu.memory_space<vmem>>, %arg9: memref<4x8xbf16, #tpu.memory_space<vmem>>, %arg10: memref<1x4xf32, #tpu.memory_space<vmem>>, %arg11: memref<1x4xf32, #tpu.memory_space<vmem>>, %arg12: memref<1x8xf32, #tpu.memory_space<vmem>>, %arg13: memref<1x4x8x16x8xbf16, #tpu.memory_space<vmem>>, %arg14: memref<9x17x4xbf16, #tpu.memory_space<vmem>>) attributes {dimension_semantics = [#tpu.dimension_semantics<parallel>, #tpu.dimension_semantics<parallel>], iteration_bounds = array<i64: 2, 2>, scalar_prefetch = 0 : i64, scratch_operands = 1 : i64, tpu.core_type = #tpu.core_type<tc>, window_params = [{transform_indices = @transform_0, window_bounds = array<i64: 1, 8, 16, 16>}, {transform_indices = @transform_1, window_bounds = array<i64: 1, 1, 16, 16>}, {pipeline_mode = #tpu.pipeline_mode<synchronous>, transform_indices = @transform_2, window_bounds = array<i64: 16, 4>}, {pipeline_mode = #tpu.pipeline_mode<synchronous>, transform_indices = @transform_3, window_bounds = array<i64: 4, 4>}, {pipeline_mode = #tpu.pipeline_mode<synchronous>, transform_indices = @transform_4, window_bounds = array<i64: 8, 4>}, {pipeline_mode = #tpu.pipeline_mode<synchronous>, transform_indices = @transform_5, window_bounds = array<i64: 8, 4>}, {pipeline_mode = #tpu.pipeline_mode<synchronous>, transform_indices = @transform_6, window_bounds = array<i64: 16, 4>}, {pipeline_mode = #tpu.pipeline_mode<synchronous>, transform_indices = @transform_7, window_bounds = array<i64: 4, 8>}, {pipeline_mode = #tpu.pipeline_mode<synchronous>, transform_indices = @transform_8, window_bounds = array<i64: 1, 4>}, {pipeline_mode = #tpu.pipeline_mode<synchronous>, transform_indices = @transform_9, window_bounds = array<i64: 1, 4>}, {pipeline_mode = #tpu.pipeline_mode<synchronous>, transform_indices = @transform_10, window_bounds = array<i64: 1, 8>}, {transform_indices = @transform_11, window_bounds = array<i64: 1, 4, 8, 16, 8>}]} {
    %c0 = arith.constant 0 : index
    %c0_0 = arith.constant 0 : index
    %0 = vector.load %arg10[%c0, %c0_0] : memref<1x4xf32, #tpu.memory_space<vmem>>, vector<1x4xf32>
    %1 = vector.shape_cast %0 : vector<1x4xf32> to vector<4xf32>
    %c0_1 = arith.constant 0 : index
    %c0_2 = arith.constant 0 : index
    %2 = vector.load %arg11[%c0_1, %c0_2] : memref<1x4xf32, #tpu.memory_space<vmem>>, vector<1x4xf32>
    %3 = vector.shape_cast %2 : vector<1x4xf32> to vector<4xf32>
    %c0_3 = arith.constant 0 : index
    %c0_4 = arith.constant 0 : index
    %4 = vector.load %arg12[%c0_3, %c0_4] : memref<1x8xf32, #tpu.memory_space<vmem>>, vector<1x8xf32>
    %5 = vector.shape_cast %4 : vector<1x8xf32> to vector<8xf32>
    %c0_5 = arith.constant 0 : index
    %c0_6 = arith.constant 0 : index
    %6 = vector.load %arg4[%c0_5, %c0_6] : memref<16x4xbf16, #tpu.memory_space<vmem>>, vector<16x4xbf16>
    %c0_7 = arith.constant 0 : index
    %c0_8 = arith.constant 0 : index
    %7 = vector.load %arg9[%c0_7, %c0_8] : memref<4x8xbf16, #tpu.memory_space<vmem>>, vector<4x8xbf16>
    %c0_9 = arith.constant 0 : index
    %c0_10 = arith.constant 0 : index
    %c0_11 = arith.constant 0 : index
    %c0_12 = arith.constant 0 : index
    %8 = vector.load %arg2[%c0_9, %c0_10, %c0_11, %c0_12] : memref<1x8x16x16xbf16, #tpu.memory_space<vmem>>, vector<1x8x16x16xbf16>
    %9 = vector.shape_cast %8 : vector<1x8x16x16xbf16> to vector<8x16x16xbf16>
    %10 = vector.shape_cast %9 : vector<8x16x16xbf16> to vector<128x16xbf16>
    %cst = arith.constant dense<0.000000e+00> : vector<128x4xf32>
    %11 = tpu.matmul %10, %6, %cst {dimension_numbers = #tpu.dot_dimension_numbers<[1], [0], [0], [1], [0, 0, 1, 1], [], []>} : vector<128x16xbf16>, vector<16x4xbf16>, vector<128x4xf32> -> vector<128x4xf32>
    %12 = vector.shape_cast %1 : vector<4xf32> to vector<1x4xf32>
    %13 = vector.broadcast %12 : vector<1x4xf32> to vector<128x4xf32>
    %14 = arith.addf %11, %13 : vector<128x4xf32>
    %cst_13 = arith.constant 0.000000e+00 : f32
    %15 = vector.broadcast %cst_13 : f32 to vector<128x4xf32>
    %16 = arith.maximumf %14, %15 : vector<128x4xf32>
    %17 = arith.truncf %16 : vector<128x4xf32> to vector<128x4xbf16>
    %c0_14 = arith.constant 0 : index
    %c0_15 = arith.constant 0 : index
    %c0_16 = arith.constant 0 : index
    %c0_17 = arith.constant 0 : index
    %18 = vector.load %arg3[%c0_14, %c0_15, %c0_16, %c0_17] : memref<1x1x16x16xbf16, #tpu.memory_space<vmem>>, vector<1x1x16x16xbf16>
    %19 = vector.shape_cast %18 : vector<1x1x16x16xbf16> to vector<16x16xbf16>
    %cst_18 = arith.constant dense<0.000000e+00> : vector<16x4xf32>
    %20 = tpu.matmul %19, %6, %cst_18 {dimension_numbers = #tpu.dot_dimension_numbers<[1], [0], [0], [1], [0, 0, 1, 1], [], []>} : vector<16x16xbf16>, vector<16x4xbf16>, vector<16x4xf32> -> vector<16x4xf32>
    %21 = vector.shape_cast %1 : vector<4xf32> to vector<1x4xf32>
    %22 = vector.broadcast %21 : vector<1x4xf32> to vector<16x4xf32>
    %23 = arith.addf %20, %22 : vector<16x4xf32>
    %cst_19 = arith.constant 0.000000e+00 : f32
    %24 = vector.broadcast %cst_19 : f32 to vector<16x4xf32>
    %25 = arith.maximumf %23, %24 : vector<16x4xf32>
    %c1_i32 = arith.constant 1 : i32
    %26 = arith.cmpi eq, %arg1, %c1_i32 : i32
    %cst_20 = arith.constant 0.000000e+00 : f32
    %cst_21 = arith.constant 1.000000e+00 : f32
    %27 = arith.select %26, %cst_20, %cst_21 : f32
    %28 = vector.broadcast %27 : f32 to vector<16x4xf32>
    %29 = arith.mulf %25, %28 : vector<16x4xf32>
    %30 = arith.truncf %29 : vector<16x4xf32> to vector<16x4xbf16>
    %31 = vector.shape_cast %17 : vector<128x4xbf16> to vector<8x16x4xbf16>
    %c0_22 = arith.constant 0 : index
    %c0_23 = arith.constant 0 : index
    %c0_24 = arith.constant 0 : index
    %32 = vector.load %arg14[%c0_22, %c0_23, %c0_24] : memref<9x17x4xbf16, #tpu.memory_space<vmem>>, vector<8x16x4xbf16>
    tpu.vector_store %arg14[%c0_22, %c0_23, %c0_24], %31 {strides = array<i32>} : memref<9x17x4xbf16, #tpu.memory_space<vmem>>, vector<8x16x4xbf16>,
    %33 = vector.shape_cast %30 : vector<16x4xbf16> to vector<1x16x4xbf16>
    %c8 = arith.constant 8 : index
    %c0_25 = arith.constant 0 : index
    %c0_26 = arith.constant 0 : index
    %34 = vector.load %arg14[%c8, %c0_25, %c0_26] : memref<9x17x4xbf16, #tpu.memory_space<vmem>>, vector<1x16x4xbf16>
    tpu.vector_store %arg14[%c8, %c0_25, %c0_26], %33 {strides = array<i32>} : memref<9x17x4xbf16, #tpu.memory_space<vmem>>, vector<1x16x4xbf16>,
    %cst_27 = arith.constant 0.000000e+00 : bf16
    %35 = vector.broadcast %cst_27 : bf16 to vector<9x1x4xbf16>
    %c0_28 = arith.constant 0 : index
    %c16 = arith.constant 16 : index
    %c0_29 = arith.constant 0 : index
    %36 = vector.load %arg14[%c0_28, %c16, %c0_29] : memref<9x17x4xbf16, #tpu.memory_space<vmem>>, vector<9x1x4xbf16>
    tpu.vector_store %arg14[%c0_28, %c16, %c0_29], %35 {strides = array<i32>} : memref<9x17x4xbf16, #tpu.memory_space<vmem>>, vector<9x1x4xbf16>,
    %c0_30 = arith.constant 0 : index
    %c0_31 = arith.constant 0 : index
    %c0_32 = arith.constant 0 : index
    %37 = vector.load %arg14[%c0_30, %c0_31, %c0_32] : memref<9x17x4xbf16, #tpu.memory_space<vmem>>, vector<9x17x4xbf16>
    %38 = vector.extract_strided_slice %37 {offsets = [0, 0, 0], sizes = [8, 16, 4], strides = [1, 1, 1]} : vector<9x17x4xbf16> to vector<8x16x4xbf16>
    %39 = vector.shape_cast %38 : vector<8x16x4xbf16> to vector<128x4xbf16>
    %c0_33 = arith.constant 0 : index
    %c0_34 = arith.constant 0 : index
    %40 = vector.load %arg5[%c0_33, %c0_34] : memref<4x4xbf16, #tpu.memory_space<vmem>>, vector<4x4xbf16>
    %cst_35 = arith.constant dense<0.000000e+00> : vector<128x4xf32>
    %41 = tpu.matmul %39, %40, %cst_35 {dimension_numbers = #tpu.dot_dimension_numbers<[1], [0], [0], [1], [0, 0, 1, 1], [], []>} : vector<128x4xbf16>, vector<4x4xbf16>, vector<128x4xf32> -> vector<128x4xf32>
    %42 = vector.shape_cast %3 : vector<4xf32> to vector<1x4xf32>
    %43 = vector.broadcast %42 : vector<1x4xf32> to vector<128x4xf32>
    %44 = arith.addf %41, %43 : vector<128x4xf32>
    %cst_36 = arith.constant 0.000000e+00 : f32
    %45 = vector.broadcast %cst_36 : f32 to vector<128x4xf32>
    %46 = arith.maximumf %44, %45 : vector<128x4xf32>
    %47 = arith.truncf %46 : vector<128x4xf32> to vector<128x4xbf16>
    %cst_37 = arith.constant dense<0.000000e+00> : vector<128x8xf32>
    %48 = tpu.matmul %47, %7, %cst_37 {dimension_numbers = #tpu.dot_dimension_numbers<[1], [0], [0], [1], [0, 0, 1, 1], [], []>} : vector<128x4xbf16>, vector<4x8xbf16>, vector<128x8xf32> -> vector<128x8xf32>
    %49 = vector.shape_cast %5 : vector<8xf32> to vector<1x8xf32>
    %50 = vector.broadcast %49 : vector<1x8xf32> to vector<128x8xf32>
    %51 = arith.addf %48, %50 : vector<128x8xf32>
    %cst_38 = arith.constant 0.000000e+00 : f32
    %52 = vector.broadcast %cst_38 : f32 to vector<128x8xf32>
    %53 = arith.maximumf %51, %52 : vector<128x8xf32>
    %54 = arith.truncf %53 : vector<128x8xf32> to vector<128x8xbf16>
    %55 = vector.shape_cast %54 : vector<128x8xbf16> to vector<8x16x8xbf16>
    %c0_39 = arith.constant 0 : index
    %c0_40 = arith.constant 0 : index
    %c0_41 = arith.constant 0 : index
    %c0_42 = arith.constant 0 : index
    %c0_43 = arith.constant 0 : index
    %56 = vector.load %arg13[%c0_39, %c0_40, %c0_41, %c0_42, %c0_43] : memref<1x4x8x16x8xbf16, #tpu.memory_space<vmem>>, vector<1x1x8x16x8xbf16>
    %57 = vector.shape_cast %56 : vector<1x1x8x16x8xbf16> to vector<8x16x8xbf16>
    %58 = vector.shape_cast %55 : vector<8x16x8xbf16> to vector<1x1x8x16x8xbf16>
    tpu.vector_store %arg13[%c0_39, %c0_40, %c0_41, %c0_42, %c0_43], %58 {strides = array<i32>} : memref<1x4x8x16x8xbf16, #tpu.memory_space<vmem>>, vector<1x1x8x16x8xbf16>,
    %59 = vector.extract_strided_slice %37 {offsets = [0, 1, 0], sizes = [8, 16, 4], strides = [1, 1, 1]} : vector<9x17x4xbf16> to vector<8x16x4xbf16>
    %60 = vector.shape_cast %59 : vector<8x16x4xbf16> to vector<128x4xbf16>
    %61 = tpu.concatenate %39, %60 in 1 : vector<128x4xbf16>, vector<128x4xbf16> -> vector<128x8xbf16>
    %c0_44 = arith.constant 0 : index
    %c0_45 = arith.constant 0 : index
    %62 = vector.load %arg6[%c0_44, %c0_45] : memref<8x4xbf16, #tpu.memory_space<vmem>>, vector<8x4xbf16>
    %cst_46 = arith.constant dense<0.000000e+00> : vector<128x4xf32>
    %63 = tpu.matmul %61, %62, %cst_46 {dimension_numbers = #tpu.dot_dimension_numbers<[1], [0], [0], [1], [0, 0, 1, 1], [], []>} : vector<128x8xbf16>, vector<8x4xbf16>, vector<128x4xf32> -> vector<128x4xf32>
    %64 = vector.shape_cast %3 : vector<4xf32> to vector<1x4xf32>
    %65 = vector.broadcast %64 : vector<1x4xf32> to vector<128x4xf32>
    %66 = arith.addf %63, %65 : vector<128x4xf32>
    %cst_47 = arith.constant 0.000000e+00 : f32
    %67 = vector.broadcast %cst_47 : f32 to vector<128x4xf32>
    %68 = arith.maximumf %66, %67 : vector<128x4xf32>
    %69 = arith.truncf %68 : vector<128x4xf32> to vector<128x4xbf16>
    %cst_48 = arith.constant dense<0.000000e+00> : vector<128x8xf32>
    %70 = tpu.matmul %69, %7, %cst_48 {dimension_numbers = #tpu.dot_dimension_numbers<[1], [0], [0], [1], [0, 0, 1, 1], [], []>} : vector<128x4xbf16>, vector<4x8xbf16>, vector<128x8xf32> -> vector<128x8xf32>
    %71 = vector.shape_cast %5 : vector<8xf32> to vector<1x8xf32>
    %72 = vector.broadcast %71 : vector<1x8xf32> to vector<128x8xf32>
    %73 = arith.addf %70, %72 : vector<128x8xf32>
    %cst_49 = arith.constant 0.000000e+00 : f32
    %74 = vector.broadcast %cst_49 : f32 to vector<128x8xf32>
    %75 = arith.maximumf %73, %74 : vector<128x8xf32>
    %76 = arith.truncf %75 : vector<128x8xf32> to vector<128x8xbf16>
    %77 = vector.shape_cast %76 : vector<128x8xbf16> to vector<8x16x8xbf16>
    %c0_50 = arith.constant 0 : index
    %c1 = arith.constant 1 : index
    %c0_51 = arith.constant 0 : index
    %c0_52 = arith.constant 0 : index
    %c0_53 = arith.constant 0 : index
    %78 = vector.load %arg13[%c0_50, %c1, %c0_51, %c0_52, %c0_53] : memref<1x4x8x16x8xbf16, #tpu.memory_space<vmem>>, vector<1x1x8x16x8xbf16>
    %79 = vector.shape_cast %78 : vector<1x1x8x16x8xbf16> to vector<8x16x8xbf16>
    %80 = vector.shape_cast %77 : vector<8x16x8xbf16> to vector<1x1x8x16x8xbf16>
    tpu.vector_store %arg13[%c0_50, %c1, %c0_51, %c0_52, %c0_53], %80 {strides = array<i32>} : memref<1x4x8x16x8xbf16, #tpu.memory_space<vmem>>, vector<1x1x8x16x8xbf16>,
    %81 = vector.extract_strided_slice %37 {offsets = [1, 0, 0], sizes = [8, 16, 4], strides = [1, 1, 1]} : vector<9x17x4xbf16> to vector<8x16x4xbf16>
    %82 = vector.shape_cast %81 : vector<8x16x4xbf16> to vector<128x4xbf16>
    %83 = tpu.concatenate %39, %82 in 1 : vector<128x4xbf16>, vector<128x4xbf16> -> vector<128x8xbf16>
    %c0_54 = arith.constant 0 : index
    %c0_55 = arith.constant 0 : index
    %84 = vector.load %arg7[%c0_54, %c0_55] : memref<8x4xbf16, #tpu.memory_space<vmem>>, vector<8x4xbf16>
    %cst_56 = arith.constant dense<0.000000e+00> : vector<128x4xf32>
    %85 = tpu.matmul %83, %84, %cst_56 {dimension_numbers = #tpu.dot_dimension_numbers<[1], [0], [0], [1], [0, 0, 1, 1], [], []>} : vector<128x8xbf16>, vector<8x4xbf16>, vector<128x4xf32> -> vector<128x4xf32>
    %86 = vector.shape_cast %3 : vector<4xf32> to vector<1x4xf32>
    %87 = vector.broadcast %86 : vector<1x4xf32> to vector<128x4xf32>
    %88 = arith.addf %85, %87 : vector<128x4xf32>
    %cst_57 = arith.constant 0.000000e+00 : f32
    %89 = vector.broadcast %cst_57 : f32 to vector<128x4xf32>
    %90 = arith.maximumf %88, %89 : vector<128x4xf32>
    %91 = arith.truncf %90 : vector<128x4xf32> to vector<128x4xbf16>
    %cst_58 = arith.constant dense<0.000000e+00> : vector<128x8xf32>
    %92 = tpu.matmul %91, %7, %cst_58 {dimension_numbers = #tpu.dot_dimension_numbers<[1], [0], [0], [1], [0, 0, 1, 1], [], []>} : vector<128x4xbf16>, vector<4x8xbf16>, vector<128x8xf32> -> vector<128x8xf32>
    %93 = vector.shape_cast %5 : vector<8xf32> to vector<1x8xf32>
    %94 = vector.broadcast %93 : vector<1x8xf32> to vector<128x8xf32>
    %95 = arith.addf %92, %94 : vector<128x8xf32>
    %cst_59 = arith.constant 0.000000e+00 : f32
    %96 = vector.broadcast %cst_59 : f32 to vector<128x8xf32>
    %97 = arith.maximumf %95, %96 : vector<128x8xf32>
    %98 = arith.truncf %97 : vector<128x8xf32> to vector<128x8xbf16>
    %99 = vector.shape_cast %98 : vector<128x8xbf16> to vector<8x16x8xbf16>
    %c0_60 = arith.constant 0 : index
    %c2 = arith.constant 2 : index
    %c0_61 = arith.constant 0 : index
    %c0_62 = arith.constant 0 : index
    %c0_63 = arith.constant 0 : index
    %100 = vector.load %arg13[%c0_60, %c2, %c0_61, %c0_62, %c0_63] : memref<1x4x8x16x8xbf16, #tpu.memory_space<vmem>>, vector<1x1x8x16x8xbf16>
    %101 = vector.shape_cast %100 : vector<1x1x8x16x8xbf16> to vector<8x16x8xbf16>
    %102 = vector.shape_cast %99 : vector<8x16x8xbf16> to vector<1x1x8x16x8xbf16>
    tpu.vector_store %arg13[%c0_60, %c2, %c0_61, %c0_62, %c0_63], %102 {strides = array<i32>} : memref<1x4x8x16x8xbf16, #tpu.memory_space<vmem>>, vector<1x1x8x16x8xbf16>,
    %103 = vector.extract_strided_slice %37 {offsets = [1, 1, 0], sizes = [8, 16, 4], strides = [1, 1, 1]} : vector<9x17x4xbf16> to vector<8x16x4xbf16>
    %104 = vector.shape_cast %103 : vector<8x16x4xbf16> to vector<128x4xbf16>
    %105 = tpu.concatenate %61, %82, %104 in 1 : vector<128x8xbf16>, vector<128x4xbf16>, vector<128x4xbf16> -> vector<128x16xbf16>
    %c0_64 = arith.constant 0 : index
    %c0_65 = arith.constant 0 : index
    %106 = vector.load %arg8[%c0_64, %c0_65] : memref<16x4xbf16, #tpu.memory_space<vmem>>, vector<16x4xbf16>
    %cst_66 = arith.constant dense<0.000000e+00> : vector<128x4xf32>
    %107 = tpu.matmul %105, %106, %cst_66 {dimension_numbers = #tpu.dot_dimension_numbers<[1], [0], [0], [1], [0, 0, 1, 1], [], []>} : vector<128x16xbf16>, vector<16x4xbf16>, vector<128x4xf32> -> vector<128x4xf32>
    %108 = vector.shape_cast %3 : vector<4xf32> to vector<1x4xf32>
    %109 = vector.broadcast %108 : vector<1x4xf32> to vector<128x4xf32>
    %110 = arith.addf %107, %109 : vector<128x4xf32>
    %cst_67 = arith.constant 0.000000e+00 : f32
    %111 = vector.broadcast %cst_67 : f32 to vector<128x4xf32>
    %112 = arith.maximumf %110, %111 : vector<128x4xf32>
    %113 = arith.truncf %112 : vector<128x4xf32> to vector<128x4xbf16>
    %cst_68 = arith.constant dense<0.000000e+00> : vector<128x8xf32>
    %114 = tpu.matmul %113, %7, %cst_68 {dimension_numbers = #tpu.dot_dimension_numbers<[1], [0], [0], [1], [0, 0, 1, 1], [], []>} : vector<128x4xbf16>, vector<4x8xbf16>, vector<128x8xf32> -> vector<128x8xf32>
    %115 = vector.shape_cast %5 : vector<8xf32> to vector<1x8xf32>
    %116 = vector.broadcast %115 : vector<1x8xf32> to vector<128x8xf32>
    %117 = arith.addf %114, %116 : vector<128x8xf32>
    %cst_69 = arith.constant 0.000000e+00 : f32
    %118 = vector.broadcast %cst_69 : f32 to vector<128x8xf32>
    %119 = arith.maximumf %117, %118 : vector<128x8xf32>
    %120 = arith.truncf %119 : vector<128x8xf32> to vector<128x8xbf16>
    %121 = vector.shape_cast %120 : vector<128x8xbf16> to vector<8x16x8xbf16>
    %c0_70 = arith.constant 0 : index
    %c3 = arith.constant 3 : index
    %c0_71 = arith.constant 0 : index
    %c0_72 = arith.constant 0 : index
    %c0_73 = arith.constant 0 : index
    %122 = vector.load %arg13[%c0_70, %c3, %c0_71, %c0_72, %c0_73] : memref<1x4x8x16x8xbf16, #tpu.memory_space<vmem>>, vector<1x1x8x16x8xbf16>
    %123 = vector.shape_cast %122 : vector<1x1x8x16x8xbf16> to vector<8x16x8xbf16>
    %124 = vector.shape_cast %121 : vector<8x16x8xbf16> to vector<1x1x8x16x8xbf16>
    tpu.vector_store %arg13[%c0_70, %c3, %c0_71, %c0_72, %c0_73], %124 {strides = array<i32>} : memref<1x4x8x16x8xbf16, #tpu.memory_space<vmem>>, vector<1x1x8x16x8xbf16>,
    return
  }
  func.func @transform_0(%arg0: i32, %arg1: i32) -> (i32, i32, i32, i32) {
    %c0_i32 = arith.constant 0 : i32
    %c0_i32_0 = arith.constant 0 : i32
    %c0_i32_1 = arith.constant 0 : i32
    return %arg0, %arg1, %c0_i32, %c0_i32_0 : i32, i32, i32, i32
  }
  func.func @transform_1(%arg0: i32, %arg1: i32) -> (i32, i32, i32, i32) {
    %c1_i32 = arith.constant 1 : i32
    %0 = arith.addi %arg1, %c1_i32 : i32
    %c8_i32 = arith.constant 8 : i32
    %1 = arith.muli %0, %c8_i32 : i32
    %c15_i32 = arith.constant 15 : i32
    %2 = arith.minsi %1, %c15_i32 : i32
    %c0_i32 = arith.constant 0 : i32
    %c0_i32_0 = arith.constant 0 : i32
    %c0_i32_1 = arith.constant 0 : i32
    return %arg0, %2, %c0_i32, %c0_i32_0 : i32, i32, i32, i32
  }
  func.func @transform_2(%arg0: i32, %arg1: i32) -> (i32, i32) {
    %c0_i32 = arith.constant 0 : i32
    %c0_i32_0 = arith.constant 0 : i32
    %c0_i32_1 = arith.constant 0 : i32
    return %c0_i32, %c0_i32_0 : i32, i32
  }
  func.func @transform_3(%arg0: i32, %arg1: i32) -> (i32, i32) {
    %c0_i32 = arith.constant 0 : i32
    %c0_i32_0 = arith.constant 0 : i32
    %c0_i32_1 = arith.constant 0 : i32
    return %c0_i32, %c0_i32_0 : i32, i32
  }
  func.func @transform_4(%arg0: i32, %arg1: i32) -> (i32, i32) {
    %c0_i32 = arith.constant 0 : i32
    %c0_i32_0 = arith.constant 0 : i32
    %c0_i32_1 = arith.constant 0 : i32
    return %c0_i32, %c0_i32_0 : i32, i32
  }
  func.func @transform_5(%arg0: i32, %arg1: i32) -> (i32, i32) {
    %c0_i32 = arith.constant 0 : i32
    %c0_i32_0 = arith.constant 0 : i32
    %c0_i32_1 = arith.constant 0 : i32
    return %c0_i32, %c0_i32_0 : i32, i32
  }
  func.func @transform_6(%arg0: i32, %arg1: i32) -> (i32, i32) {
    %c0_i32 = arith.constant 0 : i32
    %c0_i32_0 = arith.constant 0 : i32
    %c0_i32_1 = arith.constant 0 : i32
    return %c0_i32, %c0_i32_0 : i32, i32
  }
  func.func @transform_7(%arg0: i32, %arg1: i32) -> (i32, i32) {
    %c0_i32 = arith.constant 0 : i32
    %c0_i32_0 = arith.constant 0 : i32
    %c0_i32_1 = arith.constant 0 : i32
    return %c0_i32, %c0_i32_0 : i32, i32
  }
  func.func @transform_8(%arg0: i32, %arg1: i32) -> (i32, i32) {
    %c0_i32 = arith.constant 0 : i32
    %c0_i32_0 = arith.constant 0 : i32
    %c0_i32_1 = arith.constant 0 : i32
    return %c0_i32, %c0_i32_0 : i32, i32
  }
  func.func @transform_9(%arg0: i32, %arg1: i32) -> (i32, i32) {
    %c0_i32 = arith.constant 0 : i32
    %c0_i32_0 = arith.constant 0 : i32
    %c0_i32_1 = arith.constant 0 : i32
    return %c0_i32, %c0_i32_0 : i32, i32
  }
  func.func @transform_10(%arg0: i32, %arg1: i32) -> (i32, i32) {
    %c0_i32 = arith.constant 0 : i32
    %c0_i32_0 = arith.constant 0 : i32
    %c0_i32_1 = arith.constant 0 : i32
    return %c0_i32, %c0_i32_0 : i32, i32
  }
  func.func @transform_11(%arg0: i32, %arg1: i32) -> (i32, i32, i32, i32, i32) {
    %c0_i32 = arith.constant 0 : i32
    %c0_i32_0 = arith.constant 0 : i32
    %c0_i32_1 = arith.constant 0 : i32
    %c0_i32_2 = arith.constant 0 : i32
    return %arg0, %c0_i32, %arg1, %c0_i32_0, %c0_i32_1 : i32, i32, i32, i32, i32
  }
}

</mosaic_0001>

<llo_original>
// kernel: decoder_block.1
$region0: #{decoder_block.1}
  #allocation0 [shape = 'u32[]', space=smem, size = 0x4, offset = 0x4, fixed_abs, tag = 'smem constant byte address 0x4 - core index']
  #allocation1 [shape = 'u32[144,128]{1,0:T(1,128)}', space=vmem, size = 0x12000, scoped, tag = 'internal scratch']
  #allocation2 [shape = 'bf16[9,17,4]{2,1,0:T(8,128)(2,1)}', space=vmem, size = 0xd800, scoped, tag = 'scratch operand']
  %s0 = inlined_call_operand.vmem [shape: bf16[2,16,16,16], index: 0, kind: input, shape index: {}, may-alias: {0,1}]
  %s1 = inlined_call_operand.vmem [shape: bf16[2,16,16,16], index: 1, kind: input, shape index: {}, may-alias: {0,1}]
  %s2 = inlined_call_operand.vmem [shape: bf16[16,4], index: 2, kind: input, shape index: {}]
  %s3 = inlined_call_operand.vmem [shape: bf16[4,4], index: 3, kind: input, shape index: {}]
  %s4 = inlined_call_operand.vmem [shape: bf16[8,4], index: 4, kind: input, shape index: {}]
  %s5 = inlined_call_operand.vmem [shape: bf16[8,4], index: 5, kind: input, shape index: {}]
  %s6 = inlined_call_operand.vmem [shape: bf16[16,4], index: 6, kind: input, shape index: {}]
  %s7 = inlined_call_operand.vmem [shape: bf16[4,8], index: 7, kind: input, shape index: {}]
  %s8 = inlined_call_operand.vmem [shape: f32[1,4], index: 8, kind: input, shape index: {}]
  %s9 = inlined_call_operand.vmem [shape: f32[1,4], index: 9, kind: input, shape index: {}]
  %s10 = inlined_call_operand.vmem [shape: f32[1,8], index: 10, kind: input, shape index: {}]
  %s11 = inlined_call_operand.vmem [shape: bf16[2,4,16,16,8], index: 11, kind: output, shape index: {}]
  %s12 = sld [smem:[#allocation0]]
  $region114: #{decoder_block.1} parent=0
    _
  %s14 = ssub.s32 1, %s12
  %s15 = scalar_select 0, %s14, %s12
  $region1: #{decoder_block.1} parent=0
    #allocation3 [shape = 'u8[262144]{0}', space=vmem, size = 0x40000, scoped, tag = 'output window, operand 0']
    loop: start=0, step=1, limit=6
    $region2: #{decoder_block.1} parent=1 // loop_pre_header
      _
    $region3: #{decoder_block.1} parent=1 // loop_header
      %s17 = sphi 0, %s21
      %p18 = scmp.ge.s32.totalorder %s17, 6
      %s24 = sphi 0, %s36
      %s25 = sphi 0, %s32
      %s26 = sphi 0, %s24
      %s27 = sphi 0, %s25
      %s28 = sphi 0, %s26
      %s29 = sphi 0, %s27
      %s41 = sphi 0, %s43
      %s44 = sphi 0, %s41
      %s45 = sphi 0, %s44
      %s61 = sphi 0, %s45
      %s77 = sphi 0, %s79
      %s80 = sphi 0, %s77
      %s81 = sphi 0, %s80
      %s97 = sphi 0, %s81
      %s101 = sphi 0, %s101
      %s103 = sphi 0, %s101
      %s104 = sphi 0, %s103
      %s118 = sphi 0, %s104
      %s122 = sphi 0, %s122
      %s124 = sphi 0, %s122
      %s125 = sphi 0, %s124
      %s139 = sphi 0, %s125
      %s143 = sphi 0, %s143
      %s145 = sphi 0, %s143
      %s146 = sphi 0, %s145
      %s160 = sphi 0, %s146
      %s164 = sphi 0, %s164
      %s166 = sphi 0, %s164
      %s167 = sphi 0, %s166
      %s181 = sphi 0, %s167
      %s185 = sphi 0, %s185
      %s187 = sphi 0, %s185
      %s188 = sphi 0, %s187
      %s202 = sphi 0, %s188
      %s206 = sphi 0, %s206
      %s208 = sphi 0, %s206
      %s209 = sphi 0, %s208
      %s223 = sphi 0, %s209
      %s227 = sphi 0, %s227
      %s229 = sphi 0, %s227
      %s230 = sphi 0, %s229
      %s244 = sphi 0, %s230
      %s248 = sphi 0, %s248
      %s250 = sphi 0, %s248
      %s251 = sphi 0, %s250
      %s265 = sphi 0, %s251
      %s269 = sphi 0, %s269
      %s271 = sphi 0, %s269
      %s272 = sphi 0, %s271
      %s286 = sphi 0, %s272
      %s294 = sphi 0, %s296
      %s297 = sphi 0, %s294
      %s298 = sphi 0, %s297
      %s314 = sphi 0, %s298
    $region4: #{decoder_block.1} parent=1 // loop_header_branch
      %20 = sbr.rel (%p18) target = $region8
    $region5: #{decoder_block.1} parent=1 // loop_body
      %s22 = ssub.s32 %s17, 1
      %s23 = ssub.s32 %s17, 2
      %s30 = sadd.s32 1, %s25
      %p31 = scmp.ge.s32.totalorder %s30, 2
      %s32 = scalar_select %p31, 0, %s30
      %s33 = sadd.s32 1, %s24
      %s34 = scalar_select %p31, %s33, %s24
      %p35 = scmp.ge.s32.totalorder %s34, 2
      %s36 = scalar_select %p35, 0, %s34
      %s37 = ssub.s32 %s24, %s36
      %s38 = ssub.s32 %s25, %s32
      %s39 = sor.u32 %s37, %s38
      %p40 = scmp.eq.s32.totalorder %s39, 0
      %s42 = sadd.s32 %s41, 1
      %s43 = scalar_select %p40, %s41, %s42
      %p46 = pneg %p40
      %p47 = scmp.eq.s32.totalorder %s17, 3
      %p48 = por %p46, %p47
      %p49 = scmp.ne.s32.totalorder %s41, %s44
      %p50 = scmp.eq.s32.totalorder %s17, 0
      %p51 = por %p49, %p50
      %p52 = scmp.ne.s32.totalorder %s41, %s44
      %p53 = scmp.eq.s32.totalorder %s22, 3
      %p54 = por %p52, %p53
      %p55 = scmp.ne.s32.totalorder %s44, %s45
      %p56 = scmp.eq.s32.totalorder %s22, 0
      %p57 = por %p55, %p56
      %p58 = scmp.ne.s32.totalorder %s44, %s45
      %p59 = scmp.eq.s32.totalorder %s23, 3
      %p60 = por %p58, %p59
      %p62 = scmp.ne.s32.totalorder %s45, %s61
      %p63 = scmp.eq.s32.totalorder %s23, 0
      %p64 = por %p62, %p63
      %s65 = sadd.s32 %s25, 1
      %s66 = smul.u32 %s65, 8
      %p67 = scmp.lt.s32.totalorder %s66, 15
      %s68 = scalar_select %p67, %s66, 15
      %s69 = sadd.s32 %s32, 1
      %s70 = smul.u32 %s69, 8
      %p71 = scmp.lt.s32.totalorder %s70, 15
      %s72 = scalar_select %p71, %s70, 15
      %s73 = ssub.s32 %s24, %s36
      %s74 = ssub.s32 %s68, %s72
      %s75 = sor.u32 %s73, %s74
      %p76 = scmp.eq.s32.totalorder %s75, 0
      %s78 = sadd.s32 %s77, 1
      %s79 = scalar_select %p76, %s77, %s78
      %p82 = pneg %p76
      %p83 = scmp.eq.s32.totalorder %s17, 3
      %p84 = por %p82, %p83
      %p85 = scmp.ne.s32.totalorder %s77, %s80
      %p86 = scmp.eq.s32.totalorder %s17, 0
      %p87 = por %p85, %p86
      %p88 = scmp.ne.s32.totalorder %s77, %s80
      %p89 = scmp.eq.s32.totalorder %s22, 3
      %p90 = por %p88, %p89
      %p91 = scmp.ne.s32.totalorder %s80, %s81
      %p92 = scmp.eq.s32.totalorder %s22, 0
      %p93 = por %p91, %p92
      %p94 = scmp.ne.s32.totalorder %s80, %s81
      %p95 = scmp.eq.s32.totalorder %s23, 3
      %p96 = por %p94, %p95
      %p98 = scmp.ne.s32.totalorder %s81, %s97
      %p99 = scmp.eq.s32.totalorder %s23, 0
      %p100 = por %p98, %p99
      %s102 = sadd.s32 %s101, 1
      %p105 = scmp.eq.s32.totalorder %s17, 3
      %p106 = scmp.ne.s32.totalorder %s101, %s103
      %p107 = scmp.eq.s32.totalorder %s17, 0
      %p108 = por %p106, %p107
      %p109 = scmp.ne.s32.totalorder %s101, %s103
      %p110 = scmp.eq.s32.totalorder %s22, 3
      %p111 = por %p109, %p110
      %p112 = scmp.ne.s32.totalorder %s103, %s104
      %p113 = scmp.eq.s32.totalorder %s22, 0
      %p114 = por %p112, %p113
      %p115 = scmp.ne.s32.totalorder %s103, %s104
      %p116 = scmp.eq.s32.totalorder %s23, 3
      %p117 = por %p115, %p116
      %p119 = scmp.ne.s32.totalorder %s104, %s118
      %p120 = scmp.eq.s32.totalorder %s23, 0
      %p121 = por %p119, %p120
      %s123 = sadd.s32 %s122, 1
      %p126 = scmp.eq.s32.totalorder %s17, 3
      %p127 = scmp.ne.s32.totalorder %s122, %s124
      %p128 = scmp.eq.s32.totalorder %s17, 0
      %p129 = por %p127, %p128
      %p130 = scmp.ne.s32.totalorder %s122, %s124
      %p131 = scmp.eq.s32.totalorder %s22, 3
      %p132 = por %p130, %p131
      %p133 = scmp.ne.s32.totalorder %s124, %s125
      %p134 = scmp.eq.s32.totalorder %s22, 0
      %p135 = por %p133, %p134
      %p136 = scmp.ne.s32.totalorder %s124, %s125
      %p137 = scmp.eq.s32.totalorder %s23, 3
      %p138 = por %p136, %p137
      %p140 = scmp.ne.s32.totalorder %s125, %s139
      %p141 = scmp.eq.s32.totalorder %s23, 0
      %p142 = por %p140, %p141
      %s144 = sadd.s32 %s143, 1
      %p147 = scmp.eq.s32.totalorder %s17, 3
      %p148 = scmp.ne.s32.totalorder %s143, %s145
      %p149 = scmp.eq.s32.totalorder %s17, 0
      %p150 = por %p148, %p149
      %p151 = scmp.ne.s32.totalorder %s143, %s145
      %p152 = scmp.eq.s32.totalorder %s22, 3
      %p153 = por %p151, %p152
      %p154 = scmp.ne.s32.totalorder %s145, %s146
      %p155 = scmp.eq.s32.totalorder %s22, 0
      %p156 = por %p154, %p155
      %p157 = scmp.ne.s32.totalorder %s145, %s146
      %p158 = scmp.eq.s32.totalorder %s23, 3
      %p159 = por %p157, %p158
      %p161 = scmp.ne.s32.totalorder %s146, %s160
      %p162 = scmp.eq.s32.totalorder %s23, 0
      %p163 = por %p161, %p162
      %s165 = sadd.s32 %s164, 1
      %p168 = scmp.eq.s32.totalorder %s17, 3
      %p169 = scmp.ne.s32.totalorder %s164, %s166
      %p170 = scmp.eq.s32.totalorder %s17, 0
      %p171 = por %p169, %p170
      %p172 = scmp.ne.s32.totalorder %s164, %s166
      %p173 = scmp.eq.s32.totalorder %s22, 3
      %p174 = por %p172, %p173
      %p175 = scmp.ne.s32.totalorder %s166, %s167
      %p176 = scmp.eq.s32.totalorder %s22, 0
      %p177 = por %p175, %p176
      %p178 = scmp.ne.s32.totalorder %s166, %s167
      %p179 = scmp.eq.s32.totalorder %s23, 3
      %p180 = por %p178, %p179
      %p182 = scmp.ne.s32.totalorder %s167, %s181
      %p183 = scmp.eq.s32.totalorder %s23, 0
      %p184 = por %p182, %p183
      %s186 = sadd.s32 %s185, 1
      %p189 = scmp.eq.s32.totalorder %s17, 3
      %p190 = scmp.ne.s32.totalorder %s185, %s187
      %p191 = scmp.eq.s32.totalorder %s17, 0
      %p192 = por %p190, %p191
      %p193 = scmp.ne.s32.totalorder %s185, %s187
      %p194 = scmp.eq.s32.totalorder %s22, 3
      %p195 = por %p193, %p194
      %p196 = scmp.ne.s32.totalorder %s187, %s188
      %p197 = scmp.eq.s32.totalorder %s22, 0
      %p198 = por %p196, %p197
      %p199 = scmp.ne.s32.totalorder %s187, %s188
      %p200 = scmp.eq.s32.totalorder %s23, 3
      %p201 = por %p199, %p200
      %p203 = scmp.ne.s32.totalorder %s188, %s202
      %p204 = scmp.eq.s32.totalorder %s23, 0
      %p205 = por %p203, %p204
      %s207 = sadd.s32 %s206, 1
      %p210 = scmp.eq.s32.totalorder %s17, 3
      %p211 = scmp.ne.s32.totalorder %s206, %s208
      %p212 = scmp.eq.s32.totalorder %s17, 0
      %p213 = por %p211, %p212
      %p214 = scmp.ne.s32.totalorder %s206, %s208
      %p215 = scmp.eq.s32.totalorder %s22, 3
      %p216 = por %p214, %p215
      %p217 = scmp.ne.s32.totalorder %s208, %s209
      %p218 = scmp.eq.s32.totalorder %s22, 0
      %p219 = por %p217, %p218
      %p220 = scmp.ne.s32.totalorder %s208, %s209
      %p221 = scmp.eq.s32.totalorder %s23, 3
      %p222 = por %p220, %p221
      %p224 = scmp.ne.s32.totalorder %s209, %s223
      %p225 = scmp.eq.s32.totalorder %s23, 0
      %p226 = por %p224, %p225
      %s228 = sadd.s32 %s227, 1
      %p231 = scmp.eq.s32.totalorder %s17, 3
      %p232 = scmp.ne.s32.totalorder %s227, %s229
      %p233 = scmp.eq.s32.totalorder %s17, 0
      %p234 = por %p232, %p233
      %p235 = scmp.ne.s32.totalorder %s227, %s229
      %p236 = scmp.eq.s32.totalorder %s22, 3
      %p237 = por %p235, %p236
      %p238 = scmp.ne.s32.totalorder %s229, %s230
      %p239 = scmp.eq.s32.totalorder %s22, 0
      %p240 = por %p238, %p239
      %p241 = scmp.ne.s32.totalorder %s229, %s230
      %p242 = scmp.eq.s32.totalorder %s23, 3
      %p243 = por %p241, %p242
      %p245 = scmp.ne.s32.totalorder %s230, %s244
      %p246 = scmp.eq.s32.totalorder %s23, 0
      %p247 = por %p245, %p246
      %s249 = sadd.s32 %s248, 1
      %p252 = scmp.eq.s32.totalorder %s17, 3
      %p253 = scmp.ne.s32.totalorder %s248, %s250
      %p254 = scmp.eq.s32.totalorder %s17, 0
      %p255 = por %p253, %p254
      %p256 = scmp.ne.s32.totalorder %s248, %s250
      %p257 = scmp.eq.s32.totalorder %s22, 3
      %p258 = por %p256, %p257
      %p259 = scmp.ne.s32.totalorder %s250, %s251
      %p260 = scmp.eq.s32.totalorder %s22, 0
      %p261 = por %p259, %p260
      %p262 = scmp.ne.s32.totalorder %s250, %s251
      %p263 = scmp.eq.s32.totalorder %s23, 3
      %p264 = por %p262, %p263
      %p266 = scmp.ne.s32.totalorder %s251, %s265
      %p267 = scmp.eq.s32.totalorder %s23, 0
      %p268 = por %p266, %p267
      %s270 = sadd.s32 %s269, 1
      %p273 = scmp.eq.s32.totalorder %s17, 3
      %p274 = scmp.ne.s32.totalorder %s269, %s271
      %p275 = scmp.eq.s32.totalorder %s17, 0
      %p276 = por %p274, %p275
      %p277 = scmp.ne.s32.totalorder %s269, %s271
      %p278 = scmp.eq.s32.totalorder %s22, 3
      %p279 = por %p277, %p278
      %p280 = scmp.ne.s32.totalorder %s271, %s272
      %p281 = scmp.eq.s32.totalorder %s22, 0
      %p282 = por %p280, %p281
      %p283 = scmp.ne.s32.totalorder %s271, %s272
      %p284 = scmp.eq.s32.totalorder %s23, 3
      %p285 = por %p283, %p284
      %p287 = scmp.ne.s32.totalorder %s272, %s286
      %p288 = scmp.eq.s32.totalorder %s23, 0
      %p289 = por %p287, %p288
      %s290 = ssub.s32 %s24, %s36
      %s291 = ssub.s32 %s25, %s32
      %s292 = sor.u32 %s290, %s291
      %p293 = scmp.eq.s32.totalorder %s292, 0
      %s295 = sadd.s32 %s294, 1
      %s296 = scalar_select %p293, %s294, %s295
      %p299 = pneg %p293
      %p300 = scmp.eq.s32.totalorder %s17, 3
      %p301 = por %p299, %p300
      %p302 = scmp.ne.s32.totalorder %s294, %s297
      %p303 = scmp.eq.s32.totalorder %s17, 0
      %p304 = por %p302, %p303
      %p305 = scmp.ne.s32.totalorder %s294, %s297
      %p306 = scmp.eq.s32.totalorder %s22, 3
      %p307 = por %p305, %p306
      %p308 = scmp.ne.s32.totalorder %s297, %s298
      %p309 = scmp.eq.s32.totalorder %s22, 0
      %p310 = por %p308, %p309
      %p311 = scmp.ne.s32.totalorder %s297, %s298
      %p312 = scmp.eq.s32.totalorder %s23, 3
      %p313 = por %p311, %p312
      %p315 = scmp.ne.s32.totalorder %s298, %s314
      %p316 = scmp.eq.s32.totalorder %s23, 0
      %p317 = por %p315, %p316
      %p318 = scmp.le.s32.totalorder 1, %s17
      %p319 = scmp.lt.s32.totalorder %s17, 5
      %p320 = pnand %p318, %p319
      %p321 = pneg %p320
      // Predicated region
      $region9: #{decoder_block.1} parent=5 // pred_check
        _
      $region10: #{decoder_block.1} parent=5 // pred_check_branch
        %323 = sbr.rel (%p320) target = $region12
      $region11: #{decoder_block.1} parent=5 // pred_region
        %s324 = ssub.s32 %s17, 1
        // Predicated region
        $region13: #{decoder_block.1} parent=11 // pred_check
          %p325 = pneg %p114
        $region14: #{decoder_block.1} parent=11 // pred_check_branch
          %327 = sbr.rel (%p325) target = $region16
        $region15: #{decoder_block.1} parent=11 // pred_region
          _
        $region16: #{decoder_block.1} parent=11 // pred_fallthru
          _
        // Predicated region
        $region17: #{decoder_block.1} parent=11 // pred_check
          %p328 = pneg %p135
        $region18: #{decoder_block.1} parent=11 // pred_check_branch
          %330 = sbr.rel (%p328) target = $region20
        $region19: #{decoder_block.1} parent=11 // pred_region
          _
        $region20: #{decoder_block.1} parent=11 // pred_fallthru
          _
        // Predicated region
        $region21: #{decoder_block.1} parent=11 // pred_check
          %p331 = pneg %p156
        $region22: #{decoder_block.1} parent=11 // pred_check_branch
          %333 = sbr.rel (%p331) target = $region24
        $region23: #{decoder_block.1} parent=11 // pred_region
          _
        $region24: #{decoder_block.1} parent=11 // pred_fallthru
          _
        // Predicated region
        $region25: #{decoder_block.1} parent=11 // pred_check
          %p334 = pneg %p177
        $region26: #{decoder_block.1} parent=11 // pred_check_branch
          %336 = sbr.rel (%p334) target = $region28
        $region27: #{decoder_block.1} parent=11 // pred_region
          _
        $region28: #{decoder_block.1} parent=11 // pred_fallthru
          _
        // Predicated region
        $region29: #{decoder_block.1} parent=11 // pred_check
          %p337 = pneg %p198
        $region30: #{decoder_block.1} parent=11 // pred_check_branch
          %339 = sbr.rel (%p337) target = $region32
        $region31: #{decoder_block.1} parent=11 // pred_region
          _
        $region32: #{decoder_block.1} parent=11 // pred_fallthru
          _
        // Predicated region
        $region33: #{decoder_block.1} parent=11 // pred_check
          %p340 = pneg %p219
        $region34: #{decoder_block.1} parent=11 // pred_check_branch
          %342 = sbr.rel (%p340) target = $region36
        $region35: #{decoder_block.1} parent=11 // pred_region
          _
        $region36: #{decoder_block.1} parent=11 // pred_fallthru
          _
        // Predicated region
        $region37: #{decoder_block.1} parent=11 // pred_check
          %p343 = pneg %p240
        $region38: #{decoder_block.1} parent=11 // pred_check_branch
          %345 = sbr.rel (%p343) target = $region40
        $region39: #{decoder_block.1} parent=11 // pred_region
          _
        $region40: #{decoder_block.1} parent=11 // pred_fallthru
          _
        // Predicated region
        $region41: #{decoder_block.1} parent=11 // pred_check
          %p346 = pneg %p261
        $region42: #{decoder_block.1} parent=11 // pred_check_branch
          %348 = sbr.rel (%p346) target = $region44
        $region43: #{decoder_block.1} parent=11 // pred_region
          _
        $region44: #{decoder_block.1} parent=11 // pred_fallthru
          _
        // Predicated region
        $region45: #{decoder_block.1} parent=11 // pred_check
          %p349 = pneg %p282
        $region46: #{decoder_block.1} parent=11 // pred_check_branch
          %351 = sbr.rel (%p349) target = $region48
        $region47: #{decoder_block.1} parent=11 // pred_region
          _
        $region48: #{decoder_block.1} parent=11 // pred_fallthru
          _
      $region12: #{decoder_block.1} parent=5 // pred_fallthru
        _
      %p352 = scmp.lt.s32.totalorder %s17, 4
      // Predicated region
      $region49: #{decoder_block.1} parent=5 // pred_check
        %p353 = pneg %p352
      $region50: #{decoder_block.1} parent=5 // pred_check_branch
        %355 = sbr.rel (%p353) target = $region52
      $region51: #{decoder_block.1} parent=5 // pred_region
        // Predicated region
        $region53: #{decoder_block.1} parent=51 // pred_check
          %p356 = pneg %p51
        $region54: #{decoder_block.1} parent=51 // pred_check_branch
          %358 = sbr.rel (%p356) target = $region56
        $region55: #{decoder_block.1} parent=51 // pred_region
          %s359 = smul.u32 8, %s25
          %p360 = scmp.lt.s32.totalorder %s24, 1
          %s361 = scalar_select %p360, %s24, 1
          %p362 = scmp.lt.s32.totalorder %s359, 15
          %s363 = scalar_select %p362, %s359, 15
          %s364 = smul.addr %s363, 2
          %s365 = smul.addr %s361, 32
          %s366 = sadd.s32 %s364, %s365
          %s367 = smul.addr %s366, 4
          %s368 = scalar_lea.vmem %s0, %s367
          %s369 = smul.u32 8, %s25
        $region56: #{decoder_block.1} parent=51 // pred_fallthru
          _
        // Predicated region
        $region57: #{decoder_block.1} parent=51 // pred_check
          %p370 = pneg %p87
        $region58: #{decoder_block.1} parent=51 // pred_check_branch
          %372 = sbr.rel (%p370) target = $region60
        $region59: #{decoder_block.1} parent=51 // pred_region
          %s373 = sadd.s32 %s25, 1
          %s374 = smul.u32 %s373, 8
          %p375 = scmp.lt.s32.totalorder %s374, 15
          %s376 = scalar_select %p375, %s374, 15
          %p377 = scmp.lt.s32.totalorder %s24, 1
          %s378 = scalar_select %p377, %s24, 1
          %p379 = scmp.lt.s32.totalorder %s376, 15
          %s380 = scalar_select %p379, %s376, 15
          %s381 = smul.addr %s380, 2
          %s382 = smul.addr %s378, 32
          %s383 = sadd.s32 %s381, %s382
          %s384 = smul.addr %s383, 4
          %s385 = scalar_lea.vmem %s1, %s384
          %s386 = sadd.s32 %s25, 1
          %s387 = smul.u32 %s386, 8
          %p388 = scmp.lt.s32.totalorder %s387, 15
          %s389 = scalar_select %p388, %s387, 15
        $region60: #{decoder_block.1} parent=51 // pred_fallthru
          _
      $region52: #{decoder_block.1} parent=5 // pred_fallthru
        _
      %p390 = scmp.le.s32.totalorder 1, %s17
      %p391 = scmp.lt.s32.totalorder %s17, 5
      %p392 = pnand %p390, %p391
      %p393 = pneg %p392
      // Predicated region
      $region61: #{decoder_block.1} parent=5 // pred_check
        _
      $region62: #{decoder_block.1} parent=5 // pred_check_branch
        %395 = sbr.rel (%p392) target = $region64
      $region63: #{decoder_block.1} parent=5 // pred_region
        %s396 = ssub.s32 %s17, 1
        %s397 = smul.u32 8, %s27
        %p398 = scmp.lt.s32.totalorder %s26, 1
        %s399 = scalar_select %p398, %s26, 1
        %p400 = scmp.lt.s32.totalorder %s397, 15
        %s401 = scalar_select %p400, %s397, 15
        %s402 = smul.addr %s401, 2
        %s403 = smul.addr %s399, 32
        %s404 = sadd.s32 %s402, %s403
        %s405 = smul.addr %s404, 4
        %s406 = scalar_lea.vmem %s0, %s405
        %p407 = pneg %p57
        %p408 = pneg %p54
        %s409 = sadd.s32 %s27, 1
        %s410 = smul.u32 %s409, 8
        %p411 = scmp.lt.s32.totalorder %s410, 15
        %s412 = scalar_select %p411, %s410, 15
        %p413 = scmp.lt.s32.totalorder %s26, 1
        %s414 = scalar_select %p413, %s26, 1
        %p415 = scmp.lt.s32.totalorder %s412, 15
        %s416 = scalar_select %p415, %s412, 15
        %s417 = smul.addr %s416, 2
        %s418 = smul.addr %s414, 32
        %s419 = sadd.s32 %s417, %s418
        %s420 = smul.addr %s419, 4
        %s421 = scalar_lea.vmem %s1, %s420
        %p422 = pneg %p93
        %p423 = pneg %p90
        %p424 = pneg %p114
        %p425 = pneg %p111
        %p426 = pneg %p135
        %p427 = pneg %p132
        %p428 = pneg %p156
        %p429 = pneg %p153
        %p430 = pneg %p177
        %p431 = pneg %p174
        %p432 = pneg %p198
        %p433 = pneg %p195
        %p434 = pneg %p219
        %p435 = pneg %p216
        %p436 = pneg %p240
        %p437 = pneg %p237
        %p438 = pneg %p261
        %p439 = pneg %p258
        %p440 = pneg %p282
        %p441 = pneg %p279
        %p442 = pneg %p310
        %p443 = pneg %p307
        %s444 = sand.u32 %s297, 1
        %s445 = sand.u32 %s297, 1
        %s446 = smul.addr %s445, 256
        %s447 = scalar_lea.vmem [#allocation3], %s446
        %s448 = smul.u32 8, %s27
        %p449 = scmp.lt.s32.totalorder %s26, 1
        %s450 = scalar_select %p449, %s26, 1
        %p451 = scmp.lt.s32.totalorder %s448, 15
        %s452 = scalar_select %p451, %s448, 15
        %s453 = smul.addr %s452, 2
        %s454 = smul.addr %s450, 32
        %s455 = sadd.s32 %s453, %s454
        %s456 = smul.addr %s455, 4
        %s457 = scalar_lea.vmem %s0, %s456
        %s458 = smul.u32 8, %s27
        %s459 = sadd.s32 %s27, 1
        %s460 = smul.u32 %s459, 8
        %p461 = scmp.lt.s32.totalorder %s460, 15
        %s462 = scalar_select %p461, %s460, 15
        %p463 = scmp.lt.s32.totalorder %s26, 1
        %s464 = scalar_select %p463, %s26, 1
        %p465 = scmp.lt.s32.totalorder %s462, 15
        %s466 = scalar_select %p465, %s462, 15
        %s467 = smul.addr %s466, 2
        %s468 = smul.addr %s464, 32
        %s469 = sadd.s32 %s467, %s468
        %s470 = smul.addr %s469, 4
        %s471 = scalar_lea.vmem %s1, %s470
        %s472 = sadd.s32 %s27, 1
        %s473 = smul.u32 %s472, 8
        %p474 = scmp.lt.s32.totalorder %s473, 15
        %s475 = scalar_select %p474, %s473, 15
        %s476 = smul.u32 8, %s27
        %v478 = vld [vmem:[%s8] sm:$0x1]
        %v479 = vld [vmem:[%s9] sm:$0x1]
        %v480 = vld [vmem:[%s10] sm:$0x1]
        %v481 = vld [vmem:[%s2] sm:$0xf]
        %v482 = vld [vmem:[%s2 + $0x4] sm:$0xf]
        %v483 = vld [vmem:[%s7] sm:$0x3]
        %v484 = vld [vmem:[%s457] sm:$0xf]
        %v485 = vld [vmem:[%s457 + $0x4] sm:$0xf]
        %v486 = vld [vmem:[%s457 + $0x8] sm:$0xf]
        %v487 = vld [vmem:[%s457 + $0xc] sm:$0xf]
        %v488 = vld [vmem:[%s457 + $0x10] sm:$0xf]
        %v489 = vld [vmem:[%s457 + $0x14] sm:$0xf]
        %v490 = vld [vmem:[%s457 + $0x18] sm:$0xf]
        %v491 = vld [vmem:[%s457 + $0x1c] sm:$0xf]
        %v492 = vld [vmem:[%s457 + $0x20] sm:$0xf]
        %v493 = vld [vmem:[%s457 + $0x24] sm:$0xf]
        %v494 = vld [vmem:[%s457 + $0x28] sm:$0xf]
        %v495 = vld [vmem:[%s457 + $0x2c] sm:$0xf]
        %v496 = vld [vmem:[%s457 + $0x30] sm:$0xf]
        %v497 = vld [vmem:[%s457 + $0x34] sm:$0xf]
        %v498 = vld [vmem:[%s457 + $0x38] sm:$0xf]
        %v499 = vld [vmem:[%s457 + $0x3c] sm:$0xf]
        %v501 = vlaneseq
        %v502 = vshrl.u32 %v501, 7
        %v503 = vsub.s32 0, %v502
        %v504 = vrot.slane %v478, %v503
        %v522 = vunpack.c.l.b16 %v484
        %v523 = vunpack.c.l.b16 %v485
        %v524 = vunpack.c.l.b16 %v486
        %v525 = vunpack.c.l.b16 %v487
        %v526 = vunpack.c.l.b16 %v488
        %v527 = vunpack.c.l.b16 %v489
        %v528 = vunpack.c.l.b16 %v490
        %v529 = vunpack.c.l.b16 %v491
        %v530 = vunpack.c.l.b16 %v492
        %v531 = vunpack.c.l.b16 %v493
        %v532 = vunpack.c.l.b16 %v494
        %v533 = vunpack.c.l.b16 %v495
        %v534 = vunpack.c.l.b16 %v496
        %v535 = vunpack.c.l.b16 %v497
        %v536 = vunpack.c.l.b16 %v498
        %v537 = vunpack.c.l.b16 %v499
        %v538 = vpack.c.b16 %v523, %v522
        %v539 = vpack.c.b16 %v525, %v524
        %v540 = vpack.c.b16 %v527, %v526
        %v541 = vpack.c.b16 %v529, %v528
        %v542 = vpack.c.b16 %v531, %v530
        %v543 = vpack.c.b16 %v533, %v532
        %v544 = vpack.c.b16 %v535, %v534
        %v545 = vpack.c.b16 %v537, %v536
        %v548 = vunpack.c.l.b16 %v481
        %v549 = vunpack.c.l.b16 %v482
        %v550 = vpack.c.b16 %v549, %v548
        %vm552 = vcmask 130048
        %v554 = vsel %vm552, %v538, 0
        %v557 = vsel %vm552, %v539, 0
        %v560 = vsel %vm552, %v540, 0
        %v563 = vsel %vm552, %v541, 0
        %v566 = vsel %vm552, %v542, 0
        %v569 = vsel %vm552, %v543, 0
        %v572 = vsel %vm552, %v544, 0
        %v575 = vsel %vm552, %v545, 0
        %577 = vmatprep.subr.bf16.mxu0 0
        %578 = vmatpush1.bf16.msra.mxu0 0
        %579 = vmatprep.subr.bf16.mxu0 0
        %580 = vmatpush1.bf16.msra.mxu0 0
        %581 = vmatprep.subr.bf16.mxu0 0
        %582 = vmatpush1.bf16.msra.mxu0 0
        %583 = vmatprep.subr.bf16.mxu0 0
        %584 = vmatpush1.bf16.msra.mxu0 0
        %585 = vmatprep.subr.bf16.mxu0 0
        %586 = vmatpush1.bf16.msra.mxu0 0
        %587 = vmatprep.subr.bf16.mxu0 0
        %588 = vmatpush1.bf16.msra.mxu0 0
        %589 = vmatprep.subr.bf16.mxu0 0
        %590 = vmatpush1.bf16.msra.mxu0 0
        %591 = vmatprep.subr.bf16.mxu0 0
        %592 = vmatpush1.bf16.msra.mxu0 %v550
        %593 = vmatprep.subr.bf16.mxu0 0
        %594 = vmatpush2.bf16.msra.mxu0 0
        %595 = vmatprep.subr.bf16.mxu0 0
        %596 = vmatpush2.bf16.msra.mxu0 0
        %597 = vmatprep.subr.bf16.mxu0 0
        %598 = vmatpush2.bf16.msra.mxu0 0
        %599 = vmatprep.subr.bf16.mxu0 0
        %600 = vmatpush2.bf16.msra.mxu0 0
        %601 = vmatprep.subr.bf16.mxu0 0
        %602 = vmatpush2.bf16.msra.mxu0 0
        %603 = vmatprep.subr.bf16.mxu0 0
        %604 = vmatpush2.bf16.msra.mxu0 0
        %605 = vmatprep.subr.bf16.mxu0 0
        %606 = vmatpush2.bf16.msra.mxu0 0
        %607 = vmatprep.subr.bf16.mxu0 0
        %608 = vmatpush2.bf16.msra.mxu0 0
        %609 = vmatprep.mubr.bf16.mxu0 0
        %610 = vmatmul.mubr.bf16.gmra.mxu0 %v554
        %v611 = vpop.f32.mrf.mxu0
        %v612 = vadd.f32 %v504, %v611
        %v613 = vpop.f32.mrf.mxu0
        %v614 = vpop.f32.mrf.mxu0
        %v615 = vadd.f32 %v504, %v614
        %v616 = vpop.f32.mrf.mxu0
        %617 = vmatprep.mubr.bf16.mxu0 0
        %618 = vmatmul.mubr.bf16.gmra.mxu0 %v557
        %v619 = vpop.f32.mrf.mxu0
        %v620 = vadd.f32 %v504, %v619
        %v621 = vpop.f32.mrf.mxu0
        %v622 = vpop.f32.mrf.mxu0
        %v623 = vadd.f32 %v504, %v622
        %v624 = vpop.f32.mrf.mxu0
        %625 = vmatprep.mubr.bf16.mxu0 0
        %626 = vmatmul.mubr.bf16.gmra.mxu0 %v560
        %v627 = vpop.f32.mrf.mxu0
        %v628 = vadd.f32 %v504, %v627
        %v629 = vpop.f32.mrf.mxu0
        %v630 = vpop.f32.mrf.mxu0
        %v631 = vadd.f32 %v504, %v630
        %v632 = vpop.f32.mrf.mxu0
        %633 = vmatprep.mubr.bf16.mxu0 0
        %634 = vmatmul.mubr.bf16.gmra.mxu0 %v563
        %v635 = vpop.f32.mrf.mxu0
        %v636 = vadd.f32 %v504, %v635
        %v637 = vpop.f32.mrf.mxu0
        %v638 = vpop.f32.mrf.mxu0
        %v639 = vadd.f32 %v504, %v638
        %v640 = vpop.f32.mrf.mxu0
        %641 = vmatprep.mubr.bf16.mxu0 0
        %642 = vmatmul.mubr.bf16.gmra.mxu0 %v566
        %v643 = vpop.f32.mrf.mxu0
        %v644 = vadd.f32 %v504, %v643
        %v645 = vpop.f32.mrf.mxu0
        %v646 = vpop.f32.mrf.mxu0
        %v647 = vadd.f32 %v504, %v646
        %v648 = vpop.f32.mrf.mxu0
        %649 = vmatprep.mubr.bf16.mxu0 0
        %650 = vmatmul.mubr.bf16.gmra.mxu0 %v569
        %v651 = vpop.f32.mrf.mxu0
        %v652 = vadd.f32 %v504, %v651
        %v653 = vpop.f32.mrf.mxu0
        %v654 = vpop.f32.mrf.mxu0
        %v655 = vadd.f32 %v504, %v654
        %v656 = vpop.f32.mrf.mxu0
        %657 = vmatprep.mubr.bf16.mxu0 0
        %658 = vmatmul.mubr.bf16.gmra.mxu0 %v572
        %v659 = vpop.f32.mrf.mxu0
        %v660 = vadd.f32 %v504, %v659
        %v661 = vpop.f32.mrf.mxu0
        %v662 = vpop.f32.mrf.mxu0
        %v663 = vadd.f32 %v504, %v662
        %v664 = vpop.f32.mrf.mxu0
        %665 = vmatprep.mubr.bf16.mxu0 0
        %666 = vmatmul.mubr.bf16.gmra.mxu0 %v575
        %v667 = vpop.f32.mrf.mxu0
        %v668 = vadd.f32 %v504, %v667
        %v669 = vpop.f32.mrf.mxu0
        %v670 = vpop.f32.mrf.mxu0
        %v671 = vadd.f32 %v504, %v670
        %v672 = vpop.f32.mrf.mxu0
        %673 = vdwg.mxu0
        %v674 = vmax.f32 %v612, 0.0
        %v675 = vmax.f32 %v615, 0.0
        %v676 = vmax.f32 %v620, 0.0
        %v677 = vmax.f32 %v623, 0.0
        %v678 = vmax.f32 %v628, 0.0
        %v679 = vmax.f32 %v631, 0.0
        %v680 = vmax.f32 %v636, 0.0
        %v681 = vmax.f32 %v639, 0.0
        %v682 = vmax.f32 %v644, 0.0
        %v683 = vmax.f32 %v647, 0.0
        %v684 = vmax.f32 %v652, 0.0
        %v685 = vmax.f32 %v655, 0.0
        %v686 = vmax.f32 %v660, 0.0
        %v687 = vmax.f32 %v663, 0.0
        %v688 = vmax.f32 %v668, 0.0
        %v689 = vmax.f32 %v671, 0.0
        %v690 = vpack.c.bf16 %v675, %v674
        %v691 = vpack.c.bf16 %v677, %v676
        %v692 = vpack.c.bf16 %v679, %v678
        %v693 = vpack.c.bf16 %v681, %v680
        %v694 = vpack.c.bf16 %v683, %v682
        %v695 = vpack.c.bf16 %v685, %v684
        %v696 = vpack.c.bf16 %v687, %v686
        %v697 = vpack.c.bf16 %v689, %v688
        %v698 = vld [vmem:[%s471] sm:$0xf]
        %v699 = vld [vmem:[%s471 + $0x4] sm:$0xf]
        %v702 = vunpack.c.l.b16 %v698
        %v703 = vunpack.c.l.b16 %v699
        %v704 = vpack.c.b16 %v703, %v702
        %v706 = vsel %vm552, %v704, 0
        %708 = vmatprep.subr.bf16.mxu0 0
        %709 = vmatpush1.bf16.msra.mxu0 0
        %710 = vmatprep.subr.bf16.mxu0 0
        %711 = vmatpush1.bf16.msra.mxu0 0
        %712 = vmatprep.subr.bf16.mxu0 0
        %713 = vmatpush1.bf16.msra.mxu0 0
        %714 = vmatprep.subr.bf16.mxu0 0
        %715 = vmatpush1.bf16.msra.mxu0 0
        %716 = vmatprep.subr.bf16.mxu0 0
        %717 = vmatpush1.bf16.msra.mxu0 0
        %718 = vmatprep.subr.bf16.mxu0 0
        %719 = vmatpush1.bf16.msra.mxu0 0
        %720 = vmatprep.subr.bf16.mxu0 0
        %721 = vmatpush1.bf16.msra.mxu0 0
        %722 = vmatprep.subr.bf16.mxu0 0
        %723 = vmatpush1.bf16.msra.mxu0 %v550
        %724 = vmatprep.subr.bf16.mxu0 0
        %725 = vmatpush2.bf16.msra.mxu0 0
        %726 = vmatprep.subr.bf16.mxu0 0
        %727 = vmatpush2.bf16.msra.mxu0 0
        %728 = vmatprep.subr.bf16.mxu0 0
        %729 = vmatpush2.bf16.msra.mxu0 0
        %730 = vmatprep.subr.bf16.mxu0 0
        %731 = vmatpush2.bf16.msra.mxu0 0
        %732 = vmatprep.subr.bf16.mxu0 0
        %733 = vmatpush2.bf16.msra.mxu0 0
        %734 = vmatprep.subr.bf16.mxu0 0
        %735 = vmatpush2.bf16.msra.mxu0 0
        %736 = vmatprep.subr.bf16.mxu0 0
        %737 = vmatpush2.bf16.msra.mxu0 0
        %738 = vmatprep.subr.bf16.mxu0 0
        %739 = vmatpush2.bf16.msra.mxu0 0
        %740 = vmatprep.mubr.bf16.mxu0 0
        %741 = vmatmul.mubr.bf16.gmra.mxu0 %v706
        %v742 = vpop.f32.mrf.mxu0
        %v743 = vadd.f32 %v504, %v742
        %v744 = vpop.f32.mrf.mxu0
        %v745 = vpop.f32.mrf.mxu0
        %v746 = vadd.f32 %v504, %v745
        %v747 = vpop.f32.mrf.mxu0
        %748 = vdwg.mxu0
        %v749 = vmax.f32 %v743, 0.0
        %v750 = vmax.f32 %v746, 0.0
        %p751 = scmp.eq.s32.totalorder %s27, 1
        %s752 = scalar_select %p751, 0.0, 1.0
        %v753 = vstv %s752
        %v754 = vmul.f32 %v749, %v753
        %v755 = vmul.f32 %v750, %v753
        %v756 = vpack.c.bf16 %v755, %v754
        %v765 = vunpack.c.l.b16 %v690
        %v766 = vunpack.c.h.b16 %v690
        %v767 = vunpack.c.l.b16 %v691
        %v768 = vunpack.c.h.b16 %v691
        %v769 = vunpack.c.l.b16 %v692
        %v770 = vunpack.c.h.b16 %v692
        %v771 = vunpack.c.l.b16 %v693
        %v772 = vunpack.c.h.b16 %v693
        %v773 = vunpack.c.l.b16 %v694
        %v774 = vunpack.c.h.b16 %v694
        %v775 = vunpack.c.l.b16 %v695
        %v776 = vunpack.c.h.b16 %v695
        %v777 = vunpack.c.l.b16 %v696
        %v778 = vunpack.c.h.b16 %v696
        %v779 = vunpack.c.l.b16 %v697
        %v780 = vunpack.c.h.b16 %v697
        %v781 = vpack.c.b16 %v765, %v765
        %v782 = vpack.c.b16 %v766, %v766
        %v783 = vpack.c.b16 %v767, %v767
        %v784 = vpack.c.b16 %v768, %v768
        %v785 = vpack.c.b16 %v769, %v769
        %v786 = vpack.c.b16 %v770, %v770
        %v787 = vpack.c.b16 %v771, %v771
        %v788 = vpack.c.b16 %v772, %v772
        %v789 = vpack.c.b16 %v773, %v773
        %v790 = vpack.c.b16 %v774, %v774
        %v791 = vpack.c.b16 %v775, %v775
        %v792 = vpack.c.b16 %v776, %v776
        %v793 = vpack.c.b16 %v777, %v777
        %v794 = vpack.c.b16 %v778, %v778
        %v795 = vpack.c.b16 %v779, %v779
        %v796 = vpack.c.b16 %v780, %v780
        %vm813 = vcmask 27648
        %814 = vst.msk [vmem:[#allocation2] sm:$0xf] %vm813, %v781
        %815 = vst.msk [vmem:[#allocation2 + $0x4] sm:$0xf] %vm813, %v782
        %816 = vst.msk [vmem:[#allocation2 + $0xc] sm:$0xf] %vm813, %v783
        %817 = vst.msk [vmem:[#allocation2 + $0x10] sm:$0xf] %vm813, %v784
        %818 = vst.msk [vmem:[#allocation2 + $0x18] sm:$0xf] %vm813, %v785
        %819 = vst.msk [vmem:[#allocation2 + $0x1c] sm:$0xf] %vm813, %v786
        %820 = vst.msk [vmem:[#allocation2 + $0x24] sm:$0xf] %vm813, %v787
        %821 = vst.msk [vmem:[#allocation2 + $0x28] sm:$0xf] %vm813, %v788
        %822 = vst.msk [vmem:[#allocation2 + $0x30] sm:$0xf] %vm813, %v789
        %823 = vst.msk [vmem:[#allocation2 + $0x34] sm:$0xf] %vm813, %v790
        %824 = vst.msk [vmem:[#allocation2 + $0x3c] sm:$0xf] %vm813, %v791
        %825 = vst.msk [vmem:[#allocation2 + $0x40] sm:$0xf] %vm813, %v792
        %826 = vst.msk [vmem:[#allocation2 + $0x48] sm:$0xf] %vm813, %v793
        %827 = vst.msk [vmem:[#allocation2 + $0x4c] sm:$0xf] %vm813, %v794
        %828 = vst.msk [vmem:[#allocation2 + $0x54] sm:$0xf] %vm813, %v795
        %829 = vst.msk [vmem:[#allocation2 + $0x58] sm:$0xf] %vm813, %v796
        %v831 = vunpack.c.l.b16 %v756
        %v832 = vunpack.c.h.b16 %v756
        %v833 = vpack.c.b16 %v831, %v831
        %v834 = vpack.c.b16 %v832, %v832
        %s837 = scalar_lea.vmem [#allocation2], 96
        %838 = vst.msk [vmem:[%s837] sm:$0xf] %vm813, %v833
        %839 = vst.msk [vmem:[%s837 + $0x4] sm:$0xf] %vm813, %v834
        %vm840 = vcmask 24576
        %vm841 = vsmask.f32 256
        %vm842 = vmand %vm840, %vm841
        %v843 = vld [vmem:[#allocation2 + $0x8] sm:$0x1]
        %v844 = vsel %vm842, 0, %v843
        %845 = vst [vmem:[#allocation2 + $0x8] sm:$0x1] %v844
        %v846 = vld [vmem:[#allocation2 + $0x14] sm:$0x1]
        %v847 = vsel %vm842, 0, %v846
        %848 = vst [vmem:[#allocation2 + $0x14] sm:$0x1] %v847
        %v849 = vld [vmem:[#allocation2 + $0x20] sm:$0x1]
        %v850 = vsel %vm842, 0, %v849
        %851 = vst [vmem:[#allocation2 + $0x20] sm:$0x1] %v850
        %v852 = vld [vmem:[#allocation2 + $0x2c] sm:$0x1]
        %v853 = vsel %vm842, 0, %v852
        %854 = vst [vmem:[#allocation2 + $0x2c] sm:$0x1] %v853
        %v855 = vld [vmem:[#allocation2 + $0x38] sm:$0x1]
        %v856 = vsel %vm842, 0, %v855
        %857 = vst [vmem:[#allocation2 + $0x38] sm:$0x1] %v856
        %v858 = vld [vmem:[#allocation2 + $0x44] sm:$0x1]
        %v859 = vsel %vm842, 0, %v858
        %860 = vst [vmem:[#allocation2 + $0x44] sm:$0x1] %v859
        %v861 = vld [vmem:[#allocation2 + $0x50] sm:$0x1]
        %v862 = vsel %vm842, 0, %v861
        %863 = vst [vmem:[#allocation2 + $0x50] sm:$0x1] %v862
        %v864 = vld [vmem:[#allocation2 + $0x5c] sm:$0x1]
        %v865 = vsel %vm842, 0, %v864
        %866 = vst [vmem:[#allocation2 + $0x5c] sm:$0x1] %v865
        %v867 = vld [vmem:[#allocation2 + $0x68] sm:$0x1]
        %v868 = vsel %vm842, 0, %v867
        %869 = vst [vmem:[#allocation2 + $0x68] sm:$0x1] %v868
        %v870 = vld [vmem:[#allocation2] sm:$0xf]
        %v871 = vld [vmem:[#allocation2 + $0x4] sm:$0xf]
        %v872 = vld [vmem:[#allocation2 + $0x8] sm:$0x1]
        %v873 = vld [vmem:[#allocation2 + $0xc] sm:$0xf]
        %v874 = vld [vmem:[#allocation2 + $0x10] sm:$0xf]
        %v875 = vld [vmem:[#allocation2 + $0x14] sm:$0x1]
        %v876 = vld [vmem:[#allocation2 + $0x18] sm:$0xf]
        %v877 = vld [vmem:[#allocation2 + $0x1c] sm:$0xf]
        %v878 = vld [vmem:[#allocation2 + $0x20] sm:$0x1]
        %v879 = vld [vmem:[#allocation2 + $0x24] sm:$0xf]
        %v880 = vld [vmem:[#allocation2 + $0x28] sm:$0xf]
        %v881 = vld [vmem:[#allocation2 + $0x2c] sm:$0x1]
        %v882 = vld [vmem:[#allocation2 + $0x30] sm:$0xf]
        %v883 = vld [vmem:[#allocation2 + $0x34] sm:$0xf]
        %v884 = vld [vmem:[#allocation2 + $0x38] sm:$0x1]
        %v885 = vld [vmem:[#allocation2 + $0x3c] sm:$0xf]
        %v886 = vld [vmem:[#allocation2 + $0x40] sm:$0xf]
        %v887 = vld [vmem:[#allocation2 + $0x44] sm:$0x1]
        %v888 = vld [vmem:[#allocation2 + $0x48] sm:$0xf]
        %v889 = vld [vmem:[#allocation2 + $0x4c] sm:$0xf]
        %v890 = vld [vmem:[#allocation2 + $0x50] sm:$0x1]
        %v891 = vld [vmem:[#allocation2 + $0x54] sm:$0xf]
        %v892 = vld [vmem:[#allocation2 + $0x58] sm:$0xf]
        %v893 = vld [vmem:[#allocation2 + $0x5c] sm:$0x1]
        %v894 = vld [vmem:[#allocation2 + $0x60] sm:$0xf]
        %v895 = vld [vmem:[#allocation2 + $0x64] sm:$0xf]
        %v896 = vld [vmem:[#allocation2 + $0x68] sm:$0x1]
        %v897 = vld [vmem:[%s3] sm:$0x3]
        %v899 = vlaneseq
        %v900 = vshrl.u32 %v899, 7
        %v901 = vsub.s32 0, %v900
        %v902 = vrot.slane %v479, %v901
        %v920 = vunpack.c.l.b16 %v870
        %v921 = vunpack.c.l.b16 %v871
        %v922 = vunpack.c.l.b16 %v873
        %v923 = vunpack.c.l.b16 %v874
        %v924 = vunpack.c.l.b16 %v876
        %v925 = vunpack.c.l.b16 %v877
        %v926 = vunpack.c.l.b16 %v879
        %v927 = vunpack.c.l.b16 %v880
        %v928 = vunpack.c.l.b16 %v882
        %v929 = vunpack.c.l.b16 %v883
        %v930 = vunpack.c.l.b16 %v885
        %v931 = vunpack.c.l.b16 %v886
        %v932 = vunpack.c.l.b16 %v888
        %v933 = vunpack.c.l.b16 %v889
        %v934 = vunpack.c.l.b16 %v891
        %v935 = vunpack.c.l.b16 %v892
        %v936 = vpack.c.b16 %v921, %v920
        %v937 = vpack.c.b16 %v923, %v922
        %v938 = vpack.c.b16 %v925, %v924
        %v939 = vpack.c.b16 %v927, %v926
        %v940 = vpack.c.b16 %v929, %v928
        %v941 = vpack.c.b16 %v931, %v930
        %v942 = vpack.c.b16 %v933, %v932
        %v943 = vpack.c.b16 %v935, %v934
        %vm944 = vcmask 31744
        %v946 = vsel %vm944, %v936, 0
        %v949 = vsel %vm944, %v937, 0
        %v952 = vsel %vm944, %v938, 0
        %v955 = vsel %vm944, %v939, 0
        %v958 = vsel %vm944, %v940, 0
        %v961 = vsel %vm944, %v941, 0
        %v964 = vsel %vm944, %v942, 0
        %v967 = vsel %vm944, %v943, 0
        %vm969 = vcmask 1041408
        %v971 = vsel %vm969, %v897, 0
        %973 = vmatprep.subr.bf16.mxu0 0
        %974 = vmatpush1.bf16.msra.mxu0 0
        %975 = vmatprep.subr.bf16.mxu0 0
        %976 = vmatpush1.bf16.msra.mxu0 0
        %977 = vmatprep.subr.bf16.mxu0 0
        %978 = vmatpush1.bf16.msra.mxu0 0
        %979 = vmatprep.subr.bf16.mxu0 0
        %980 = vmatpush1.bf16.msra.mxu0 0
        %981 = vmatprep.subr.bf16.mxu0 0
        %982 = vmatpush1.bf16.msra.mxu0 0
        %983 = vmatprep.subr.bf16.mxu0 0
        %984 = vmatpush1.bf16.msra.mxu0 0
        %985 = vmatprep.subr.bf16.mxu0 0
        %986 = vmatpush1.bf16.msra.mxu0 0
        %987 = vmatprep.subr.bf16.mxu0 0
        %988 = vmatpush1.bf16.msra.mxu0 %v971
        %989 = vmatprep.subr.bf16.mxu0 0
        %990 = vmatpush2.bf16.msra.mxu0 0
        %991 = vmatprep.subr.bf16.mxu0 0
        %992 = vmatpush2.bf16.msra.mxu0 0
        %993 = vmatprep.subr.bf16.mxu0 0
        %994 = vmatpush2.bf16.msra.mxu0 0
        %995 = vmatprep.subr.bf16.mxu0 0
        %996 = vmatpush2.bf16.msra.mxu0 0
        %997 = vmatprep.subr.bf16.mxu0 0
        %998 = vmatpush2.bf16.msra.mxu0 0
        %999 = vmatprep.subr.bf16.mxu0 0
        %1000 = vmatpush2.bf16.msra.mxu0 0
        %1001 = vmatprep.subr.bf16.mxu0 0
        %1002 = vmatpush2.bf16.msra.mxu0 0
        %1003 = vmatprep.subr.bf16.mxu0 0
        %1004 = vmatpush2.bf16.msra.mxu0 0
        %1005 = vmatprep.mubr.bf16.mxu0 0
        %1006 = vmatmul.mubr.bf16.gmra.mxu0 %v946
        %v1007 = vpop.f32.mrf.mxu0
        %v1008 = vadd.f32 %v902, %v1007
        %v1009 = vpop.f32.mrf.mxu0
        %v1010 = vpop.f32.mrf.mxu0
        %v1011 = vadd.f32 %v902, %v1010
        %v1012 = vpop.f32.mrf.mxu0
        %1013 = vmatprep.mubr.bf16.mxu0 0
        %1014 = vmatmul.mubr.bf16.gmra.mxu0 %v949
        %v1015 = vpop.f32.mrf.mxu0
        %v1016 = vadd.f32 %v902, %v1015
        %v1017 = vpop.f32.mrf.mxu0
        %v1018 = vpop.f32.mrf.mxu0
        %v1019 = vadd.f32 %v902, %v1018
        %v1020 = vpop.f32.mrf.mxu0
        %1021 = vmatprep.mubr.bf16.mxu0 0
        %1022 = vmatmul.mubr.bf16.gmra.mxu0 %v952
        %v1023 = vpop.f32.mrf.mxu0
        %v1024 = vadd.f32 %v902, %v1023
        %v1025 = vpop.f32.mrf.mxu0
        %v1026 = vpop.f32.mrf.mxu0
        %v1027 = vadd.f32 %v902, %v1026
        %v1028 = vpop.f32.mrf.mxu0
        %1029 = vmatprep.mubr.bf16.mxu0 0
        %1030 = vmatmul.mubr.bf16.gmra.mxu0 %v955
        %v1031 = vpop.f32.mrf.mxu0
        %v1032 = vadd.f32 %v902, %v1031
        %v1033 = vpop.f32.mrf.mxu0
        %v1034 = vpop.f32.mrf.mxu0
        %v1035 = vadd.f32 %v902, %v1034
        %v1036 = vpop.f32.mrf.mxu0
        %1037 = vmatprep.mubr.bf16.mxu0 0
        %1038 = vmatmul.mubr.bf16.gmra.mxu0 %v958
        %v1039 = vpop.f32.mrf.mxu0
        %v1040 = vadd.f32 %v902, %v1039
        %v1041 = vpop.f32.mrf.mxu0
        %v1042 = vpop.f32.mrf.mxu0
        %v1043 = vadd.f32 %v902, %v1042
        %v1044 = vpop.f32.mrf.mxu0
        %1045 = vmatprep.mubr.bf16.mxu0 0
        %1046 = vmatmul.mubr.bf16.gmra.mxu0 %v961
        %v1047 = vpop.f32.mrf.mxu0
        %v1048 = vadd.f32 %v902, %v1047
        %v1049 = vpop.f32.mrf.mxu0
        %v1050 = vpop.f32.mrf.mxu0
        %v1051 = vadd.f32 %v902, %v1050
        %v1052 = vpop.f32.mrf.mxu0
        %1053 = vmatprep.mubr.bf16.mxu0 0
        %1054 = vmatmul.mubr.bf16.gmra.mxu0 %v964
        %v1055 = vpop.f32.mrf.mxu0
        %v1056 = vadd.f32 %v902, %v1055
        %v1057 = vpop.f32.mrf.mxu0
        %v1058 = vpop.f32.mrf.mxu0
        %v1059 = vadd.f32 %v902, %v1058
        %v1060 = vpop.f32.mrf.mxu0
        %1061 = vmatprep.mubr.bf16.mxu0 0
        %1062 = vmatmul.mubr.bf16.gmra.mxu0 %v967
        %v1063 = vpop.f32.mrf.mxu0
        %v1064 = vadd.f32 %v902, %v1063
        %v1065 = vpop.f32.mrf.mxu0
        %v1066 = vpop.f32.mrf.mxu0
        %v1067 = vadd.f32 %v902, %v1066
        %v1068 = vpop.f32.mrf.mxu0
        %1069 = vdwg.mxu0
        %v1070 = vmax.f32 %v1008, 0.0
        %v1071 = vmax.f32 %v1011, 0.0
        %v1072 = vmax.f32 %v1016, 0.0
        %v1073 = vmax.f32 %v1019, 0.0
        %v1074 = vmax.f32 %v1024, 0.0
        %v1075 = vmax.f32 %v1027, 0.0
        %v1076 = vmax.f32 %v1032, 0.0
        %v1077 = vmax.f32 %v1035, 0.0
        %v1078 = vmax.f32 %v1040, 0.0
        %v1079 = vmax.f32 %v1043, 0.0
        %v1080 = vmax.f32 %v1048, 0.0
        %v1081 = vmax.f32 %v1051, 0.0
        %v1082 = vmax.f32 %v1056, 0.0
        %v1083 = vmax.f32 %v1059, 0.0
        %v1084 = vmax.f32 %v1064, 0.0
        %v1085 = vmax.f32 %v1067, 0.0
        %v1086 = vpack.c.bf16 %v1071, %v1070
        %v1087 = vpack.c.bf16 %v1073, %v1072
        %v1088 = vpack.c.bf16 %v1075, %v1074
        %v1089 = vpack.c.bf16 %v1077, %v1076
        %v1090 = vpack.c.bf16 %v1079, %v1078
        %v1091 = vpack.c.bf16 %v1081, %v1080
        %v1092 = vpack.c.bf16 %v1083, %v1082
        %v1093 = vpack.c.bf16 %v1085, %v1084
        %v1095 = vlaneseq
        %v1096 = vshrl.u32 %v1095, 7
        %v1097 = vsub.s32 0, %v1096
        %v1098 = vrot.slane %v480, %v1097
        %v1101 = vsel %vm944, %v1086, 0
        %v1104 = vsel %vm944, %v1087, 0
        %v1107 = vsel %vm944, %v1088, 0
        %v1110 = vsel %vm944, %v1089, 0
        %v1113 = vsel %vm944, %v1090, 0
        %v1116 = vsel %vm944, %v1091, 0
        %v1119 = vsel %vm944, %v1092, 0
        %v1122 = vsel %vm944, %v1093, 0
        %v1125 = vsel %vm969, %v483, 0
        %1127 = vmatprep.subr.bf16.mxu0 0
        %1128 = vmatpush1.bf16.msra.mxu0 0
        %1129 = vmatprep.subr.bf16.mxu0 0
        %1130 = vmatpush1.bf16.msra.mxu0 0
        %1131 = vmatprep.subr.bf16.mxu0 0
        %1132 = vmatpush1.bf16.msra.mxu0 0
        %1133 = vmatprep.subr.bf16.mxu0 0
        %1134 = vmatpush1.bf16.msra.mxu0 0
        %1135 = vmatprep.subr.bf16.mxu0 0
        %1136 = vmatpush1.bf16.msra.mxu0 0
        %1137 = vmatprep.subr.bf16.mxu0 0
        %1138 = vmatpush1.bf16.msra.mxu0 0
        %1139 = vmatprep.subr.bf16.mxu0 0
        %1140 = vmatpush1.bf16.msra.mxu0 0
        %1141 = vmatprep.subr.bf16.mxu0 0
        %1142 = vmatpush1.bf16.msra.mxu0 %v1125
        %1143 = vmatprep.subr.bf16.mxu0 0
        %1144 = vmatpush2.bf16.msra.mxu0 0
        %1145 = vmatprep.subr.bf16.mxu0 0
        %1146 = vmatpush2.bf16.msra.mxu0 0
        %1147 = vmatprep.subr.bf16.mxu0 0
        %1148 = vmatpush2.bf16.msra.mxu0 0
        %1149 = vmatprep.subr.bf16.mxu0 0
        %1150 = vmatpush2.bf16.msra.mxu0 0
        %1151 = vmatprep.subr.bf16.mxu0 0
        %1152 = vmatpush2.bf16.msra.mxu0 0
        %1153 = vmatprep.subr.bf16.mxu0 0
        %1154 = vmatpush2.bf16.msra.mxu0 0
        %1155 = vmatprep.subr.bf16.mxu0 0
        %1156 = vmatpush2.bf16.msra.mxu0 0
        %1157 = vmatprep.subr.bf16.mxu0 0
        %1158 = vmatpush2.bf16.msra.mxu0 0
        %1159 = vmatprep.mubr.bf16.mxu0 0
        %1160 = vmatmul.mubr.bf16.gmra.mxu0 %v1101
        %v1161 = vpop.f32.mrf.mxu0
        %v1162 = vadd.f32 %v1098, %v1161
        %v1163 = vpop.f32.mrf.mxu0
        %v1164 = vpop.f32.mrf.mxu0
        %v1165 = vadd.f32 %v1098, %v1164
        %v1166 = vpop.f32.mrf.mxu0
        %1167 = vmatprep.mubr.bf16.mxu0 0
        %1168 = vmatmul.mubr.bf16.gmra.mxu0 %v1104
        %v1169 = vpop.f32.mrf.mxu0
        %v1170 = vadd.f32 %v1098, %v1169
        %v1171 = vpop.f32.mrf.mxu0
        %v1172 = vpop.f32.mrf.mxu0
        %v1173 = vadd.f32 %v1098, %v1172
        %v1174 = vpop.f32.mrf.mxu0
        %1175 = vmatprep.mubr.bf16.mxu0 0
        %1176 = vmatmul.mubr.bf16.gmra.mxu0 %v1107
        %v1177 = vpop.f32.mrf.mxu0
        %v1178 = vadd.f32 %v1098, %v1177
        %v1179 = vpop.f32.mrf.mxu0
        %v1180 = vpop.f32.mrf.mxu0
        %v1181 = vadd.f32 %v1098, %v1180
        %v1182 = vpop.f32.mrf.mxu0
        %1183 = vmatprep.mubr.bf16.mxu0 0
        %1184 = vmatmul.mubr.bf16.gmra.mxu0 %v1110
        %v1185 = vpop.f32.mrf.mxu0
        %v1186 = vadd.f32 %v1098, %v1185
        %v1187 = vpop.f32.mrf.mxu0
        %v1188 = vpop.f32.mrf.mxu0
        %v1189 = vadd.f32 %v1098, %v1188
        %v1190 = vpop.f32.mrf.mxu0
        %1191 = vmatprep.mubr.bf16.mxu0 0
        %1192 = vmatmul.mubr.bf16.gmra.mxu0 %v1113
        %v1193 = vpop.f32.mrf.mxu0
        %v1194 = vadd.f32 %v1098, %v1193
        %v1195 = vpop.f32.mrf.mxu0
        %v1196 = vpop.f32.mrf.mxu0
        %v1197 = vadd.f32 %v1098, %v1196
        %v1198 = vpop.f32.mrf.mxu0
        %1199 = vmatprep.mubr.bf16.mxu0 0
        %1200 = vmatmul.mubr.bf16.gmra.mxu0 %v1116
        %v1201 = vpop.f32.mrf.mxu0
        %v1202 = vadd.f32 %v1098, %v1201
        %v1203 = vpop.f32.mrf.mxu0
        %v1204 = vpop.f32.mrf.mxu0
        %v1205 = vadd.f32 %v1098, %v1204
        %v1206 = vpop.f32.mrf.mxu0
        %1207 = vmatprep.mubr.bf16.mxu0 0
        %1208 = vmatmul.mubr.bf16.gmra.mxu0 %v1119
        %v1209 = vpop.f32.mrf.mxu0
        %v1210 = vadd.f32 %v1098, %v1209
        %v1211 = vpop.f32.mrf.mxu0
        %v1212 = vpop.f32.mrf.mxu0
        %v1213 = vadd.f32 %v1098, %v1212
        %v1214 = vpop.f32.mrf.mxu0
        %1215 = vmatprep.mubr.bf16.mxu0 0
        %1216 = vmatmul.mubr.bf16.gmra.mxu0 %v1122
        %v1217 = vpop.f32.mrf.mxu0
        %v1218 = vadd.f32 %v1098, %v1217
        %v1219 = vpop.f32.mrf.mxu0
        %v1220 = vpop.f32.mrf.mxu0
        %v1221 = vadd.f32 %v1098, %v1220
        %v1222 = vpop.f32.mrf.mxu0
        %1223 = vdwg.mxu0
        %v1224 = vmax.f32 %v1162, 0.0
        %v1225 = vmax.f32 %v1165, 0.0
        %v1226 = vmax.f32 %v1170, 0.0
        %v1227 = vmax.f32 %v1173, 0.0
        %v1228 = vmax.f32 %v1178, 0.0
        %v1229 = vmax.f32 %v1181, 0.0
        %v1230 = vmax.f32 %v1186, 0.0
        %v1231 = vmax.f32 %v1189, 0.0
        %v1232 = vmax.f32 %v1194, 0.0
        %v1233 = vmax.f32 %v1197, 0.0
        %v1234 = vmax.f32 %v1202, 0.0
        %v1235 = vmax.f32 %v1205, 0.0
        %v1236 = vmax.f32 %v1210, 0.0
        %v1237 = vmax.f32 %v1213, 0.0
        %v1238 = vmax.f32 %v1218, 0.0
        %v1239 = vmax.f32 %v1221, 0.0
        %v1240 = vpack.c.bf16 %v1225, %v1224
        %v1241 = vpack.c.bf16 %v1227, %v1226
        %v1242 = vpack.c.bf16 %v1229, %v1228
        %v1243 = vpack.c.bf16 %v1231, %v1230
        %v1244 = vpack.c.bf16 %v1233, %v1232
        %v1245 = vpack.c.bf16 %v1235, %v1234
        %v1246 = vpack.c.bf16 %v1237, %v1236
        %v1247 = vpack.c.bf16 %v1239, %v1238
        %v1256 = vunpack.c.l.b16 %v1240
        %v1257 = vunpack.c.h.b16 %v1240
        %v1258 = vunpack.c.l.b16 %v1241
        %v1259 = vunpack.c.h.b16 %v1241
        %v1260 = vunpack.c.l.b16 %v1242
        %v1261 = vunpack.c.h.b16 %v1242
        %v1262 = vunpack.c.l.b16 %v1243
        %v1263 = vunpack.c.h.b16 %v1243
        %v1264 = vunpack.c.l.b16 %v1244
        %v1265 = vunpack.c.h.b16 %v1244
        %v1266 = vunpack.c.l.b16 %v1245
        %v1267 = vunpack.c.h.b16 %v1245
        %v1268 = vunpack.c.l.b16 %v1246
        %v1269 = vunpack.c.h.b16 %v1246
        %v1270 = vunpack.c.l.b16 %v1247
        %v1271 = vunpack.c.h.b16 %v1247
        %v1272 = vpack.c.b16 %v1256, %v1256
        %v1273 = vpack.c.b16 %v1257, %v1257
        %v1274 = vpack.c.b16 %v1258, %v1258
        %v1275 = vpack.c.b16 %v1259, %v1259
        %v1276 = vpack.c.b16 %v1260, %v1260
        %v1277 = vpack.c.b16 %v1261, %v1261
        %v1278 = vpack.c.b16 %v1262, %v1262
        %v1279 = vpack.c.b16 %v1263, %v1263
        %v1280 = vpack.c.b16 %v1264, %v1264
        %v1281 = vpack.c.b16 %v1265, %v1265
        %v1282 = vpack.c.b16 %v1266, %v1266
        %v1283 = vpack.c.b16 %v1267, %v1267
        %v1284 = vpack.c.b16 %v1268, %v1268
        %v1285 = vpack.c.b16 %v1269, %v1269
        %v1286 = vpack.c.b16 %v1270, %v1270
        %v1287 = vpack.c.b16 %v1271, %v1271
        %vm1304 = vcmask 60416
        %1305 = vst.msk [vmem:[%s447] sm:$0xf] %vm1304, %v1272
        %1306 = vst.msk [vmem:[%s447 + $0x4] sm:$0xf] %vm1304, %v1273
        %1307 = vst.msk [vmem:[%s447 + $0x8] sm:$0xf] %vm1304, %v1274
        %1308 = vst.msk [vmem:[%s447 + $0xc] sm:$0xf] %vm1304, %v1275
        %1309 = vst.msk [vmem:[%s447 + $0x10] sm:$0xf] %vm1304, %v1276
        %1310 = vst.msk [vmem:[%s447 + $0x14] sm:$0xf] %vm1304, %v1277
        %1311 = vst.msk [vmem:[%s447 + $0x18] sm:$0xf] %vm1304, %v1278
        %1312 = vst.msk [vmem:[%s447 + $0x1c] sm:$0xf] %vm1304, %v1279
        %1313 = vst.msk [vmem:[%s447 + $0x20] sm:$0xf] %vm1304, %v1280
        %1314 = vst.msk [vmem:[%s447 + $0x24] sm:$0xf] %vm1304, %v1281
        %1315 = vst.msk [vmem:[%s447 + $0x28] sm:$0xf] %vm1304, %v1282
        %1316 = vst.msk [vmem:[%s447 + $0x2c] sm:$0xf] %vm1304, %v1283
        %1317 = vst.msk [vmem:[%s447 + $0x30] sm:$0xf] %vm1304, %v1284
        %1318 = vst.msk [vmem:[%s447 + $0x34] sm:$0xf] %vm1304, %v1285
        %1319 = vst.msk [vmem:[%s447 + $0x38] sm:$0xf] %vm1304, %v1286
        %1320 = vst.msk [vmem:[%s447 + $0x3c] sm:$0xf] %vm1304, %v1287
        %vm1321 = vsmask.f32 3328
        %vm1322 = vsmask.f32 7440
        %vm1323 = vmor %vm1321, %vm1322
        %v1325 = vshrl.u32 %v870, 16
        %v1327 = vrot.slane %v1325, 4
        %v1328 = vshll.u32 %v870, 16
        %v1330 = vrot.slane %v1328, 5
        %v1331 = vor.u32 %v1327, %v1330
        %v1332 = vrot.slane %v1331, 4
        %v1334 = vshll.u32 %v871, 16
        %v1336 = vrot.slane %v1334, 5
        %v1337 = vsel %vm1323, %v1332, %v1336
        %v1338 = vshrl.u32 %v871, 16
        %v1340 = vrot.slane %v1338, 4
        %v1341 = vor.u32 %v1340, %v1336
        %v1342 = vrot.slane %v1341, 4
        %v1344 = vshll.u32 %v872, 16
        %v1346 = vrot.slane %v1344, 5
        %v1347 = vsel %vm1323, %v1342, %v1346
        %v1349 = vshrl.u32 %v873, 16
        %v1351 = vrot.slane %v1349, 4
        %v1352 = vshll.u32 %v873, 16
        %v1354 = vrot.slane %v1352, 5
        %v1355 = vor.u32 %v1351, %v1354
        %v1356 = vrot.slane %v1355, 4
        %v1358 = vshll.u32 %v874, 16
        %v1360 = vrot.slane %v1358, 5
        %v1361 = vsel %vm1323, %v1356, %v1360
        %v1362 = vshrl.u32 %v874, 16
        %v1364 = vrot.slane %v1362, 4
        %v1365 = vor.u32 %v1364, %v1360
        %v1366 = vrot.slane %v1365, 4
        %v1368 = vshll.u32 %v875, 16
        %v1370 = vrot.slane %v1368, 5
        %v1371 = vsel %vm1323, %v1366, %v1370
        %v1373 = vshrl.u32 %v876, 16
        %v1375 = vrot.slane %v1373, 4
        %v1376 = vshll.u32 %v876, 16
        %v1378 = vrot.slane %v1376, 5
        %v1379 = vor.u32 %v1375, %v1378
        %v1380 = vrot.slane %v1379, 4
        %v1382 = vshll.u32 %v877, 16
        %v1384 = vrot.slane %v1382, 5
        %v1385 = vsel %vm1323, %v1380, %v1384
        %v1386 = vshrl.u32 %v877, 16
        %v1388 = vrot.slane %v1386, 4
        %v1389 = vor.u32 %v1388, %v1384
        %v1390 = vrot.slane %v1389, 4
        %v1392 = vshll.u32 %v878, 16
        %v1394 = vrot.slane %v1392, 5
        %v1395 = vsel %vm1323, %v1390, %v1394
        %v1397 = vshrl.u32 %v879, 16
        %v1399 = vrot.slane %v1397, 4
        %v1400 = vshll.u32 %v879, 16
        %v1402 = vrot.slane %v1400, 5
        %v1403 = vor.u32 %v1399, %v1402
        %v1404 = vrot.slane %v1403, 4
        %v1406 = vshll.u32 %v880, 16
        %v1408 = vrot.slane %v1406, 5
        %v1409 = vsel %vm1323, %v1404, %v1408
        %v1410 = vshrl.u32 %v880, 16
        %v1412 = vrot.slane %v1410, 4
        %v1413 = vor.u32 %v1412, %v1408
        %v1414 = vrot.slane %v1413, 4
        %v1416 = vshll.u32 %v881, 16
        %v1418 = vrot.slane %v1416, 5
        %v1419 = vsel %vm1323, %v1414, %v1418
        %v1421 = vshrl.u32 %v882, 16
        %v1423 = vrot.slane %v1421, 4
        %v1424 = vshll.u32 %v882, 16
        %v1426 = vrot.slane %v1424, 5
        %v1427 = vor.u32 %v1423, %v1426
        %v1428 = vrot.slane %v1427, 4
        %v1430 = vshll.u32 %v883, 16
        %v1432 = vrot.slane %v1430, 5
        %v1433 = vsel %vm1323, %v1428, %v1432
        %v1434 = vshrl.u32 %v883, 16
        %v1436 = vrot.slane %v1434, 4
        %v1437 = vor.u32 %v1436, %v1432
        %v1438 = vrot.slane %v1437, 4
        %v1440 = vshll.u32 %v884, 16
        %v1442 = vrot.slane %v1440, 5
        %v1443 = vsel %vm1323, %v1438, %v1442
        %v1445 = vshrl.u32 %v885, 16
        %v1447 = vrot.slane %v1445, 4
        %v1448 = vshll.u32 %v885, 16
        %v1450 = vrot.slane %v1448, 5
        %v1451 = vor.u32 %v1447, %v1450
        %v1452 = vrot.slane %v1451, 4
        %v1454 = vshll.u32 %v886, 16
        %v1456 = vrot.slane %v1454, 5
        %v1457 = vsel %vm1323, %v1452, %v1456
        %v1458 = vshrl.u32 %v886, 16
        %v1460 = vrot.slane %v1458, 4
        %v1461 = vor.u32 %v1460, %v1456
        %v1462 = vrot.slane %v1461, 4
        %v1464 = vshll.u32 %v887, 16
        %v1466 = vrot.slane %v1464, 5
        %v1467 = vsel %vm1323, %v1462, %v1466
        %v1469 = vshrl.u32 %v888, 16
        %v1471 = vrot.slane %v1469, 4
        %v1472 = vshll.u32 %v888, 16
        %v1474 = vrot.slane %v1472, 5
        %v1475 = vor.u32 %v1471, %v1474
        %v1476 = vrot.slane %v1475, 4
        %v1478 = vshll.u32 %v889, 16
        %v1480 = vrot.slane %v1478, 5
        %v1481 = vsel %vm1323, %v1476, %v1480
        %v1482 = vshrl.u32 %v889, 16
        %v1484 = vrot.slane %v1482, 4
        %v1485 = vor.u32 %v1484, %v1480
        %v1486 = vrot.slane %v1485, 4
        %v1488 = vshll.u32 %v890, 16
        %v1490 = vrot.slane %v1488, 5
        %v1491 = vsel %vm1323, %v1486, %v1490
        %v1493 = vshrl.u32 %v891, 16
        %v1495 = vrot.slane %v1493, 4
        %v1496 = vshll.u32 %v891, 16
        %v1498 = vrot.slane %v1496, 5
        %v1499 = vor.u32 %v1495, %v1498
        %v1500 = vrot.slane %v1499, 4
        %v1502 = vshll.u32 %v892, 16
        %v1504 = vrot.slane %v1502, 5
        %v1505 = vsel %vm1323, %v1500, %v1504
        %v1506 = vshrl.u32 %v892, 16
        %v1508 = vrot.slane %v1506, 4
        %v1509 = vor.u32 %v1508, %v1504
        %v1510 = vrot.slane %v1509, 4
        %v1512 = vshll.u32 %v893, 16
        %v1514 = vrot.slane %v1512, 5
        %v1515 = vsel %vm1323, %v1510, %v1514
        %v1516 = vunpack.c.l.b16 %v1337
        %v1517 = vunpack.c.l.b16 %v1347
        %v1518 = vunpack.c.l.b16 %v1361
        %v1519 = vunpack.c.l.b16 %v1371
        %v1520 = vunpack.c.l.b16 %v1385
        %v1521 = vunpack.c.l.b16 %v1395
        %v1522 = vunpack.c.l.b16 %v1409
        %v1523 = vunpack.c.l.b16 %v1419
        %v1524 = vunpack.c.l.b16 %v1433
        %v1525 = vunpack.c.l.b16 %v1443
        %v1526 = vunpack.c.l.b16 %v1457
        %v1527 = vunpack.c.l.b16 %v1467
        %v1528 = vunpack.c.l.b16 %v1481
        %v1529 = vunpack.c.l.b16 %v1491
        %v1530 = vunpack.c.l.b16 %v1505
        %v1531 = vunpack.c.l.b16 %v1515
        %v1532 = vpack.c.b16 %v1517, %v1516
        %v1533 = vpack.c.b16 %v1519, %v1518
        %v1534 = vpack.c.b16 %v1521, %v1520
        %v1535 = vpack.c.b16 %v1523, %v1522
        %v1536 = vpack.c.b16 %v1525, %v1524
        %v1537 = vpack.c.b16 %v1527, %v1526
        %v1538 = vpack.c.b16 %v1529, %v1528
        %v1539 = vpack.c.b16 %v1531, %v1530
        %1540 = vrot.lane.b32.xlu0 %v1532, 4
        %v1541 = vpop.permute.xlu0 %1540
        %1542 = vrot.lane.b32.xlu0 %v1533, 4
        %v1543 = vpop.permute.xlu0 %1542
        %1544 = vrot.lane.b32.xlu0 %v1534, 4
        %v1545 = vpop.permute.xlu0 %1544
        %1546 = vrot.lane.b32.xlu0 %v1535, 4
        %v1547 = vpop.permute.xlu0 %1546
        %1548 = vrot.lane.b32.xlu0 %v1536, 4
        %v1549 = vpop.permute.xlu0 %1548
        %1550 = vrot.lane.b32.xlu0 %v1537, 4
        %v1551 = vpop.permute.xlu0 %1550
        %1552 = vrot.lane.b32.xlu0 %v1538, 4
        %v1553 = vpop.permute.xlu0 %1552
        %1554 = vrot.lane.b32.xlu0 %v1539, 4
        %v1555 = vpop.permute.xlu0 %1554
        %v1557 = vsel %vm944, %v936, %v1541
        %v1559 = vsel %vm944, %v937, %v1543
        %v1561 = vsel %vm944, %v938, %v1545
        %v1563 = vsel %vm944, %v939, %v1547
        %v1565 = vsel %vm944, %v940, %v1549
        %v1567 = vsel %vm944, %v941, %v1551
        %v1569 = vsel %vm944, %v942, %v1553
        %v1571 = vsel %vm944, %v943, %v1555
        %v1572 = vld [vmem:[%s4] sm:$0xf]
        %vm1573 = vcmask 64512
        %v1574 = vsel %vm1573, %v1557, 0
        %v1576 = vsel %vm1573, %v1559, 0
        %v1578 = vsel %vm1573, %v1561, 0
        %v1580 = vsel %vm1573, %v1563, 0
        %v1582 = vsel %vm1573, %v1565, 0
        %v1584 = vsel %vm1573, %v1567, 0
        %v1586 = vsel %vm1573, %v1569, 0
        %v1588 = vsel %vm1573, %v1571, 0
        %vm1590 = vcmask 1043456
        %v1592 = vsel %vm1590, %v1572, 0
        %1594 = vmatprep.subr.bf16.mxu0 0
        %1595 = vmatpush1.bf16.msra.mxu0 0
        %1596 = vmatprep.subr.bf16.mxu0 0
        %1597 = vmatpush1.bf16.msra.mxu0 0
        %1598 = vmatprep.subr.bf16.mxu0 0
        %1599 = vmatpush1.bf16.msra.mxu0 0
        %1600 = vmatprep.subr.bf16.mxu0 0
        %1601 = vmatpush1.bf16.msra.mxu0 0
        %1602 = vmatprep.subr.bf16.mxu0 0
        %1603 = vmatpush1.bf16.msra.mxu0 0
        %1604 = vmatprep.subr.bf16.mxu0 0
        %1605 = vmatpush1.bf16.msra.mxu0 0
        %1606 = vmatprep.subr.bf16.mxu0 0
        %1607 = vmatpush1.bf16.msra.mxu0 0
        %1608 = vmatprep.subr.bf16.mxu0 0
        %1609 = vmatpush1.bf16.msra.mxu0 %v1592
        %1610 = vmatprep.subr.bf16.mxu0 0
        %1611 = vmatpush2.bf16.msra.mxu0 0
        %1612 = vmatprep.subr.bf16.mxu0 0
        %1613 = vmatpush2.bf16.msra.mxu0 0
        %1614 = vmatprep.subr.bf16.mxu0 0
        %1615 = vmatpush2.bf16.msra.mxu0 0
        %1616 = vmatprep.subr.bf16.mxu0 0
        %1617 = vmatpush2.bf16.msra.mxu0 0
        %1618 = vmatprep.subr.bf16.mxu0 0
        %1619 = vmatpush2.bf16.msra.mxu0 0
        %1620 = vmatprep.subr.bf16.mxu0 0
        %1621 = vmatpush2.bf16.msra.mxu0 0
        %1622 = vmatprep.subr.bf16.mxu0 0
        %1623 = vmatpush2.bf16.msra.mxu0 0
        %1624 = vmatprep.subr.bf16.mxu0 0
        %1625 = vmatpush2.bf16.msra.mxu0 0
        %1626 = vmatprep.mubr.bf16.mxu0 0
        %1627 = vmatmul.mubr.bf16.gmra.mxu0 %v1574
        %v1628 = vpop.f32.mrf.mxu0
        %v1629 = vadd.f32 %v902, %v1628
        %v1630 = vpop.f32.mrf.mxu0
        %v1631 = vpop.f32.mrf.mxu0
        %v1632 = vadd.f32 %v902, %v1631
        %v1633 = vpop.f32.mrf.mxu0
        %1634 = vmatprep.mubr.bf16.mxu0 0
        %1635 = vmatmul.mubr.bf16.gmra.mxu0 %v1576
        %v1636 = vpop.f32.mrf.mxu0
        %v1637 = vadd.f32 %v902, %v1636
        %v1638 = vpop.f32.mrf.mxu0
        %v1639 = vpop.f32.mrf.mxu0
        %v1640 = vadd.f32 %v902, %v1639
        %v1641 = vpop.f32.mrf.mxu0
        %1642 = vmatprep.mubr.bf16.mxu0 0
        %1643 = vmatmul.mubr.bf16.gmra.mxu0 %v1578
        %v1644 = vpop.f32.mrf.mxu0
        %v1645 = vadd.f32 %v902, %v1644
        %v1646 = vpop.f32.mrf.mxu0
        %v1647 = vpop.f32.mrf.mxu0
        %v1648 = vadd.f32 %v902, %v1647
        %v1649 = vpop.f32.mrf.mxu0
        %1650 = vmatprep.mubr.bf16.mxu0 0
        %1651 = vmatmul.mubr.bf16.gmra.mxu0 %v1580
        %v1652 = vpop.f32.mrf.mxu0
        %v1653 = vadd.f32 %v902, %v1652
        %v1654 = vpop.f32.mrf.mxu0
        %v1655 = vpop.f32.mrf.mxu0
        %v1656 = vadd.f32 %v902, %v1655
        %v1657 = vpop.f32.mrf.mxu0
        %1658 = vmatprep.mubr.bf16.mxu0 0
        %1659 = vmatmul.mubr.bf16.gmra.mxu0 %v1582
        %v1660 = vpop.f32.mrf.mxu0
        %v1661 = vadd.f32 %v902, %v1660
        %v1662 = vpop.f32.mrf.mxu0
        %v1663 = vpop.f32.mrf.mxu0
        %v1664 = vadd.f32 %v902, %v1663
        %v1665 = vpop.f32.mrf.mxu0
        %1666 = vmatprep.mubr.bf16.mxu0 0
        %1667 = vmatmul.mubr.bf16.gmra.mxu0 %v1584
        %v1668 = vpop.f32.mrf.mxu0
        %v1669 = vadd.f32 %v902, %v1668
        %v1670 = vpop.f32.mrf.mxu0
        %v1671 = vpop.f32.mrf.mxu0
        %v1672 = vadd.f32 %v902, %v1671
        %v1673 = vpop.f32.mrf.mxu0
        %1674 = vmatprep.mubr.bf16.mxu0 0
        %1675 = vmatmul.mubr.bf16.gmra.mxu0 %v1586
        %v1676 = vpop.f32.mrf.mxu0
        %v1677 = vadd.f32 %v902, %v1676
        %v1678 = vpop.f32.mrf.mxu0
        %v1679 = vpop.f32.mrf.mxu0
        %v1680 = vadd.f32 %v902, %v1679
        %v1681 = vpop.f32.mrf.mxu0
        %1682 = vmatprep.mubr.bf16.mxu0 0
        %1683 = vmatmul.mubr.bf16.gmra.mxu0 %v1588
        %v1684 = vpop.f32.mrf.mxu0
        %v1685 = vadd.f32 %v902, %v1684
        %v1686 = vpop.f32.mrf.mxu0
        %v1687 = vpop.f32.mrf.mxu0
        %v1688 = vadd.f32 %v902, %v1687
        %v1689 = vpop.f32.mrf.mxu0
        %1690 = vdwg.mxu0
        %v1691 = vmax.f32 %v1629, 0.0
        %v1692 = vmax.f32 %v1632, 0.0
        %v1693 = vmax.f32 %v1637, 0.0
        %v1694 = vmax.f32 %v1640, 0.0
        %v1695 = vmax.f32 %v1645, 0.0
        %v1696 = vmax.f32 %v1648, 0.0
        %v1697 = vmax.f32 %v1653, 0.0
        %v1698 = vmax.f32 %v1656, 0.0
        %v1699 = vmax.f32 %v1661, 0.0
        %v1700 = vmax.f32 %v1664, 0.0
        %v1701 = vmax.f32 %v1669, 0.0
        %v1702 = vmax.f32 %v1672, 0.0
        %v1703 = vmax.f32 %v1677, 0.0
        %v1704 = vmax.f32 %v1680, 0.0
        %v1705 = vmax.f32 %v1685, 0.0
        %v1706 = vmax.f32 %v1688, 0.0
        %v1707 = vpack.c.bf16 %v1692, %v1691
        %v1708 = vpack.c.bf16 %v1694, %v1693
        %v1709 = vpack.c.bf16 %v1696, %v1695
        %v1710 = vpack.c.bf16 %v1698, %v1697
        %v1711 = vpack.c.bf16 %v1700, %v1699
        %v1712 = vpack.c.bf16 %v1702, %v1701
        %v1713 = vpack.c.bf16 %v1704, %v1703
        %v1714 = vpack.c.bf16 %v1706, %v1705
        %v1716 = vsel %vm944, %v1707, 0
        %v1719 = vsel %vm944, %v1708, 0
        %v1722 = vsel %vm944, %v1709, 0
        %v1725 = vsel %vm944, %v1710, 0
        %v1728 = vsel %vm944, %v1711, 0
        %v1731 = vsel %vm944, %v1712, 0
        %v1734 = vsel %vm944, %v1713, 0
        %v1737 = vsel %vm944, %v1714, 0
        %1739 = vmatprep.subr.bf16.mxu0 0
        %1740 = vmatpush1.bf16.msra.mxu0 0
        %1741 = vmatprep.subr.bf16.mxu0 0
        %1742 = vmatpush1.bf16.msra.mxu0 0
        %1743 = vmatprep.subr.bf16.mxu0 0
        %1744 = vmatpush1.bf16.msra.mxu0 0
        %1745 = vmatprep.subr.bf16.mxu0 0
        %1746 = vmatpush1.bf16.msra.mxu0 0
        %1747 = vmatprep.subr.bf16.mxu0 0
        %1748 = vmatpush1.bf16.msra.mxu0 0
        %1749 = vmatprep.subr.bf16.mxu0 0
        %1750 = vmatpush1.bf16.msra.mxu0 0
        %1751 = vmatprep.subr.bf16.mxu0 0
        %1752 = vmatpush1.bf16.msra.mxu0 0
        %1753 = vmatprep.subr.bf16.mxu0 0
        %1754 = vmatpush1.bf16.msra.mxu0 %v1125
        %1755 = vmatprep.subr.bf16.mxu0 0
        %1756 = vmatpush2.bf16.msra.mxu0 0
        %1757 = vmatprep.subr.bf16.mxu0 0
        %1758 = vmatpush2.bf16.msra.mxu0 0
        %1759 = vmatprep.subr.bf16.mxu0 0
        %1760 = vmatpush2.bf16.msra.mxu0 0
        %1761 = vmatprep.subr.bf16.mxu0 0
        %1762 = vmatpush2.bf16.msra.mxu0 0
        %1763 = vmatprep.subr.bf16.mxu0 0
        %1764 = vmatpush2.bf16.msra.mxu0 0
        %1765 = vmatprep.subr.bf16.mxu0 0
        %1766 = vmatpush2.bf16.msra.mxu0 0
        %1767 = vmatprep.subr.bf16.mxu0 0
        %1768 = vmatpush2.bf16.msra.mxu0 0
        %1769 = vmatprep.subr.bf16.mxu0 0
        %1770 = vmatpush2.bf16.msra.mxu0 0
        %1771 = vmatprep.mubr.bf16.mxu0 0
        %1772 = vmatmul.mubr.bf16.gmra.mxu0 %v1716
        %v1773 = vpop.f32.mrf.mxu0
        %v1774 = vadd.f32 %v1098, %v1773
        %v1775 = vpop.f32.mrf.mxu0
        %v1776 = vpop.f32.mrf.mxu0
        %v1777 = vadd.f32 %v1098, %v1776
        %v1778 = vpop.f32.mrf.mxu0
        %1779 = vmatprep.mubr.bf16.mxu0 0
        %1780 = vmatmul.mubr.bf16.gmra.mxu0 %v1719
        %v1781 = vpop.f32.mrf.mxu0
        %v1782 = vadd.f32 %v1098, %v1781
        %v1783 = vpop.f32.mrf.mxu0
        %v1784 = vpop.f32.mrf.mxu0
        %v1785 = vadd.f32 %v1098, %v1784
        %v1786 = vpop.f32.mrf.mxu0
        %1787 = vmatprep.mubr.bf16.mxu0 0
        %1788 = vmatmul.mubr.bf16.gmra.mxu0 %v1722
        %v1789 = vpop.f32.mrf.mxu0
        %v1790 = vadd.f32 %v1098, %v1789
        %v1791 = vpop.f32.mrf.mxu0
        %v1792 = vpop.f32.mrf.mxu0
        %v1793 = vadd.f32 %v1098, %v1792
        %v1794 = vpop.f32.mrf.mxu0
        %1795 = vmatprep.mubr.bf16.mxu0 0
        %1796 = vmatmul.mubr.bf16.gmra.mxu0 %v1725
        %v1797 = vpop.f32.mrf.mxu0
        %v1798 = vadd.f32 %v1098, %v1797
        %v1799 = vpop.f32.mrf.mxu0
        %v1800 = vpop.f32.mrf.mxu0
        %v1801 = vadd.f32 %v1098, %v1800
        %v1802 = vpop.f32.mrf.mxu0
        %1803 = vmatprep.mubr.bf16.mxu0 0
        %1804 = vmatmul.mubr.bf16.gmra.mxu0 %v1728
        %v1805 = vpop.f32.mrf.mxu0
        %v1806 = vadd.f32 %v1098, %v1805
        %v1807 = vpop.f32.mrf.mxu0
        %v1808 = vpop.f32.mrf.mxu0
        %v1809 = vadd.f32 %v1098, %v1808
        %v1810 = vpop.f32.mrf.mxu0
        %1811 = vmatprep.mubr.bf16.mxu0 0
        %1812 = vmatmul.mubr.bf16.gmra.mxu0 %v1731
        %v1813 = vpop.f32.mrf.mxu0
        %v1814 = vadd.f32 %v1098, %v1813
        %v1815 = vpop.f32.mrf.mxu0
        %v1816 = vpop.f32.mrf.mxu0
        %v1817 = vadd.f32 %v1098, %v1816
        %v1818 = vpop.f32.mrf.mxu0
        %1819 = vmatprep.mubr.bf16.mxu0 0
        %1820 = vmatmul.mubr.bf16.gmra.mxu0 %v1734
        %v1821 = vpop.f32.mrf.mxu0
        %v1822 = vadd.f32 %v1098, %v1821
        %v1823 = vpop.f32.mrf.mxu0
        %v1824 = vpop.f32.mrf.mxu0
        %v1825 = vadd.f32 %v1098, %v1824
        %v1826 = vpop.f32.mrf.mxu0
        %1827 = vmatprep.mubr.bf16.mxu0 0
        %1828 = vmatmul.mubr.bf16.gmra.mxu0 %v1737
        %v1829 = vpop.f32.mrf.mxu0
        %v1830 = vadd.f32 %v1098, %v1829
        %v1831 = vpop.f32.mrf.mxu0
        %v1832 = vpop.f32.mrf.mxu0
        %v1833 = vadd.f32 %v1098, %v1832
        %v1834 = vpop.f32.mrf.mxu0
        %1835 = vdwg.mxu0
        %v1836 = vmax.f32 %v1774, 0.0
        %v1837 = vmax.f32 %v1777, 0.0
        %v1838 = vmax.f32 %v1782, 0.0
        %v1839 = vmax.f32 %v1785, 0.0
        %v1840 = vmax.f32 %v1790, 0.0
        %v1841 = vmax.f32 %v1793, 0.0
        %v1842 = vmax.f32 %v1798, 0.0
        %v1843 = vmax.f32 %v1801, 0.0
        %v1844 = vmax.f32 %v1806, 0.0
        %v1845 = vmax.f32 %v1809, 0.0
        %v1846 = vmax.f32 %v1814, 0.0
        %v1847 = vmax.f32 %v1817, 0.0
        %v1848 = vmax.f32 %v1822, 0.0
        %v1849 = vmax.f32 %v1825, 0.0
        %v1850 = vmax.f32 %v1830, 0.0
        %v1851 = vmax.f32 %v1833, 0.0
        %v1852 = vpack.c.bf16 %v1837, %v1836
        %v1853 = vpack.c.bf16 %v1839, %v1838
        %v1854 = vpack.c.bf16 %v1841, %v1840
        %v1855 = vpack.c.bf16 %v1843, %v1842
        %v1856 = vpack.c.bf16 %v1845, %v1844
        %v1857 = vpack.c.bf16 %v1847, %v1846
        %v1858 = vpack.c.bf16 %v1849, %v1848
        %v1859 = vpack.c.bf16 %v1851, %v1850
        %v1868 = vunpack.c.l.b16 %v1852
        %v1869 = vunpack.c.h.b16 %v1852
        %v1870 = vunpack.c.l.b16 %v1853
        %v1871 = vunpack.c.h.b16 %v1853
        %v1872 = vunpack.c.l.b16 %v1854
        %v1873 = vunpack.c.h.b16 %v1854
        %v1874 = vunpack.c.l.b16 %v1855
        %v1875 = vunpack.c.h.b16 %v1855
        %v1876 = vunpack.c.l.b16 %v1856
        %v1877 = vunpack.c.h.b16 %v1856
        %v1878 = vunpack.c.l.b16 %v1857
        %v1879 = vunpack.c.h.b16 %v1857
        %v1880 = vunpack.c.l.b16 %v1858
        %v1881 = vunpack.c.h.b16 %v1858
        %v1882 = vunpack.c.l.b16 %v1859
        %v1883 = vunpack.c.h.b16 %v1859
        %v1884 = vpack.c.b16 %v1868, %v1868
        %v1885 = vpack.c.b16 %v1869, %v1869
        %v1886 = vpack.c.b16 %v1870, %v1870
        %v1887 = vpack.c.b16 %v1871, %v1871
        %v1888 = vpack.c.b16 %v1872, %v1872
        %v1889 = vpack.c.b16 %v1873, %v1873
        %v1890 = vpack.c.b16 %v1874, %v1874
        %v1891 = vpack.c.b16 %v1875, %v1875
        %v1892 = vpack.c.b16 %v1876, %v1876
        %v1893 = vpack.c.b16 %v1877, %v1877
        %v1894 = vpack.c.b16 %v1878, %v1878
        %v1895 = vpack.c.b16 %v1879, %v1879
        %v1896 = vpack.c.b16 %v1880, %v1880
        %v1897 = vpack.c.b16 %v1881, %v1881
        %v1898 = vpack.c.b16 %v1882, %v1882
        %v1899 = vpack.c.b16 %v1883, %v1883
        %s1916 = scalar_lea.vmem %s447, 64 [#allocation3]
        %1917 = vst.msk [vmem:[%s1916] sm:$0xf] %vm1304, %v1884
        %1918 = vst.msk [vmem:[%s1916 + $0x4] sm:$0xf] %vm1304, %v1885
        %1919 = vst.msk [vmem:[%s1916 + $0x8] sm:$0xf] %vm1304, %v1886
        %1920 = vst.msk [vmem:[%s1916 + $0xc] sm:$0xf] %vm1304, %v1887
        %1921 = vst.msk [vmem:[%s1916 + $0x10] sm:$0xf] %vm1304, %v1888
        %1922 = vst.msk [vmem:[%s1916 + $0x14] sm:$0xf] %vm1304, %v1889
        %1923 = vst.msk [vmem:[%s1916 + $0x18] sm:$0xf] %vm1304, %v1890
        %1924 = vst.msk [vmem:[%s1916 + $0x1c] sm:$0xf] %vm1304, %v1891
        %1925 = vst.msk [vmem:[%s1916 + $0x20] sm:$0xf] %vm1304, %v1892
        %1926 = vst.msk [vmem:[%s1916 + $0x24] sm:$0xf] %vm1304, %v1893
        %1927 = vst.msk [vmem:[%s1916 + $0x28] sm:$0xf] %vm1304, %v1894
        %1928 = vst.msk [vmem:[%s1916 + $0x2c] sm:$0xf] %vm1304, %v1895
        %1929 = vst.msk [vmem:[%s1916 + $0x30] sm:$0xf] %vm1304, %v1896
        %1930 = vst.msk [vmem:[%s1916 + $0x34] sm:$0xf] %vm1304, %v1897
        %1931 = vst.msk [vmem:[%s1916 + $0x38] sm:$0xf] %vm1304, %v1898
        %1932 = vst.msk [vmem:[%s1916 + $0x3c] sm:$0xf] %vm1304, %v1899
        %v1935 = vunpack.c.l.b16 %v894
        %v1936 = vunpack.c.l.b16 %v895
        %v1937 = vpack.c.b16 %v1936, %v1935
        %1938 = vrot.lane.b32.xlu0 %v937, 4
        %v1939 = vpop.permute.xlu0 %1938
        %1940 = vrot.lane.b32.xlu0 %v938, 4
        %v1941 = vpop.permute.xlu0 %1940
        %1942 = vrot.lane.b32.xlu0 %v939, 4
        %v1943 = vpop.permute.xlu0 %1942
        %1944 = vrot.lane.b32.xlu0 %v940, 4
        %v1945 = vpop.permute.xlu0 %1944
        %1946 = vrot.lane.b32.xlu0 %v941, 4
        %v1947 = vpop.permute.xlu0 %1946
        %1948 = vrot.lane.b32.xlu0 %v942, 4
        %v1949 = vpop.permute.xlu0 %1948
        %1950 = vrot.lane.b32.xlu0 %v943, 4
        %v1951 = vpop.permute.xlu0 %1950
        %1952 = vrot.lane.b32.xlu0 %v1937, 4
        %v1953 = vpop.permute.xlu0 %1952
        %v1955 = vsel %vm944, %v936, %v1939
        %v1957 = vsel %vm944, %v937, %v1941
        %v1959 = vsel %vm944, %v938, %v1943
        %v1961 = vsel %vm944, %v939, %v1945
        %v1963 = vsel %vm944, %v940, %v1947
        %v1965 = vsel %vm944, %v941, %v1949
        %v1967 = vsel %vm944, %v942, %v1951
        %v1969 = vsel %vm944, %v943, %v1953
        %v1970 = vld [vmem:[%s5] sm:$0xf]
        %v1971 = vsel %vm1573, %v1955, 0
        %v1973 = vsel %vm1573, %v1957, 0
        %v1975 = vsel %vm1573, %v1959, 0
        %v1977 = vsel %vm1573, %v1961, 0
        %v1979 = vsel %vm1573, %v1963, 0
        %v1981 = vsel %vm1573, %v1965, 0
        %v1983 = vsel %vm1573, %v1967, 0
        %v1985 = vsel %vm1573, %v1969, 0
        %v1988 = vsel %vm1590, %v1970, 0
        %1990 = vmatprep.subr.bf16.mxu0 0
        %1991 = vmatpush1.bf16.msra.mxu0 0
        %1992 = vmatprep.subr.bf16.mxu0 0
        %1993 = vmatpush1.bf16.msra.mxu0 0
        %1994 = vmatprep.subr.bf16.mxu0 0
        %1995 = vmatpush1.bf16.msra.mxu0 0
        %1996 = vmatprep.subr.bf16.mxu0 0
        %1997 = vmatpush1.bf16.msra.mxu0 0
        %1998 = vmatprep.subr.bf16.mxu0 0
        %1999 = vmatpush1.bf16.msra.mxu0 0
        %2000 = vmatprep.subr.bf16.mxu0 0
        %2001 = vmatpush1.bf16.msra.mxu0 0
        %2002 = vmatprep.subr.bf16.mxu0 0
        %2003 = vmatpush1.bf16.msra.mxu0 0
        %2004 = vmatprep.subr.bf16.mxu0 0
        %2005 = vmatpush1.bf16.msra.mxu0 %v1988
        %2006 = vmatprep.subr.bf16.mxu0 0
        %2007 = vmatpush2.bf16.msra.mxu0 0
        %2008 = vmatprep.subr.bf16.mxu0 0
        %2009 = vmatpush2.bf16.msra.mxu0 0
        %2010 = vmatprep.subr.bf16.mxu0 0
        %2011 = vmatpush2.bf16.msra.mxu0 0
        %2012 = vmatprep.subr.bf16.mxu0 0
        %2013 = vmatpush2.bf16.msra.mxu0 0
        %2014 = vmatprep.subr.bf16.mxu0 0
        %2015 = vmatpush2.bf16.msra.mxu0 0
        %2016 = vmatprep.subr.bf16.mxu0 0
        %2017 = vmatpush2.bf16.msra.mxu0 0
        %2018 = vmatprep.subr.bf16.mxu0 0
        %2019 = vmatpush2.bf16.msra.mxu0 0
        %2020 = vmatprep.subr.bf16.mxu0 0
        %2021 = vmatpush2.bf16.msra.mxu0 0
        %2022 = vmatprep.mubr.bf16.mxu0 0
        %2023 = vmatmul.mubr.bf16.gmra.mxu0 %v1971
        %v2024 = vpop.f32.mrf.mxu0
        %v2025 = vadd.f32 %v902, %v2024
        %v2026 = vpop.f32.mrf.mxu0
        %v2027 = vpop.f32.mrf.mxu0
        %v2028 = vadd.f32 %v902, %v2027
        %v2029 = vpop.f32.mrf.mxu0
        %2030 = vmatprep.mubr.bf16.mxu0 0
        %2031 = vmatmul.mubr.bf16.gmra.mxu0 %v1973
        %v2032 = vpop.f32.mrf.mxu0
        %v2033 = vadd.f32 %v902, %v2032
        %v2034 = vpop.f32.mrf.mxu0
        %v2035 = vpop.f32.mrf.mxu0
        %v2036 = vadd.f32 %v902, %v2035
        %v2037 = vpop.f32.mrf.mxu0
        %2038 = vmatprep.mubr.bf16.mxu0 0
        %2039 = vmatmul.mubr.bf16.gmra.mxu0 %v1975
        %v2040 = vpop.f32.mrf.mxu0
        %v2041 = vadd.f32 %v902, %v2040
        %v2042 = vpop.f32.mrf.mxu0
        %v2043 = vpop.f32.mrf.mxu0
        %v2044 = vadd.f32 %v902, %v2043
        %v2045 = vpop.f32.mrf.mxu0
        %2046 = vmatprep.mubr.bf16.mxu0 0
        %2047 = vmatmul.mubr.bf16.gmra.mxu0 %v1977
        %v2048 = vpop.f32.mrf.mxu0
        %v2049 = vadd.f32 %v902, %v2048
        %v2050 = vpop.f32.mrf.mxu0
        %v2051 = vpop.f32.mrf.mxu0
        %v2052 = vadd.f32 %v902, %v2051
        %v2053 = vpop.f32.mrf.mxu0
        %2054 = vmatprep.mubr.bf16.mxu0 0
        %2055 = vmatmul.mubr.bf16.gmra.mxu0 %v1979
        %v2056 = vpop.f32.mrf.mxu0
        %v2057 = vadd.f32 %v902, %v2056
        %v2058 = vpop.f32.mrf.mxu0
        %v2059 = vpop.f32.mrf.mxu0
        %v2060 = vadd.f32 %v902, %v2059
        %v2061 = vpop.f32.mrf.mxu0
        %2062 = vmatprep.mubr.bf16.mxu0 0
        %2063 = vmatmul.mubr.bf16.gmra.mxu0 %v1981
        %v2064 = vpop.f32.mrf.mxu0
        %v2065 = vadd.f32 %v902, %v2064
        %v2066 = vpop.f32.mrf.mxu0
        %v2067 = vpop.f32.mrf.mxu0
        %v2068 = vadd.f32 %v902, %v2067
        %v2069 = vpop.f32.mrf.mxu0
        %2070 = vmatprep.mubr.bf16.mxu0 0
        %2071 = vmatmul.mubr.bf16.gmra.mxu0 %v1983
        %v2072 = vpop.f32.mrf.mxu0
        %v2073 = vadd.f32 %v902, %v2072
        %v2074 = vpop.f32.mrf.mxu0
        %v2075 = vpop.f32.mrf.mxu0
        %v2076 = vadd.f32 %v902, %v2075
        %v2077 = vpop.f32.mrf.mxu0
        %2078 = vmatprep.mubr.bf16.mxu0 0
        %2079 = vmatmul.mubr.bf16.gmra.mxu0 %v1985
        %v2080 = vpop.f32.mrf.mxu0
        %v2081 = vadd.f32 %v902, %v2080
        %v2082 = vpop.f32.mrf.mxu0
        %v2083 = vpop.f32.mrf.mxu0
        %v2084 = vadd.f32 %v902, %v2083
        %v2085 = vpop.f32.mrf.mxu0
        %2086 = vdwg.mxu0
        %v2087 = vmax.f32 %v2025, 0.0
        %v2088 = vmax.f32 %v2028, 0.0
        %v2089 = vmax.f32 %v2033, 0.0
        %v2090 = vmax.f32 %v2036, 0.0
        %v2091 = vmax.f32 %v2041, 0.0
        %v2092 = vmax.f32 %v2044, 0.0
        %v2093 = vmax.f32 %v2049, 0.0
        %v2094 = vmax.f32 %v2052, 0.0
        %v2095 = vmax.f32 %v2057, 0.0
        %v2096 = vmax.f32 %v2060, 0.0
        %v2097 = vmax.f32 %v2065, 0.0
        %v2098 = vmax.f32 %v2068, 0.0
        %v2099 = vmax.f32 %v2073, 0.0
        %v2100 = vmax.f32 %v2076, 0.0
        %v2101 = vmax.f32 %v2081, 0.0
        %v2102 = vmax.f32 %v2084, 0.0
        %v2103 = vpack.c.bf16 %v2088, %v2087
        %v2104 = vpack.c.bf16 %v2090, %v2089
        %v2105 = vpack.c.bf16 %v2092, %v2091
        %v2106 = vpack.c.bf16 %v2094, %v2093
        %v2107 = vpack.c.bf16 %v2096, %v2095
        %v2108 = vpack.c.bf16 %v2098, %v2097
        %v2109 = vpack.c.bf16 %v2100, %v2099
        %v2110 = vpack.c.bf16 %v2102, %v2101
        %v2112 = vsel %vm944, %v2103, 0
        %v2115 = vsel %vm944, %v2104, 0
        %v2118 = vsel %vm944, %v2105, 0
        %v2121 = vsel %vm944, %v2106, 0
        %v2124 = vsel %vm944, %v2107, 0
        %v2127 = vsel %vm944, %v2108, 0
        %v2130 = vsel %vm944, %v2109, 0
        %v2133 = vsel %vm944, %v2110, 0
        %2135 = vmatprep.subr.bf16.mxu0 0
        %2136 = vmatpush1.bf16.msra.mxu0 0
        %2137 = vmatprep.subr.bf16.mxu0 0
        %2138 = vmatpush1.bf16.msra.mxu0 0
        %2139 = vmatprep.subr.bf16.mxu0 0
        %2140 = vmatpush1.bf16.msra.mxu0 0
        %2141 = vmatprep.subr.bf16.mxu0 0
        %2142 = vmatpush1.bf16.msra.mxu0 0
        %2143 = vmatprep.subr.bf16.mxu0 0
        %2144 = vmatpush1.bf16.msra.mxu0 0
        %2145 = vmatprep.subr.bf16.mxu0 0
        %2146 = vmatpush1.bf16.msra.mxu0 0
        %2147 = vmatprep.subr.bf16.mxu0 0
        %2148 = vmatpush1.bf16.msra.mxu0 0
        %2149 = vmatprep.subr.bf16.mxu0 0
        %2150 = vmatpush1.bf16.msra.mxu0 %v1125
        %2151 = vmatprep.subr.bf16.mxu0 0
        %2152 = vmatpush2.bf16.msra.mxu0 0
        %2153 = vmatprep.subr.bf16.mxu0 0
        %2154 = vmatpush2.bf16.msra.mxu0 0
        %2155 = vmatprep.subr.bf16.mxu0 0
        %2156 = vmatpush2.bf16.msra.mxu0 0
        %2157 = vmatprep.subr.bf16.mxu0 0
        %2158 = vmatpush2.bf16.msra.mxu0 0
        %2159 = vmatprep.subr.bf16.mxu0 0
        %2160 = vmatpush2.bf16.msra.mxu0 0
        %2161 = vmatprep.subr.bf16.mxu0 0
        %2162 = vmatpush2.bf16.msra.mxu0 0
        %2163 = vmatprep.subr.bf16.mxu0 0
        %2164 = vmatpush2.bf16.msra.mxu0 0
        %2165 = vmatprep.subr.bf16.mxu0 0
        %2166 = vmatpush2.bf16.msra.mxu0 0
        %2167 = vmatprep.mubr.bf16.mxu0 0
        %2168 = vmatmul.mubr.bf16.gmra.mxu0 %v2112
        %v2169 = vpop.f32.mrf.mxu0
        %v2170 = vadd.f32 %v1098, %v2169
        %v2171 = vpop.f32.mrf.mxu0
        %v2172 = vpop.f32.mrf.mxu0
        %v2173 = vadd.f32 %v1098, %v2172
        %v2174 = vpop.f32.mrf.mxu0
        %2175 = vmatprep.mubr.bf16.mxu0 0
        %2176 = vmatmul.mubr.bf16.gmra.mxu0 %v2115
        %v2177 = vpop.f32.mrf.mxu0
        %v2178 = vadd.f32 %v1098, %v2177
        %v2179 = vpop.f32.mrf.mxu0
        %v2180 = vpop.f32.mrf.mxu0
        %v2181 = vadd.f32 %v1098, %v2180
        %v2182 = vpop.f32.mrf.mxu0
        %2183 = vmatprep.mubr.bf16.mxu0 0
        %2184 = vmatmul.mubr.bf16.gmra.mxu0 %v2118
        %v2185 = vpop.f32.mrf.mxu0
        %v2186 = vadd.f32 %v1098, %v2185
        %v2187 = vpop.f32.mrf.mxu0
        %v2188 = vpop.f32.mrf.mxu0
        %v2189 = vadd.f32 %v1098, %v2188
        %v2190 = vpop.f32.mrf.mxu0
        %2191 = vmatprep.mubr.bf16.mxu0 0
        %2192 = vmatmul.mubr.bf16.gmra.mxu0 %v2121
        %v2193 = vpop.f32.mrf.mxu0
        %v2194 = vadd.f32 %v1098, %v2193
        %v2195 = vpop.f32.mrf.mxu0
        %v2196 = vpop.f32.mrf.mxu0
        %v2197 = vadd.f32 %v1098, %v2196
        %v2198 = vpop.f32.mrf.mxu0
        %2199 = vmatprep.mubr.bf16.mxu0 0
        %2200 = vmatmul.mubr.bf16.gmra.mxu0 %v2124
        %v2201 = vpop.f32.mrf.mxu0
        %v2202 = vadd.f32 %v1098, %v2201
        %v2203 = vpop.f32.mrf.mxu0
        %v2204 = vpop.f32.mrf.mxu0
        %v2205 = vadd.f32 %v1098, %v2204
        %v2206 = vpop.f32.mrf.mxu0
        %2207 = vmatprep.mubr.bf16.mxu0 0
        %2208 = vmatmul.mubr.bf16.gmra.mxu0 %v2127
        %v2209 = vpop.f32.mrf.mxu0
        %v2210 = vadd.f32 %v1098, %v2209
        %v2211 = vpop.f32.mrf.mxu0
        %v2212 = vpop.f32.mrf.mxu0
        %v2213 = vadd.f32 %v1098, %v2212
        %v2214 = vpop.f32.mrf.mxu0
        %2215 = vmatprep.mubr.bf16.mxu0 0
        %2216 = vmatmul.mubr.bf16.gmra.mxu0 %v2130
        %v2217 = vpop.f32.mrf.mxu0
        %v2218 = vadd.f32 %v1098, %v2217
        %v2219 = vpop.f32.mrf.mxu0
        %v2220 = vpop.f32.mrf.mxu0
        %v2221 = vadd.f32 %v1098, %v2220
        %v2222 = vpop.f32.mrf.mxu0
        %2223 = vmatprep.mubr.bf16.mxu0 0
        %2224 = vmatmul.mubr.bf16.gmra.mxu0 %v2133
        %v2225 = vpop.f32.mrf.mxu0
        %v2226 = vadd.f32 %v1098, %v2225
        %v2227 = vpop.f32.mrf.mxu0
        %v2228 = vpop.f32.mrf.mxu0
        %v2229 = vadd.f32 %v1098, %v2228
        %v2230 = vpop.f32.mrf.mxu0
        %2231 = vdwg.mxu0
        %v2232 = vmax.f32 %v2170, 0.0
        %v2233 = vmax.f32 %v2173, 0.0
        %v2234 = vmax.f32 %v2178, 0.0
        %v2235 = vmax.f32 %v2181, 0.0
        %v2236 = vmax.f32 %v2186, 0.0
        %v2237 = vmax.f32 %v2189, 0.0
        %v2238 = vmax.f32 %v2194, 0.0
        %v2239 = vmax.f32 %v2197, 0.0
        %v2240 = vmax.f32 %v2202, 0.0
        %v2241 = vmax.f32 %v2205, 0.0
        %v2242 = vmax.f32 %v2210, 0.0
        %v2243 = vmax.f32 %v2213, 0.0
        %v2244 = vmax.f32 %v2218, 0.0
        %v2245 = vmax.f32 %v2221, 0.0
        %v2246 = vmax.f32 %v2226, 0.0
        %v2247 = vmax.f32 %v2229, 0.0
        %v2248 = vpack.c.bf16 %v2233, %v2232
        %v2249 = vpack.c.bf16 %v2235, %v2234
        %v2250 = vpack.c.bf16 %v2237, %v2236
        %v2251 = vpack.c.bf16 %v2239, %v2238
        %v2252 = vpack.c.bf16 %v2241, %v2240
        %v2253 = vpack.c.bf16 %v2243, %v2242
        %v2254 = vpack.c.bf16 %v2245, %v2244
        %v2255 = vpack.c.bf16 %v2247, %v2246
        %v2264 = vunpack.c.l.b16 %v2248
        %v2265 = vunpack.c.h.b16 %v2248
        %v2266 = vunpack.c.l.b16 %v2249
        %v2267 = vunpack.c.h.b16 %v2249
        %v2268 = vunpack.c.l.b16 %v2250
        %v2269 = vunpack.c.h.b16 %v2250
        %v2270 = vunpack.c.l.b16 %v2251
        %v2271 = vunpack.c.h.b16 %v2251
        %v2272 = vunpack.c.l.b16 %v2252
        %v2273 = vunpack.c.h.b16 %v2252
        %v2274 = vunpack.c.l.b16 %v2253
        %v2275 = vunpack.c.h.b16 %v2253
        %v2276 = vunpack.c.l.b16 %v2254
        %v2277 = vunpack.c.h.b16 %v2254
        %v2278 = vunpack.c.l.b16 %v2255
        %v2279 = vunpack.c.h.b16 %v2255
        %v2280 = vpack.c.b16 %v2264, %v2264
        %v2281 = vpack.c.b16 %v2265, %v2265
        %v2282 = vpack.c.b16 %v2266, %v2266
        %v2283 = vpack.c.b16 %v2267, %v2267
        %v2284 = vpack.c.b16 %v2268, %v2268
        %v2285 = vpack.c.b16 %v2269, %v2269
        %v2286 = vpack.c.b16 %v2270, %v2270
        %v2287 = vpack.c.b16 %v2271, %v2271
        %v2288 = vpack.c.b16 %v2272, %v2272
        %v2289 = vpack.c.b16 %v2273, %v2273
        %v2290 = vpack.c.b16 %v2274, %v2274
        %v2291 = vpack.c.b16 %v2275, %v2275
        %v2292 = vpack.c.b16 %v2276, %v2276
        %v2293 = vpack.c.b16 %v2277, %v2277
        %v2294 = vpack.c.b16 %v2278, %v2278
        %v2295 = vpack.c.b16 %v2279, %v2279
        %s2312 = scalar_lea.vmem %s447, 128 [#allocation3]
        %2313 = vst.msk [vmem:[%s2312] sm:$0xf] %vm1304, %v2280
        %2314 = vst.msk [vmem:[%s2312 + $0x4] sm:$0xf] %vm1304, %v2281
        %2315 = vst.msk [vmem:[%s2312 + $0x8] sm:$0xf] %vm1304, %v2282
        %2316 = vst.msk [vmem:[%s2312 + $0xc] sm:$0xf] %vm1304, %v2283
        %2317 = vst.msk [vmem:[%s2312 + $0x10] sm:$0xf] %vm1304, %v2284
        %2318 = vst.msk [vmem:[%s2312 + $0x14] sm:$0xf] %vm1304, %v2285
        %2319 = vst.msk [vmem:[%s2312 + $0x18] sm:$0xf] %vm1304, %v2286
        %2320 = vst.msk [vmem:[%s2312 + $0x1c] sm:$0xf] %vm1304, %v2287
        %2321 = vst.msk [vmem:[%s2312 + $0x20] sm:$0xf] %vm1304, %v2288
        %2322 = vst.msk [vmem:[%s2312 + $0x24] sm:$0xf] %vm1304, %v2289
        %2323 = vst.msk [vmem:[%s2312 + $0x28] sm:$0xf] %vm1304, %v2290
        %2324 = vst.msk [vmem:[%s2312 + $0x2c] sm:$0xf] %vm1304, %v2291
        %2325 = vst.msk [vmem:[%s2312 + $0x30] sm:$0xf] %vm1304, %v2292
        %2326 = vst.msk [vmem:[%s2312 + $0x34] sm:$0xf] %vm1304, %v2293
        %2327 = vst.msk [vmem:[%s2312 + $0x38] sm:$0xf] %vm1304, %v2294
        %2328 = vst.msk [vmem:[%s2312 + $0x3c] sm:$0xf] %vm1304, %v2295
        %v2330 = vshrl.u32 %v894, 16
        %v2332 = vrot.slane %v2330, 4
        %v2333 = vshll.u32 %v894, 16
        %v2335 = vrot.slane %v2333, 5
        %v2336 = vor.u32 %v2332, %v2335
        %v2337 = vrot.slane %v2336, 4
        %v2339 = vshll.u32 %v895, 16
        %v2341 = vrot.slane %v2339, 5
        %v2342 = vsel %vm1323, %v2337, %v2341
        %v2343 = vshrl.u32 %v895, 16
        %v2345 = vrot.slane %v2343, 4
        %v2346 = vor.u32 %v2345, %v2341
        %v2347 = vrot.slane %v2346, 4
        %v2349 = vshll.u32 %v896, 16
        %v2351 = vrot.slane %v2349, 5
        %v2352 = vsel %vm1323, %v2347, %v2351
        %2353 = vrot.lane.b32.xlu0 %v937, 8
        %v2354 = vpop.permute.xlu0 %2353
        %2355 = vrot.lane.b32.xlu0 %v938, 8
        %v2356 = vpop.permute.xlu0 %2355
        %2357 = vrot.lane.b32.xlu0 %v939, 8
        %v2358 = vpop.permute.xlu0 %2357
        %2359 = vrot.lane.b32.xlu0 %v940, 8
        %v2360 = vpop.permute.xlu0 %2359
        %2361 = vrot.lane.b32.xlu0 %v941, 8
        %v2362 = vpop.permute.xlu0 %2361
        %2363 = vrot.lane.b32.xlu0 %v942, 8
        %v2364 = vpop.permute.xlu0 %2363
        %2365 = vrot.lane.b32.xlu0 %v943, 8
        %v2366 = vpop.permute.xlu0 %2365
        %2367 = vrot.lane.b32.xlu0 %v1937, 8
        %v2368 = vpop.permute.xlu0 %2367
        %v2369 = vunpack.c.l.b16 %v2342
        %v2370 = vunpack.c.l.b16 %v2352
        %v2371 = vpack.c.b16 %v2370, %v2369
        %2372 = vrot.lane.b32.xlu0 %v1533, 12
        %v2373 = vpop.permute.xlu0 %2372
        %2374 = vrot.lane.b32.xlu0 %v1534, 12
        %v2375 = vpop.permute.xlu0 %2374
        %2376 = vrot.lane.b32.xlu0 %v1535, 12
        %v2377 = vpop.permute.xlu0 %2376
        %2378 = vrot.lane.b32.xlu0 %v1536, 12
        %v2379 = vpop.permute.xlu0 %2378
        %2380 = vrot.lane.b32.xlu0 %v1537, 12
        %v2381 = vpop.permute.xlu0 %2380
        %2382 = vrot.lane.b32.xlu0 %v1538, 12
        %v2383 = vpop.permute.xlu0 %2382
        %2384 = vrot.lane.b32.xlu0 %v1539, 12
        %v2385 = vpop.permute.xlu0 %2384
        %2386 = vrot.lane.b32.xlu0 %v2371, 12
        %v2387 = vpop.permute.xlu0 %2386
        %v2389 = vsel %vm1573, %v1557, %v2354
        %v2391 = vsel %vm1573, %v1559, %v2356
        %v2393 = vsel %vm1573, %v1561, %v2358
        %v2395 = vsel %vm1573, %v1563, %v2360
        %v2397 = vsel %vm1573, %v1565, %v2362
        %v2399 = vsel %vm1573, %v1567, %v2364
        %v2401 = vsel %vm1573, %v1569, %v2366
        %v2403 = vsel %vm1573, %v1571, %v2368
        %vm2404 = vcmask 97280
        %v2406 = vsel %vm2404, %v2389, %v2373
        %v2408 = vsel %vm2404, %v2391, %v2375
        %v2410 = vsel %vm2404, %v2393, %v2377
        %v2412 = vsel %vm2404, %v2395, %v2379
        %v2414 = vsel %vm2404, %v2397, %v2381
        %v2416 = vsel %vm2404, %v2399, %v2383
        %v2418 = vsel %vm2404, %v2401, %v2385
        %v2420 = vsel %vm2404, %v2403, %v2387
        %v2421 = vld [vmem:[%s6] sm:$0xf]
        %v2422 = vld [vmem:[%s6 + $0x4] sm:$0xf]
        %v2425 = vunpack.c.l.b16 %v2421
        %v2426 = vunpack.c.l.b16 %v2422
        %v2427 = vpack.c.b16 %v2426, %v2425
        %v2429 = vsel %vm552, %v2406, 0
        %v2431 = vsel %vm552, %v2408, 0
        %v2433 = vsel %vm552, %v2410, 0
        %v2435 = vsel %vm552, %v2412, 0
        %v2437 = vsel %vm552, %v2414, 0
        %v2439 = vsel %vm552, %v2416, 0
        %v2441 = vsel %vm552, %v2418, 0
        %v2443 = vsel %vm552, %v2420, 0
        %2445 = vmatprep.subr.bf16.mxu0 0
        %2446 = vmatpush1.bf16.msra.mxu0 0
        %2447 = vmatprep.subr.bf16.mxu0 0
        %2448 = vmatpush1.bf16.msra.mxu0 0
        %2449 = vmatprep.subr.bf16.mxu0 0
        %2450 = vmatpush1.bf16.msra.mxu0 0
        %2451 = vmatprep.subr.bf16.mxu0 0
        %2452 = vmatpush1.bf16.msra.mxu0 0
        %2453 = vmatprep.subr.bf16.mxu0 0
        %2454 = vmatpush1.bf16.msra.mxu0 0
        %2455 = vmatprep.subr.bf16.mxu0 0
        %2456 = vmatpush1.bf16.msra.mxu0 0
        %2457 = vmatprep.subr.bf16.mxu0 0
        %2458 = vmatpush1.bf16.msra.mxu0 0
        %2459 = vmatprep.subr.bf16.mxu0 0
        %2460 = vmatpush1.bf16.msra.mxu0 %v2427
        %2461 = vmatprep.subr.bf16.mxu0 0
        %2462 = vmatpush2.bf16.msra.mxu0 0
        %2463 = vmatprep.subr.bf16.mxu0 0
        %2464 = vmatpush2.bf16.msra.mxu0 0
        %2465 = vmatprep.subr.bf16.mxu0 0
        %2466 = vmatpush2.bf16.msra.mxu0 0
        %2467 = vmatprep.subr.bf16.mxu0 0
        %2468 = vmatpush2.bf16.msra.mxu0 0
        %2469 = vmatprep.subr.bf16.mxu0 0
        %2470 = vmatpush2.bf16.msra.mxu0 0
        %2471 = vmatprep.subr.bf16.mxu0 0
        %2472 = vmatpush2.bf16.msra.mxu0 0
        %2473 = vmatprep.subr.bf16.mxu0 0
        %2474 = vmatpush2.bf16.msra.mxu0 0
        %2475 = vmatprep.subr.bf16.mxu0 0
        %2476 = vmatpush2.bf16.msra.mxu0 0
        %2477 = vmatprep.mubr.bf16.mxu0 0
        %2478 = vmatmul.mubr.bf16.gmra.mxu0 %v2429
        %v2479 = vpop.f32.mrf.mxu0
        %v2480 = vadd.f32 %v902, %v2479
        %v2481 = vpop.f32.mrf.mxu0
        %v2482 = vpop.f32.mrf.mxu0
        %v2483 = vadd.f32 %v902, %v2482
        %v2484 = vpop.f32.mrf.mxu0
        %2485 = vmatprep.mubr.bf16.mxu0 0
        %2486 = vmatmul.mubr.bf16.gmra.mxu0 %v2431
        %v2487 = vpop.f32.mrf.mxu0
        %v2488 = vadd.f32 %v902, %v2487
        %v2489 = vpop.f32.mrf.mxu0
        %v2490 = vpop.f32.mrf.mxu0
        %v2491 = vadd.f32 %v902, %v2490
        %v2492 = vpop.f32.mrf.mxu0
        %2493 = vmatprep.mubr.bf16.mxu0 0
        %2494 = vmatmul.mubr.bf16.gmra.mxu0 %v2433
        %v2495 = vpop.f32.mrf.mxu0
        %v2496 = vadd.f32 %v902, %v2495
        %v2497 = vpop.f32.mrf.mxu0
        %v2498 = vpop.f32.mrf.mxu0
        %v2499 = vadd.f32 %v902, %v2498
        %v2500 = vpop.f32.mrf.mxu0
        %2501 = vmatprep.mubr.bf16.mxu0 0
        %2502 = vmatmul.mubr.bf16.gmra.mxu0 %v2435
        %v2503 = vpop.f32.mrf.mxu0
        %v2504 = vadd.f32 %v902, %v2503
        %v2505 = vpop.f32.mrf.mxu0
        %v2506 = vpop.f32.mrf.mxu0
        %v2507 = vadd.f32 %v902, %v2506
        %v2508 = vpop.f32.mrf.mxu0
        %2509 = vmatprep.mubr.bf16.mxu0 0
        %2510 = vmatmul.mubr.bf16.gmra.mxu0 %v2437
        %v2511 = vpop.f32.mrf.mxu0
        %v2512 = vadd.f32 %v902, %v2511
        %v2513 = vpop.f32.mrf.mxu0
        %v2514 = vpop.f32.mrf.mxu0
        %v2515 = vadd.f32 %v902, %v2514
        %v2516 = vpop.f32.mrf.mxu0
        %2517 = vmatprep.mubr.bf16.mxu0 0
        %2518 = vmatmul.mubr.bf16.gmra.mxu0 %v2439
        %v2519 = vpop.f32.mrf.mxu0
        %v2520 = vadd.f32 %v902, %v2519
        %v2521 = vpop.f32.mrf.mxu0
        %v2522 = vpop.f32.mrf.mxu0
        %v2523 = vadd.f32 %v902, %v2522
        %v2524 = vpop.f32.mrf.mxu0
        %2525 = vmatprep.mubr.bf16.mxu0 0
        %2526 = vmatmul.mubr.bf16.gmra.mxu0 %v2441
        %v2527 = vpop.f32.mrf.mxu0
        %v2528 = vadd.f32 %v902, %v2527
        %v2529 = vpop.f32.mrf.mxu0
        %v2530 = vpop.f32.mrf.mxu0
        %v2531 = vadd.f32 %v902, %v2530
        %v2532 = vpop.f32.mrf.mxu0
        %2533 = vmatprep.mubr.bf16.mxu0 0
        %2534 = vmatmul.mubr.bf16.gmra.mxu0 %v2443
        %v2535 = vpop.f32.mrf.mxu0
        %v2536 = vadd.f32 %v902, %v2535
        %v2537 = vpop.f32.mrf.mxu0
        %v2538 = vpop.f32.mrf.mxu0
        %v2539 = vadd.f32 %v902, %v2538
        %v2540 = vpop.f32.mrf.mxu0
        %2541 = vdwg.mxu0
        %v2542 = vmax.f32 %v2480, 0.0
        %v2543 = vmax.f32 %v2483, 0.0
        %v2544 = vmax.f32 %v2488, 0.0
        %v2545 = vmax.f32 %v2491, 0.0
        %v2546 = vmax.f32 %v2496, 0.0
        %v2547 = vmax.f32 %v2499, 0.0
        %v2548 = vmax.f32 %v2504, 0.0
        %v2549 = vmax.f32 %v2507, 0.0
        %v2550 = vmax.f32 %v2512, 0.0
        %v2551 = vmax.f32 %v2515, 0.0
        %v2552 = vmax.f32 %v2520, 0.0
        %v2553 = vmax.f32 %v2523, 0.0
        %v2554 = vmax.f32 %v2528, 0.0
        %v2555 = vmax.f32 %v2531, 0.0
        %v2556 = vmax.f32 %v2536, 0.0
        %v2557 = vmax.f32 %v2539, 0.0
        %v2558 = vpack.c.bf16 %v2543, %v2542
        %v2559 = vpack.c.bf16 %v2545, %v2544
        %v2560 = vpack.c.bf16 %v2547, %v2546
        %v2561 = vpack.c.bf16 %v2549, %v2548
        %v2562 = vpack.c.bf16 %v2551, %v2550
        %v2563 = vpack.c.bf16 %v2553, %v2552
        %v2564 = vpack.c.bf16 %v2555, %v2554
        %v2565 = vpack.c.bf16 %v2557, %v2556
        %v2567 = vsel %vm944, %v2558, 0
        %v2570 = vsel %vm944, %v2559, 0
        %v2573 = vsel %vm944, %v2560, 0
        %v2576 = vsel %vm944, %v2561, 0
        %v2579 = vsel %vm944, %v2562, 0
        %v2582 = vsel %vm944, %v2563, 0
        %v2585 = vsel %vm944, %v2564, 0
        %v2588 = vsel %vm944, %v2565, 0
        %2590 = vmatprep.subr.bf16.mxu0 0
        %2591 = vmatpush1.bf16.msra.mxu0 0
        %2592 = vmatprep.subr.bf16.mxu0 0
        %2593 = vmatpush1.bf16.msra.mxu0 0
        %2594 = vmatprep.subr.bf16.mxu0 0
        %2595 = vmatpush1.bf16.msra.mxu0 0
        %2596 = vmatprep.subr.bf16.mxu0 0
        %2597 = vmatpush1.bf16.msra.mxu0 0
        %2598 = vmatprep.subr.bf16.mxu0 0
        %2599 = vmatpush1.bf16.msra.mxu0 0
        %2600 = vmatprep.subr.bf16.mxu0 0
        %2601 = vmatpush1.bf16.msra.mxu0 0
        %2602 = vmatprep.subr.bf16.mxu0 0
        %2603 = vmatpush1.bf16.msra.mxu0 0
        %2604 = vmatprep.subr.bf16.mxu0 0
        %2605 = vmatpush1.bf16.msra.mxu0 %v1125
        %2606 = vmatprep.subr.bf16.mxu0 0
        %2607 = vmatpush2.bf16.msra.mxu0 0
        %2608 = vmatprep.subr.bf16.mxu0 0
        %2609 = vmatpush2.bf16.msra.mxu0 0
        %2610 = vmatprep.subr.bf16.mxu0 0
        %2611 = vmatpush2.bf16.msra.mxu0 0
        %2612 = vmatprep.subr.bf16.mxu0 0
        %2613 = vmatpush2.bf16.msra.mxu0 0
        %2614 = vmatprep.subr.bf16.mxu0 0
        %2615 = vmatpush2.bf16.msra.mxu0 0
        %2616 = vmatprep.subr.bf16.mxu0 0
        %2617 = vmatpush2.bf16.msra.mxu0 0
        %2618 = vmatprep.subr.bf16.mxu0 0
        %2619 = vmatpush2.bf16.msra.mxu0 0
        %2620 = vmatprep.subr.bf16.mxu0 0
        %2621 = vmatpush2.bf16.msra.mxu0 0
        %2622 = vmatprep.mubr.bf16.mxu0 0
        %2623 = vmatmul.mubr.bf16.gmra.mxu0 %v2567
        %v2624 = vpop.f32.mrf.mxu0
        %v2625 = vadd.f32 %v1098, %v2624
        %v2626 = vpop.f32.mrf.mxu0
        %v2627 = vpop.f32.mrf.mxu0
        %v2628 = vadd.f32 %v1098, %v2627
        %v2629 = vpop.f32.mrf.mxu0
        %2630 = vmatprep.mubr.bf16.mxu0 0
        %2631 = vmatmul.mubr.bf16.gmra.mxu0 %v2570
        %v2632 = vpop.f32.mrf.mxu0
        %v2633 = vadd.f32 %v1098, %v2632
        %v2634 = vpop.f32.mrf.mxu0
        %v2635 = vpop.f32.mrf.mxu0
        %v2636 = vadd.f32 %v1098, %v2635
        %v2637 = vpop.f32.mrf.mxu0
        %2638 = vmatprep.mubr.bf16.mxu0 0
        %2639 = vmatmul.mubr.bf16.gmra.mxu0 %v2573
        %v2640 = vpop.f32.mrf.mxu0
        %v2641 = vadd.f32 %v1098, %v2640
        %v2642 = vpop.f32.mrf.mxu0
        %v2643 = vpop.f32.mrf.mxu0
        %v2644 = vadd.f32 %v1098, %v2643
        %v2645 = vpop.f32.mrf.mxu0
        %2646 = vmatprep.mubr.bf16.mxu0 0
        %2647 = vmatmul.mubr.bf16.gmra.mxu0 %v2576
        %v2648 = vpop.f32.mrf.mxu0
        %v2649 = vadd.f32 %v1098, %v2648
        %v2650 = vpop.f32.mrf.mxu0
        %v2651 = vpop.f32.mrf.mxu0
        %v2652 = vadd.f32 %v1098, %v2651
        %v2653 = vpop.f32.mrf.mxu0
        %2654 = vmatprep.mubr.bf16.mxu0 0
        %2655 = vmatmul.mubr.bf16.gmra.mxu0 %v2579
        %v2656 = vpop.f32.mrf.mxu0
        %v2657 = vadd.f32 %v1098, %v2656
        %v2658 = vpop.f32.mrf.mxu0
        %v2659 = vpop.f32.mrf.mxu0
        %v2660 = vadd.f32 %v1098, %v2659
        %v2661 = vpop.f32.mrf.mxu0
        %2662 = vmatprep.mubr.bf16.mxu0 0
        %2663 = vmatmul.mubr.bf16.gmra.mxu0 %v2582
        %v2664 = vpop.f32.mrf.mxu0
        %v2665 = vadd.f32 %v1098, %v2664
        %v2666 = vpop.f32.mrf.mxu0
        %v2667 = vpop.f32.mrf.mxu0
        %v2668 = vadd.f32 %v1098, %v2667
        %v2669 = vpop.f32.mrf.mxu0
        %2670 = vmatprep.mubr.bf16.mxu0 0
        %2671 = vmatmul.mubr.bf16.gmra.mxu0 %v2585
        %v2672 = vpop.f32.mrf.mxu0
        %v2673 = vadd.f32 %v1098, %v2672
        %v2674 = vpop.f32.mrf.mxu0
        %v2675 = vpop.f32.mrf.mxu0
        %v2676 = vadd.f32 %v1098, %v2675
        %v2677 = vpop.f32.mrf.mxu0
        %2678 = vmatprep.mubr.bf16.mxu0 0
        %2679 = vmatmul.mubr.bf16.gmra.mxu0 %v2588
        %v2680 = vpop.f32.mrf.mxu0
        %v2681 = vadd.f32 %v1098, %v2680
        %v2682 = vpop.f32.mrf.mxu0
        %v2683 = vpop.f32.mrf.mxu0
        %v2684 = vadd.f32 %v1098, %v2683
        %v2685 = vpop.f32.mrf.mxu0
        %2686 = vdwg.mxu0
        %v2687 = vmax.f32 %v2625, 0.0
        %v2688 = vmax.f32 %v2628, 0.0
        %v2689 = vmax.f32 %v2633, 0.0
        %v2690 = vmax.f32 %v2636, 0.0
        %v2691 = vmax.f32 %v2641, 0.0
        %v2692 = vmax.f32 %v2644, 0.0
        %v2693 = vmax.f32 %v2649, 0.0
        %v2694 = vmax.f32 %v2652, 0.0
        %v2695 = vmax.f32 %v2657, 0.0
        %v2696 = vmax.f32 %v2660, 0.0
        %v2697 = vmax.f32 %v2665, 0.0
        %v2698 = vmax.f32 %v2668, 0.0
        %v2699 = vmax.f32 %v2673, 0.0
        %v2700 = vmax.f32 %v2676, 0.0
        %v2701 = vmax.f32 %v2681, 0.0
        %v2702 = vmax.f32 %v2684, 0.0
        %v2703 = vpack.c.bf16 %v2688, %v2687
        %v2704 = vpack.c.bf16 %v2690, %v2689
        %v2705 = vpack.c.bf16 %v2692, %v2691
        %v2706 = vpack.c.bf16 %v2694, %v2693
        %v2707 = vpack.c.bf16 %v2696, %v2695
        %v2708 = vpack.c.bf16 %v2698, %v2697
        %v2709 = vpack.c.bf16 %v2700, %v2699
        %v2710 = vpack.c.bf16 %v2702, %v2701
        %v2719 = vunpack.c.l.b16 %v2703
        %v2720 = vunpack.c.h.b16 %v2703
        %v2721 = vunpack.c.l.b16 %v2704
        %v2722 = vunpack.c.h.b16 %v2704
        %v2723 = vunpack.c.l.b16 %v2705
        %v2724 = vunpack.c.h.b16 %v2705
        %v2725 = vunpack.c.l.b16 %v2706
        %v2726 = vunpack.c.h.b16 %v2706
        %v2727 = vunpack.c.l.b16 %v2707
        %v2728 = vunpack.c.h.b16 %v2707
        %v2729 = vunpack.c.l.b16 %v2708
        %v2730 = vunpack.c.h.b16 %v2708
        %v2731 = vunpack.c.l.b16 %v2709
        %v2732 = vunpack.c.h.b16 %v2709
        %v2733 = vunpack.c.l.b16 %v2710
        %v2734 = vunpack.c.h.b16 %v2710
        %v2735 = vpack.c.b16 %v2719, %v2719
        %v2736 = vpack.c.b16 %v2720, %v2720
        %v2737 = vpack.c.b16 %v2721, %v2721
        %v2738 = vpack.c.b16 %v2722, %v2722
        %v2739 = vpack.c.b16 %v2723, %v2723
        %v2740 = vpack.c.b16 %v2724, %v2724
        %v2741 = vpack.c.b16 %v2725, %v2725
        %v2742 = vpack.c.b16 %v2726, %v2726
        %v2743 = vpack.c.b16 %v2727, %v2727
        %v2744 = vpack.c.b16 %v2728, %v2728
        %v2745 = vpack.c.b16 %v2729, %v2729
        %v2746 = vpack.c.b16 %v2730, %v2730
        %v2747 = vpack.c.b16 %v2731, %v2731
        %v2748 = vpack.c.b16 %v2732, %v2732
        %v2749 = vpack.c.b16 %v2733, %v2733
        %v2750 = vpack.c.b16 %v2734, %v2734
        %s2767 = scalar_lea.vmem %s447, 192 [#allocation3]
        %2768 = vst.msk [vmem:[%s2767] sm:$0xf] %vm1304, %v2735
        %2769 = vst.msk [vmem:[%s2767 + $0x4] sm:$0xf] %vm1304, %v2736
        %2770 = vst.msk [vmem:[%s2767 + $0x8] sm:$0xf] %vm1304, %v2737
        %2771 = vst.msk [vmem:[%s2767 + $0xc] sm:$0xf] %vm1304, %v2738
        %2772 = vst.msk [vmem:[%s2767 + $0x10] sm:$0xf] %vm1304, %v2739
        %2773 = vst.msk [vmem:[%s2767 + $0x14] sm:$0xf] %vm1304, %v2740
        %2774 = vst.msk [vmem:[%s2767 + $0x18] sm:$0xf] %vm1304, %v2741
        %2775 = vst.msk [vmem:[%s2767 + $0x1c] sm:$0xf] %vm1304, %v2742
        %2776 = vst.msk [vmem:[%s2767 + $0x20] sm:$0xf] %vm1304, %v2743
        %2777 = vst.msk [vmem:[%s2767 + $0x24] sm:$0xf] %vm1304, %v2744
        %2778 = vst.msk [vmem:[%s2767 + $0x28] sm:$0xf] %vm1304, %v2745
        %2779 = vst.msk [vmem:[%s2767 + $0x2c] sm:$0xf] %vm1304, %v2746
        %2780 = vst.msk [vmem:[%s2767 + $0x30] sm:$0xf] %vm1304, %v2747
        %2781 = vst.msk [vmem:[%s2767 + $0x34] sm:$0xf] %vm1304, %v2748
        %2782 = vst.msk [vmem:[%s2767 + $0x38] sm:$0xf] %vm1304, %v2749
        %2783 = vst.msk [vmem:[%s2767 + $0x3c] sm:$0xf] %vm1304, %v2750
        %s2784 = sand.u32 %s297, 1
        %s2785 = sand.u32 %s297, 1
        %s2786 = smul.addr %s2785, 256
        %s2787 = scalar_lea.vmem [#allocation3], %s2786
        // Predicated region
        $region65: #{decoder_block.1} parent=63 // pred_check
          %p2788 = pneg %p307
        $region66: #{decoder_block.1} parent=63 // pred_check_branch
          %2790 = sbr.rel (%p2788) target = $region68
        $region67: #{decoder_block.1} parent=63 // pred_region
          %s2791 = smul.u32 8, %s27
          %s2792 = smul.addr %s2791, 2
          %s2793 = smul.addr %s26, 128
          %s2794 = sadd.s32 %s2792, %s2793
          %s2795 = smul.addr %s2794, 4
          %s2796 = scalar_lea.vmem %s11, %s2795
          // Predicated region
          $region69: #{decoder_block.1} parent=67 // pred_check
            _
          $region70: #{decoder_block.1} parent=67 // pred_check_branch
            %2798 = sbr.rel (0) target = $region72
          $region71: #{decoder_block.1} parent=67 // pred_region
            // Predicated region
            $region73: #{decoder_block.1} parent=71 // pred_check
              _
            $region74: #{decoder_block.1} parent=71 // pred_check_branch
              %2800 = sbr.rel target = $region76
            $region75: #{decoder_block.1} parent=71 // pred_region
              // Predicated region
              $region88: #{decoder_block.1} parent=75 // pred_check
                _
              $region89: #{decoder_block.1} parent=75 // pred_check_branch
                %2942 = sbr.rel (0) target = $region91
              $region90: #{decoder_block.1} parent=75 // pred_region
                loop: start=0, step=1, limit=1
                $region92: #{decoder_block.1} parent=90 // loop_pre_header
                  _
                $region93: #{decoder_block.1} parent=90 // loop_header
                  %s2944 = sphi 0, %s2948
                  %p2945 = scmp.ge.s32.totalorder %s2944, 1
                  %s2949 = sphi %s2787, %s2787
                  %s2950 = sphi %s2796, %s2796
                $region94: #{decoder_block.1} parent=90 // loop_header_branch
                  %2947 = sbr.rel (%p2945) target = $region98
                $region95: #{decoder_block.1} parent=90 // loop_body
                  _
                $region96: #{decoder_block.1} parent=90 // loop_footer
                  %s2948 = sadd.s32 1, %s2944
                $region97: #{decoder_block.1} parent=90 // loop_footer_branch
                  %2943 = sbr.rel target = $region93
                $region98: #{decoder_block.1} parent=90 // loop_exit
                  _
                %s2952 = ssub.s32 16, 1
                loop: start=0, step=1, limit=1
                $region99: #{decoder_block.1} parent=90 // loop_pre_header
                  _
                $region100: #{decoder_block.1} parent=90 // loop_header
                  %s2954 = sphi 0, %s2958
                  %p2955 = scmp.ge.s32.totalorder %s2954, 1
                  %s2959 = sphi %s2787, %s2787
                  %s2960 = sphi %s2796, %s2796
                $region101: #{decoder_block.1} parent=90 // loop_header_branch
                  %2957 = sbr.rel (%p2955) target = $region105
                $region102: #{decoder_block.1} parent=90 // loop_body
                  %v2961 = vld [vmem:[%s2959] sm:%s2952]
                  %2962 = vst [vmem:[%s2960] sm:%s2952] %v2961
                  %v2963 = vld [vmem:[%s2959 + $0x4] sm:%s2952]
                  %2964 = vst [vmem:[%s2960 + $0x4] sm:%s2952] %v2963
                  %v2965 = vld [vmem:[%s2959 + $0x8] sm:%s2952]
                  %2966 = vst [vmem:[%s2960 + $0x8] sm:%s2952] %v2965
                  %v2967 = vld [vmem:[%s2959 + $0xc] sm:%s2952]
                  %2968 = vst [vmem:[%s2960 + $0xc] sm:%s2952] %v2967
                  %v2969 = vld [vmem:[%s2959 + $0x10] sm:%s2952]
                  %2970 = vst [vmem:[%s2960 + $0x10] sm:%s2952] %v2969
                  %v2971 = vld [vmem:[%s2959 + $0x14] sm:%s2952]
                  %2972 = vst [vmem:[%s2960 + $0x14] sm:%s2952] %v2971
                  %v2973 = vld [vmem:[%s2959 + $0x18] sm:%s2952]
                  %2974 = vst [vmem:[%s2960 + $0x18] sm:%s2952] %v2973
                  %v2975 = vld [vmem:[%s2959 + $0x1c] sm:%s2952]
                  %2976 = vst [vmem:[%s2960 + $0x1c] sm:%s2952] %v2975
                  %v2977 = vld [vmem:[%s2959 + $0x20] sm:%s2952]
                  %2978 = vst [vmem:[%s2960 + $0x20] sm:%s2952] %v2977
                  %v2979 = vld [vmem:[%s2959 + $0x24] sm:%s2952]
                  %2980 = vst [vmem:[%s2960 + $0x24] sm:%s2952] %v2979
                  %v2981 = vld [vmem:[%s2959 + $0x28] sm:%s2952]
                  %2982 = vst [vmem:[%s2960 + $0x28] sm:%s2952] %v2981
                  %v2983 = vld [vmem:[%s2959 + $0x2c] sm:%s2952]
                  %2984 = vst [vmem:[%s2960 + $0x2c] sm:%s2952] %v2983
                  %v2985 = vld [vmem:[%s2959 + $0x30] sm:%s2952]
                  %2986 = vst [vmem:[%s2960 + $0x30] sm:%s2952] %v2985
                  %v2987 = vld [vmem:[%s2959 + $0x34] sm:%s2952]
                  %2988 = vst [vmem:[%s2960 + $0x34] sm:%s2952] %v2987
                  %v2989 = vld [vmem:[%s2959 + $0x38] sm:%s2952]
                  %2990 = vst [vmem:[%s2960 + $0x38] sm:%s2952] %v2989
                  %v2991 = vld [vmem:[%s2959 + $0x3c] sm:%s2952]
                  %2992 = vst [vmem:[%s2960 + $0x3c] sm:%s2952] %v2991
                  %v2993 = vld [vmem:[%s2959 + $0x40] sm:%s2952]
                  %2994 = vst [vmem:[%s2960 + $0x80] sm:%s2952] %v2993
                  %v2995 = vld [vmem:[%s2959 + $0x44] sm:%s2952]
                  %2996 = vst [vmem:[%s2960 + $0x84] sm:%s2952] %v2995
                  %v2997 = vld [vmem:[%s2959 + $0x48] sm:%s2952]
                  %2998 = vst [vmem:[%s2960 + $0x88] sm:%s2952] %v2997
                  %v2999 = vld [vmem:[%s2959 + $0x4c] sm:%s2952]
                  %3000 = vst [vmem:[%s2960 + $0x8c] sm:%s2952] %v2999
                  %v3001 = vld [vmem:[%s2959 + $0x50] sm:%s2952]
                  %3002 = vst [vmem:[%s2960 + $0x90] sm:%s2952] %v3001
                  %v3003 = vld [vmem:[%s2959 + $0x54] sm:%s2952]
                  %3004 = vst [vmem:[%s2960 + $0x94] sm:%s2952] %v3003
                  %v3005 = vld [vmem:[%s2959 + $0x58] sm:%s2952]
                  %3006 = vst [vmem:[%s2960 + $0x98] sm:%s2952] %v3005
                  %v3007 = vld [vmem:[%s2959 + $0x5c] sm:%s2952]
                  %3008 = vst [vmem:[%s2960 + $0x9c] sm:%s2952] %v3007
                  %v3009 = vld [vmem:[%s2959 + $0x60] sm:%s2952]
                  %3010 = vst [vmem:[%s2960 + $0xa0] sm:%s2952] %v3009
                  %v3011 = vld [vmem:[%s2959 + $0x64] sm:%s2952]
                  %3012 = vst [vmem:[%s2960 + $0xa4] sm:%s2952] %v3011
                  %v3013 = vld [vmem:[%s2959 + $0x68] sm:%s2952]
                  %3014 = vst [vmem:[%s2960 + $0xa8] sm:%s2952] %v3013
                  %v3015 = vld [vmem:[%s2959 + $0x6c] sm:%s2952]
                  %3016 = vst [vmem:[%s2960 + $0xac] sm:%s2952] %v3015
                  %v3017 = vld [vmem:[%s2959 + $0x70] sm:%s2952]
                  %3018 = vst [vmem:[%s2960 + $0xb0] sm:%s2952] %v3017
                  %v3019 = vld [vmem:[%s2959 + $0x74] sm:%s2952]
                  %3020 = vst [vmem:[%s2960 + $0xb4] sm:%s2952] %v3019
                  %v3021 = vld [vmem:[%s2959 + $0x78] sm:%s2952]
                  %3022 = vst [vmem:[%s2960 + $0xb8] sm:%s2952] %v3021
                  %v3023 = vld [vmem:[%s2959 + $0x7c] sm:%s2952]
                  %3024 = vst [vmem:[%s2960 + $0xbc] sm:%s2952] %v3023
                  %v3025 = vld [vmem:[%s2959 + $0x80] sm:%s2952]
                  %3026 = vst [vmem:[%s2960 + $0x100] sm:%s2952] %v3025
                  %v3027 = vld [vmem:[%s2959 + $0x84] sm:%s2952]
                  %3028 = vst [vmem:[%s2960 + $0x104] sm:%s2952] %v3027
                  %v3029 = vld [vmem:[%s2959 + $0x88] sm:%s2952]
                  %3030 = vst [vmem:[%s2960 + $0x108] sm:%s2952] %v3029
                  %v3031 = vld [vmem:[%s2959 + $0x8c] sm:%s2952]
                  %3032 = vst [vmem:[%s2960 + $0x10c] sm:%s2952] %v3031
                  %v3033 = vld [vmem:[%s2959 + $0x90] sm:%s2952]
                  %3034 = vst [vmem:[%s2960 + $0x110] sm:%s2952] %v3033
                  %v3035 = vld [vmem:[%s2959 + $0x94] sm:%s2952]
                  %3036 = vst [vmem:[%s2960 + $0x114] sm:%s2952] %v3035
                  %v3037 = vld [vmem:[%s2959 + $0x98] sm:%s2952]
                  %3038 = vst [vmem:[%s2960 + $0x118] sm:%s2952] %v3037
                  %v3039 = vld [vmem:[%s2959 + $0x9c] sm:%s2952]
                  %3040 = vst [vmem:[%s2960 + $0x11c] sm:%s2952] %v3039
                  %v3041 = vld [vmem:[%s2959 + $0xa0] sm:%s2952]
                  %3042 = vst [vmem:[%s2960 + $0x120] sm:%s2952] %v3041
                  %v3043 = vld [vmem:[%s2959 + $0xa4] sm:%s2952]
                  %3044 = vst [vmem:[%s2960 + $0x124] sm:%s2952] %v3043
                  %v3045 = vld [vmem:[%s2959 + $0xa8] sm:%s2952]
                  %3046 = vst [vmem:[%s2960 + $0x128] sm:%s2952] %v3045
                  %v3047 = vld [vmem:[%s2959 + $0xac] sm:%s2952]
                  %3048 = vst [vmem:[%s2960 + $0x12c] sm:%s2952] %v3047
                  %v3049 = vld [vmem:[%s2959 + $0xb0] sm:%s2952]
                  %3050 = vst [vmem:[%s2960 + $0x130] sm:%s2952] %v3049
                  %v3051 = vld [vmem:[%s2959 + $0xb4] sm:%s2952]
                  %3052 = vst [vmem:[%s2960 + $0x134] sm:%s2952] %v3051
                  %v3053 = vld [vmem:[%s2959 + $0xb8] sm:%s2952]
                  %3054 = vst [vmem:[%s2960 + $0x138] sm:%s2952] %v3053
                  %v3055 = vld [vmem:[%s2959 + $0xbc] sm:%s2952]
                  %3056 = vst [vmem:[%s2960 + $0x13c] sm:%s2952] %v3055
                  %v3057 = vld [vmem:[%s2959 + $0xc0] sm:%s2952]
                  %3058 = vst [vmem:[%s2960 + $0x180] sm:%s2952] %v3057
                  %v3059 = vld [vmem:[%s2959 + $0xc4] sm:%s2952]
                  %3060 = vst [vmem:[%s2960 + $0x184] sm:%s2952] %v3059
                  %v3061 = vld [vmem:[%s2959 + $0xc8] sm:%s2952]
                  %3062 = vst [vmem:[%s2960 + $0x188] sm:%s2952] %v3061
                  %v3063 = vld [vmem:[%s2959 + $0xcc] sm:%s2952]
                  %3064 = vst [vmem:[%s2960 + $0x18c] sm:%s2952] %v3063
                  %v3065 = vld [vmem:[%s2959 + $0xd0] sm:%s2952]
                  %3066 = vst [vmem:[%s2960 + $0x190] sm:%s2952] %v3065
                  %v3067 = vld [vmem:[%s2959 + $0xd4] sm:%s2952]
                  %3068 = vst [vmem:[%s2960 + $0x194] sm:%s2952] %v3067
                  %v3069 = vld [vmem:[%s2959 + $0xd8] sm:%s2952]
                  %3070 = vst [vmem:[%s2960 + $0x198] sm:%s2952] %v3069
                  %v3071 = vld [vmem:[%s2959 + $0xdc] sm:%s2952]
                  %3072 = vst [vmem:[%s2960 + $0x19c] sm:%s2952] %v3071
                  %v3073 = vld [vmem:[%s2959 + $0xe0] sm:%s2952]
                  %3074 = vst [vmem:[%s2960 + $0x1a0] sm:%s2952] %v3073
                  %v3075 = vld [vmem:[%s2959 + $0xe4] sm:%s2952]
                  %3076 = vst [vmem:[%s2960 + $0x1a4] sm:%s2952] %v3075
                  %v3077 = vld [vmem:[%s2959 + $0xe8] sm:%s2952]
                  %3078 = vst [vmem:[%s2960 + $0x1a8] sm:%s2952] %v3077
                  %v3079 = vld [vmem:[%s2959 + $0xec] sm:%s2952]
                  %3080 = vst [vmem:[%s2960 + $0x1ac] sm:%s2952] %v3079
                  %v3081 = vld [vmem:[%s2959 + $0xf0] sm:%s2952]
                  %3082 = vst [vmem:[%s2960 + $0x1b0] sm:%s2952] %v3081
                  %v3083 = vld [vmem:[%s2959 + $0xf4] sm:%s2952]
                  %3084 = vst [vmem:[%s2960 + $0x1b4] sm:%s2952] %v3083
                  %v3085 = vld [vmem:[%s2959 + $0xf8] sm:%s2952]
                  %3086 = vst [vmem:[%s2960 + $0x1b8] sm:%s2952] %v3085
                  %v3087 = vld [vmem:[%s2959 + $0xfc] sm:%s2952]
                  %3088 = vst [vmem:[%s2960 + $0x1bc] sm:%s2952] %v3087
                $region103: #{decoder_block.1} parent=90 // loop_footer
                  %s2958 = sadd.s32 1, %s2954
                $region104: #{decoder_block.1} parent=90 // loop_footer_branch
                  %2953 = sbr.rel target = $region100
                $region105: #{decoder_block.1} parent=90 // loop_exit
                  _
              $region91: #{decoder_block.1} parent=75 // pred_fallthru
                _
            $region76: #{decoder_block.1} parent=71 // pred_fallthru
              _
            // Predicated region
            $region77: #{decoder_block.1} parent=71 // pred_check
              _
            $region78: #{decoder_block.1} parent=71 // pred_check_branch
              %2802 = sbr.rel (0) target = $region80
            $region79: #{decoder_block.1} parent=71 // pred_region
              %s2804 = ssub.s32 16, 1
              loop: start=0, step=1, limit=1
              $region81: #{decoder_block.1} parent=79 // loop_pre_header
                _
              $region82: #{decoder_block.1} parent=79 // loop_header
                %s2806 = sphi 0, %s2810
                %p2807 = scmp.ge.s32.totalorder %s2806, 1
                %s2811 = sphi %s2787, %s2787
                %s2812 = sphi %s2796, %s2796
              $region83: #{decoder_block.1} parent=79 // loop_header_branch
                %2809 = sbr.rel (%p2807) target = $region87
              $region84: #{decoder_block.1} parent=79 // loop_body
                %v2813 = vld [vmem:[%s2811] sm:%s2804]
                %2814 = vst [vmem:[%s2812] sm:%s2804] %v2813
                %v2815 = vld [vmem:[%s2811 + $0x4] sm:%s2804]
                %2816 = vst [vmem:[%s2812 + $0x4] sm:%s2804] %v2815
                %v2817 = vld [vmem:[%s2811 + $0x8] sm:%s2804]
                %2818 = vst [vmem:[%s2812 + $0x8] sm:%s2804] %v2817
                %v2819 = vld [vmem:[%s2811 + $0xc] sm:%s2804]
                %2820 = vst [vmem:[%s2812 + $0xc] sm:%s2804] %v2819
                %v2821 = vld [vmem:[%s2811 + $0x10] sm:%s2804]
                %2822 = vst [vmem:[%s2812 + $0x10] sm:%s2804] %v2821
                %v2823 = vld [vmem:[%s2811 + $0x14] sm:%s2804]
                %2824 = vst [vmem:[%s2812 + $0x14] sm:%s2804] %v2823
                %v2825 = vld [vmem:[%s2811 + $0x18] sm:%s2804]
                %2826 = vst [vmem:[%s2812 + $0x18] sm:%s2804] %v2825
                %v2827 = vld [vmem:[%s2811 + $0x1c] sm:%s2804]
                %2828 = vst [vmem:[%s2812 + $0x1c] sm:%s2804] %v2827
                %v2829 = vld [vmem:[%s2811 + $0x20] sm:%s2804]
                %2830 = vst [vmem:[%s2812 + $0x20] sm:%s2804] %v2829
                %v2831 = vld [vmem:[%s2811 + $0x24] sm:%s2804]
                %2832 = vst [vmem:[%s2812 + $0x24] sm:%s2804] %v2831
                %v2833 = vld [vmem:[%s2811 + $0x28] sm:%s2804]
                %2834 = vst [vmem:[%s2812 + $0x28] sm:%s2804] %v2833
                %v2835 = vld [vmem:[%s2811 + $0x2c] sm:%s2804]
                %2836 = vst [vmem:[%s2812 + $0x2c] sm:%s2804] %v2835
                %v2837 = vld [vmem:[%s2811 + $0x30] sm:%s2804]
                %2838 = vst [vmem:[%s2812 + $0x30] sm:%s2804] %v2837
                %v2839 = vld [vmem:[%s2811 + $0x34] sm:%s2804]
                %2840 = vst [vmem:[%s2812 + $0x34] sm:%s2804] %v2839
                %v2841 = vld [vmem:[%s2811 + $0x38] sm:%s2804]
                %2842 = vst [vmem:[%s2812 + $0x38] sm:%s2804] %v2841
                %v2843 = vld [vmem:[%s2811 + $0x3c] sm:%s2804]
                %2844 = vst [vmem:[%s2812 + $0x3c] sm:%s2804] %v2843
                %v2845 = vld [vmem:[%s2811 + $0x40] sm:%s2804]
                %2846 = vst [vmem:[%s2812 + $0x80] sm:%s2804] %v2845
                %v2847 = vld [vmem:[%s2811 + $0x44] sm:%s2804]
                %2848 = vst [vmem:[%s2812 + $0x84] sm:%s2804] %v2847
                %v2849 = vld [vmem:[%s2811 + $0x48] sm:%s2804]
                %2850 = vst [vmem:[%s2812 + $0x88] sm:%s2804] %v2849
                %v2851 = vld [vmem:[%s2811 + $0x4c] sm:%s2804]
                %2852 = vst [vmem:[%s2812 + $0x8c] sm:%s2804] %v2851
                %v2853 = vld [vmem:[%s2811 + $0x50] sm:%s2804]
                %2854 = vst [vmem:[%s2812 + $0x90] sm:%s2804] %v2853
                %v2855 = vld [vmem:[%s2811 + $0x54] sm:%s2804]
                %2856 = vst [vmem:[%s2812 + $0x94] sm:%s2804] %v2855
                %v2857 = vld [vmem:[%s2811 + $0x58] sm:%s2804]
                %2858 = vst [vmem:[%s2812 + $0x98] sm:%s2804] %v2857
                %v2859 = vld [vmem:[%s2811 + $0x5c] sm:%s2804]
                %2860 = vst [vmem:[%s2812 + $0x9c] sm:%s2804] %v2859
                %v2861 = vld [vmem:[%s2811 + $0x60] sm:%s2804]
                %2862 = vst [vmem:[%s2812 + $0xa0] sm:%s2804] %v2861
                %v2863 = vld [vmem:[%s2811 + $0x64] sm:%s2804]
                %2864 = vst [vmem:[%s2812 + $0xa4] sm:%s2804] %v2863
                %v2865 = vld [vmem:[%s2811 + $0x68] sm:%s2804]
                %2866 = vst [vmem:[%s2812 + $0xa8] sm:%s2804] %v2865
                %v2867 = vld [vmem:[%s2811 + $0x6c] sm:%s2804]
                %2868 = vst [vmem:[%s2812 + $0xac] sm:%s2804] %v2867
                %v2869 = vld [vmem:[%s2811 + $0x70] sm:%s2804]
                %2870 = vst [vmem:[%s2812 + $0xb0] sm:%s2804] %v2869
                %v2871 = vld [vmem:[%s2811 + $0x74] sm:%s2804]
                %2872 = vst [vmem:[%s2812 + $0xb4] sm:%s2804] %v2871
                %v2873 = vld [vmem:[%s2811 + $0x78] sm:%s2804]
                %2874 = vst [vmem:[%s2812 + $0xb8] sm:%s2804] %v2873
                %v2875 = vld [vmem:[%s2811 + $0x7c] sm:%s2804]
                %2876 = vst [vmem:[%s2812 + $0xbc] sm:%s2804] %v2875
                %v2877 = vld [vmem:[%s2811 + $0x80] sm:%s2804]
                %2878 = vst [vmem:[%s2812 + $0x100] sm:%s2804] %v2877
                %v2879 = vld [vmem:[%s2811 + $0x84] sm:%s2804]
                %2880 = vst [vmem:[%s2812 + $0x104] sm:%s2804] %v2879
                %v2881 = vld [vmem:[%s2811 + $0x88] sm:%s2804]
                %2882 = vst [vmem:[%s2812 + $0x108] sm:%s2804] %v2881
                %v2883 = vld [vmem:[%s2811 + $0x8c] sm:%s2804]
                %2884 = vst [vmem:[%s2812 + $0x10c] sm:%s2804] %v2883
                %v2885 = vld [vmem:[%s2811 + $0x90] sm:%s2804]
                %2886 = vst [vmem:[%s2812 + $0x110] sm:%s2804] %v2885
                %v2887 = vld [vmem:[%s2811 + $0x94] sm:%s2804]
                %2888 = vst [vmem:[%s2812 + $0x114] sm:%s2804] %v2887
                %v2889 = vld [vmem:[%s2811 + $0x98] sm:%s2804]
                %2890 = vst [vmem:[%s2812 + $0x118] sm:%s2804] %v2889
                %v2891 = vld [vmem:[%s2811 + $0x9c] sm:%s2804]
                %2892 = vst [vmem:[%s2812 + $0x11c] sm:%s2804] %v2891
                %v2893 = vld [vmem:[%s2811 + $0xa0] sm:%s2804]
                %2894 = vst [vmem:[%s2812 + $0x120] sm:%s2804] %v2893
                %v2895 = vld [vmem:[%s2811 + $0xa4] sm:%s2804]
                %2896 = vst [vmem:[%s2812 + $0x124] sm:%s2804] %v2895
                %v2897 = vld [vmem:[%s2811 + $0xa8] sm:%s2804]
                %2898 = vst [vmem:[%s2812 + $0x128] sm:%s2804] %v2897
                %v2899 = vld [vmem:[%s2811 + $0xac] sm:%s2804]
                %2900 = vst [vmem:[%s2812 + $0x12c] sm:%s2804] %v2899
                %v2901 = vld [vmem:[%s2811 + $0xb0] sm:%s2804]
                %2902 = vst [vmem:[%s2812 + $0x130] sm:%s2804] %v2901
                %v2903 = vld [vmem:[%s2811 + $0xb4] sm:%s2804]
                %2904 = vst [vmem:[%s2812 + $0x134] sm:%s2804] %v2903
                %v2905 = vld [vmem:[%s2811 + $0xb8] sm:%s2804]
                %2906 = vst [vmem:[%s2812 + $0x138] sm:%s2804] %v2905
                %v2907 = vld [vmem:[%s2811 + $0xbc] sm:%s2804]
                %2908 = vst [vmem:[%s2812 + $0x13c] sm:%s2804] %v2907
                %v2909 = vld [vmem:[%s2811 + $0xc0] sm:%s2804]
                %2910 = vst [vmem:[%s2812 + $0x180] sm:%s2804] %v2909
                %v2911 = vld [vmem:[%s2811 + $0xc4] sm:%s2804]
                %2912 = vst [vmem:[%s2812 + $0x184] sm:%s2804] %v2911
                %v2913 = vld [vmem:[%s2811 + $0xc8] sm:%s2804]
                %2914 = vst [vmem:[%s2812 + $0x188] sm:%s2804] %v2913
                %v2915 = vld [vmem:[%s2811 + $0xcc] sm:%s2804]
                %2916 = vst [vmem:[%s2812 + $0x18c] sm:%s2804] %v2915
                %v2917 = vld [vmem:[%s2811 + $0xd0] sm:%s2804]
                %2918 = vst [vmem:[%s2812 + $0x190] sm:%s2804] %v2917
                %v2919 = vld [vmem:[%s2811 + $0xd4] sm:%s2804]
                %2920 = vst [vmem:[%s2812 + $0x194] sm:%s2804] %v2919
                %v2921 = vld [vmem:[%s2811 + $0xd8] sm:%s2804]
                %2922 = vst [vmem:[%s2812 + $0x198] sm:%s2804] %v2921
                %v2923 = vld [vmem:[%s2811 + $0xdc] sm:%s2804]
                %2924 = vst [vmem:[%s2812 + $0x19c] sm:%s2804] %v2923
                %v2925 = vld [vmem:[%s2811 + $0xe0] sm:%s2804]
                %2926 = vst [vmem:[%s2812 + $0x1a0] sm:%s2804] %v2925
                %v2927 = vld [vmem:[%s2811 + $0xe4] sm:%s2804]
                %2928 = vst [vmem:[%s2812 + $0x1a4] sm:%s2804] %v2927
                %v2929 = vld [vmem:[%s2811 + $0xe8] sm:%s2804]
                %2930 = vst [vmem:[%s2812 + $0x1a8] sm:%s2804] %v2929
                %v2931 = vld [vmem:[%s2811 + $0xec] sm:%s2804]
                %2932 = vst [vmem:[%s2812 + $0x1ac] sm:%s2804] %v2931
                %v2933 = vld [vmem:[%s2811 + $0xf0] sm:%s2804]
                %2934 = vst [vmem:[%s2812 + $0x1b0] sm:%s2804] %v2933
                %v2935 = vld [vmem:[%s2811 + $0xf4] sm:%s2804]
                %2936 = vst [vmem:[%s2812 + $0x1b4] sm:%s2804] %v2935
                %v2937 = vld [vmem:[%s2811 + $0xf8] sm:%s2804]
                %2938 = vst [vmem:[%s2812 + $0x1b8] sm:%s2804] %v2937
                %v2939 = vld [vmem:[%s2811 + $0xfc] sm:%s2804]
                %2940 = vst [vmem:[%s2812 + $0x1bc] sm:%s2804] %v2939
              $region85: #{decoder_block.1} parent=79 // loop_footer
                %s2810 = sadd.s32 1, %s2806
              $region86: #{decoder_block.1} parent=79 // loop_footer_branch
                %2805 = sbr.rel target = $region82
              $region87: #{decoder_block.1} parent=79 // loop_exit
                _
            $region80: #{decoder_block.1} parent=71 // pred_fallthru
              _
          $region72: #{decoder_block.1} parent=67 // pred_fallthru
            _
          %3089 = vnop
        $region68: #{decoder_block.1} parent=63 // pred_fallthru
          _
      $region64: #{decoder_block.1} parent=5 // pred_fallthru
        _
      %p3090 = scmp.le.s32.totalorder 2, %s17
      // Predicated region
      $region106: #{decoder_block.1} parent=5 // pred_check
        %p3091 = pneg %p3090
      $region107: #{decoder_block.1} parent=5 // pred_check_branch
        %3093 = sbr.rel (%p3091) target = $region109
      $region108: #{decoder_block.1} parent=5 // pred_region
        %s3094 = ssub.s32 %s17, 2
        // Predicated region
        $region110: #{decoder_block.1} parent=108 // pred_check
          %p3095 = pneg %p313
        $region111: #{decoder_block.1} parent=108 // pred_check_branch
          %3097 = sbr.rel (%p3095) target = $region113
        $region112: #{decoder_block.1} parent=108 // pred_region
          %s3098 = sand.u32 %s298, 1
          %s3099 = sand.u32 %s298, 1
          %s3100 = smul.addr %s3099, 256
          %s3101 = scalar_lea.vmem [#allocation3], %s3100
        $region113: #{decoder_block.1} parent=108 // pred_fallthru
          _
      $region109: #{decoder_block.1} parent=5 // pred_fallthru
        _
    $region6: #{decoder_block.1} parent=1 // loop_footer
      %s21 = sadd.s32 1, %s17
    $region7: #{decoder_block.1} parent=1 // loop_footer_branch
      %16 = sbr.rel target = $region3
    $region8: #{decoder_block.1} parent=1 // loop_exit
      _

</llo_original>
